<compile_context>
chip_gen: v5e
topology: v5e:2x2
jax: 0.10.0
libtpu: 0.0.40
codegen_flags: <defaults>
</compile_context>

<pallas_src>
import functools
import math

import jax
import jax.numpy as jnp
from jax.experimental import pallas as pl
from jax.experimental.pallas import tpu as pltpu


def _round_up(x, m):
    return ((x + m - 1) // m) * m


def _cdiv(a, b):
    return -(-a // b)


def _replicated_spec(shape):
    nd = len(shape)
    return pl.BlockSpec(shape, lambda i, _nd=nd: (0,) * _nd)


def _device_kind():
    try:
        return jax.devices()[0].device_kind.lower()
    except Exception:
        return ""


def _tensorcores_per_chip():
    kind = _device_kind()
    # v4 / v7x expose 2 TensorCores per chip (megacore); v5e/v6e expose 1.
    return 2 if ("v4" in kind or "7" in kind) else 1


def _has_256_mxu():
    kind = _device_kind()
    # v5e ("v5 lite") has 4x128x128 MXUs; v6e/v7x have 2x256x256.
    return not ("lite" in kind or "v5e" in kind)


# ----------------------------- Pallas kernel --------------------------------

def _fused_gru_kernel(*refs, num_layers, T, TB, Hp, Tc, unroll, hoist_whh):
    """Fused multi-layer GRU + (relu -> fc1 -> relu -> fc2) head.

    refs layout:
      [0]                      x_ref      (T, TB, Dp)   compute dtype
      [1 + 4*l .. 4 + 4*l]     per layer: wih (Din_p, 3Hp), whh (Hp, 3Hp),
                                          bgx (1, 3Hp) f32, bhn (1, Hp) f32
      [1+4L .. 4+4L]           w1 (Hp,128), b1 (1,128), w2 (128,Cp), b2 (1,Cp)
      [5+4L]                   out_ref    (TB, Cp) f32
      [6+4L]                   gx scratch (n_slots, Tc*TB, 3Hp) f32
      [7+4L] (num_layers > 1)  seq scratch (T, TB, Hp) compute dtype
    """
    x_ref = refs[0]
    lrefs = refs[1:1 + 4 * num_layers]
    w1_ref, b1_ref, w2_ref, b2_ref = refs[1 + 4 * num_layers:5 + 4 * num_layers]
    out_ref = refs[5 + 4 * num_layers]
    gx_ref = refs[6 + 4 * num_layers]
    seq_ref = refs[7 + 4 * num_layers] if num_layers > 1 else None

    cdt = x_ref.dtype              # MXU input dtype (bf16 or f32); acc is f32.
    n_slots = gx_ref.shape[0]

    # Static chunk schedule over time (handles a ragged tail chunk).
    chunks = []
    t0 = 0
    while t0 < T:
        ln = min(Tc, T - t0)
        chunks.append((t0, ln))
        t0 += ln
    n_chunks = len(chunks)

    h = jnp.zeros((TB, Hp), jnp.float32)
    for layer in range(num_layers):
        wih_ref, whh_ref, bgx_ref, bhn_ref = lrefs[4 * layer:4 * layer + 4]
        last_layer = layer == num_layers - 1

        def load_in(start, length, _layer=layer):
            # Previous layer's outputs are consumed before the current layer's
            # recurrence overwrites those rows (read chunk c+1 before writing
            # chunk c), so the in-place seq_ref reuse is safe.
            if _layer == 0:
                v = x_ref[pl.ds(start, length)]
            else:
                v = seq_ref[pl.ds(start, length)]
            return v.reshape(length * TB, v.shape[-1]).astype(cdt)

        def compute_gx(cidx, _load=load_in, _wih=wih_ref, _bgx=bgx_ref):
            # Time-batched input->hidden matmul for one chunk; bias includes
            # b_ih (all gates) + b_hh (r, z gates).
            start, length = chunks[cidx]
            slot = cidx % n_slots
            xin = _load(start, length)
            gx_ref[slot, 0:length * TB, :] = (
                jnp.dot(xin, _wih[...], preferred_element_type=jnp.float32)
                + _bgx[...])

        # Hoisted loads / broadcasts (kept off the serial per-step path).
        whh = whh_ref[...] if hoist_whh else None
        bhn = jnp.broadcast_to(bhn_ref[...], (TB, Hp))

        h = jnp.zeros((TB, Hp), jnp.float32)
        compute_gx(0)                                    # prologue chunk
        for c, (start, length) in enumerate(chunks):
            slot = c % n_slots
            if c + 1 < n_chunks:
                compute_gx(c + 1)                        # prefetch next chunk

            # ---- serial recurrence: only h @ W_hh + gate math per step ----
            def step(i, h, _slot=slot, _start=start, _whh=whh,
                     _whh_ref=whh_ref, _bhn=bhn, _last=last_layer):
                row = pl.multiple_of(i * TB, TB)
                gx = gx_ref[_slot, pl.ds(row, TB), :]            # (TB,3Hp) f32
                w = _whh if _whh is not None else _whh_ref[...]
                gh = jnp.dot(h.astype(cdt), w,
                             preferred_element_type=jnp.float32)
                # Fused r/z preactivation: one wide add + one wide sigmoid.
                rz = jax.nn.sigmoid(gx[:, 0:2 * Hp] + gh[:, 0:2 * Hp])
                r = rz[:, 0:Hp]
                z = rz[:, Hp:2 * Hp]
                n = jnp.tanh(gx[:, 2 * Hp:3 * Hp]
                             + r * (gh[:, 2 * Hp:3 * Hp] + _bhn))
                h_new = (1.0 - z) * n + z * h
                if not _last:            # next layer's input, stays in VMEM
                    seq_ref[_start + i] = h_new.astype(seq_ref.dtype)
                return h_new

            h = jax.lax.fori_loop(0, length, step, h, unroll=unroll)

    # ---- FC head: relu -> fc1 -> relu -> fc2 (lane-dense, Cp padded) --------
    hr = jnp.maximum(h, 0.0).astype(cdt)
    y = jnp.dot(hr, w1_ref[...], preferred_element_type=jnp.float32) + b1_ref[...]
    y = jnp.maximum(y, 0.0).astype(cdt)
    out_ref[...] = (jnp.dot(y, w2_ref[...], preferred_element_type=jnp.float32)
                    + b2_ref[...])


# ------------------------------- Wrapper -------------------------------------

@functools.partial(jax.jit, static_argnames=("num_layers", "hidden_size",
                                             "num_classes", "compute_dtype"))
def gru_model_forward(x_btd, pparams, *, num_layers, hidden_size, num_classes,
                      compute_dtype="float32"):
    """x_btd: (B, T, D) batch_first.  Returns (B, num_classes) float32."""
    B, T, D = x_btd.shape
    cdt = jnp.dtype(compute_dtype)
    Hp = _round_up(hidden_size, 128)
    Dp = _round_up(D, 128)
    Cp = _round_up(num_classes, 128)

    # ---- batch tiling: wider tiles on 256x256-MXU chips, even tile count on
    # 2-TensorCore chips so the "parallel" batch axis keeps both cores busy.
    cap = 256 if (B >= 256 and _has_256_mxu()) else 128
    n_cores = _tensorcores_per_chip()
    n_tiles = max(1, _cdiv(B, cap))
    if n_cores > 1 and B > 8:
        n_tiles = _round_up(max(n_tiles, n_cores), n_cores)
    TB = _round_up(_cdiv(B, n_tiles), 8)
    Bp = n_tiles * TB

    # ---- GX time-chunk length: bound the double-buffered GX scratch (~8 MiB).
    gx_row_bytes = TB * 3 * Hp * 4
    Tc = max(1, min(T, 16, (8 << 20) // (2 * gx_row_bytes)))
    n_chunks = _cdiv(T, Tc)
    n_slots = 2 if n_chunks > 1 else 1

    # Time-major, zero-padded (padded lanes stay zero through the recurrence),
    # cast to the MXU input dtype.
    x = jnp.transpose(x_btd, (1, 0, 2))                                  # (T,B,D)
    x = jnp.pad(x, ((0, 0), (0, Bp - B), (0, Dp - D))).astype(cdt)       # (T,Bp,Dp)

    inputs = [x]
    in_specs = [pl.BlockSpec((T, TB, Dp), lambda i: (0, i, 0))]
    for layer in range(num_layers):
        for w in pparams[f"gru_l{layer}"]:
            inputs.append(w)
            in_specs.append(_replicated_spec(w.shape))
    for w in (*pparams["fc1"], *pparams["fc2"]):
        inputs.append(w)
        in_specs.append(_replicated_spec(w.shape))

    scratch_shapes = [pltpu.VMEM((n_slots, Tc * TB, 3 * Hp), jnp.float32)]
    if num_layers > 1:
        scratch_shapes.append(pltpu.VMEM((T, TB, Hp), cdt))

    # ---- scoped-VMEM budget (Pallas double-buffers inputs/outputs).
    itemsize = cdt.itemsize
    weight_bytes = sum(math.prod(w.shape) * jnp.dtype(w.dtype).itemsize
                       for w in inputs[1:])
    need = (2 * (T * TB * Dp * itemsize + weight_bytes + TB * Cp * 4)
            + n_slots * Tc * TB * 3 * Hp * 4
            + (T * TB * Hp * itemsize if num_layers > 1 else 0))
    vmem_limit = int(min(max(need * 5 // 4 + (1 << 20), 32 << 20), 64 << 20))

    # Spill-avoidance heuristics on the serial loop (per review).
    unroll = 2 if Hp >= 256 else True
    hoist_whh = Hp <= 128

    kernel = functools.partial(_fused_gru_kernel, num_layers=num_layers,
                               T=T, TB=TB, Hp=Hp, Tc=Tc, unroll=unroll,
                               hoist_whh=hoist_whh)

    out = pl.pallas_call(
        kernel,
        out_shape=jax.ShapeDtypeStruct((Bp, Cp), jnp.float32),
        grid=(Bp // TB,),
        in_specs=in_specs,
        out_specs=pl.BlockSpec((TB, Cp), lambda i: (i, 0)),
        scratch_shapes=scratch_shapes,
        compiler_params=pltpu.CompilerParams(
            dimension_semantics=("parallel",),
            vmem_limit_bytes=vmem_limit),
    )(*inputs)

    return out[:B, :num_classes]


# ----------------------- Parameters (PyTorch layout) --------------------------

def init_params(key, input_size, hidden_size, num_layers, num_classes):
    """PyTorch-layout params, uniform(-1/sqrt(H), 1/sqrt(H))-style init."""
    H = hidden_size
    params = {}

    def u(k, shape, s):
        return jax.random.uniform(k, shape, jnp.float32, minval=-s, maxval=s)

    s = H ** -0.5
    for layer in range(num_layers):
        d_in = input_size if layer == 0 else H
        key, k1, k2, k3, k4 = jax.random.split(key, 5)
        params[f"gru_l{layer}"] = (
            u(k1, (3 * H, d_in), s),     # weight_ih_l{k}
            u(k2, (3 * H, H), s),        # weight_hh_l{k}
            u(k3, (3 * H,), s),          # bias_ih_l{k}
            u(k4, (3 * H,), s),          # bias_hh_l{k}
        )
    key, k1, k2, k3, k4 = jax.random.split(key, 5)
    s1, s2 = H ** -0.5, 128.0 ** -0.5
    params["fc1"] = (u(k1, (128, H), s1), u(k2, (128,), s1))
    params["fc2"] = (u(k3, (num_classes, 128), s2), u(k4, (num_classes,), s2))
    return params


def prepare_pallas_params(params, *, input_size, hidden_size, num_classes,
                          num_layers, compute_dtype="float32"):
    """Transpose, pad to (8,128) tiles with lane-aligned gates, fold biases."""
    H = hidden_size
    Hp = _round_up(H, 128)
    Dp = _round_up(input_size, 128)
    Cp = _round_up(num_classes, 128)
    cdt = jnp.dtype(compute_dtype)
    out = {}

    def pad_gate_cols(w_t):  # (in, 3H) -> (in, 3Hp), each gate lane-aligned
        return jnp.concatenate(
            [jnp.pad(w_t[:, g * H:(g + 1) * H], ((0, 0), (0, Hp - H)))
             for g in range(3)], axis=1)

    for layer in range(num_layers):
        w_ih, w_hh, b_ih, b_hh = params[f"gru_l{layer}"]
        d_in = input_size if layer == 0 else H
        d_in_p = Dp if layer == 0 else Hp
        wih_t = jnp.pad(pad_gate_cols(w_ih.T),
                        ((0, d_in_p - d_in), (0, 0))).astype(cdt)  # (Din_p,3Hp)
        whh_t = jnp.pad(pad_gate_cols(w_hh.T),
                        ((0, Hp - H), (0, 0))).astype(cdt)         # (Hp, 3Hp)
        # Fold b_hh into GX bias for the r,z gates; n keeps b_ih only and the
        # hh n-gate bias goes inside r * (.).
        b_r = b_ih[0:H] + b_hh[0:H]
        b_z = b_ih[H:2 * H] + b_hh[H:2 * H]
        b_n = b_ih[2 * H:3 * H]
        bgx = jnp.concatenate([jnp.pad(b, (0, Hp - H)) for b in (b_r, b_z, b_n)]
                              ).reshape(1, 3 * Hp).astype(jnp.float32)
        bhn = jnp.pad(b_hh[2 * H:3 * H], (0, Hp - H)
                      ).reshape(1, Hp).astype(jnp.float32)
        out[f"gru_l{layer}"] = (wih_t, whh_t, bgx, bhn)

    w1, b1 = params["fc1"]           # (128, H), (128,)
    w2, b2 = params["fc2"]           # (C, 128), (C,)
    out["fc1"] = (jnp.pad(w1.T, ((0, Hp - H), (0, 0))).astype(cdt),
                  b1.reshape(1, 128).astype(jnp.float32))
    out["fc2"] = (jnp.pad(w2.T, ((0, 0), (0, Cp - num_classes))).astype(cdt),
                  jnp.pad(b2, (0, Cp - num_classes)
                          ).reshape(1, Cp).astype(jnp.float32))
    return out


# ---------------------------- Pure-JAX reference ------------------------------

def reference_forward(x_btd, params, num_layers, hidden_size):
    H = hidden_size
    B = x_btd.shape[0]
    x = jnp.transpose(x_btd, (1, 0, 2))          # (T, B, D)
    h_last = None
    for layer in range(num_layers):
        w_ih, w_hh, b_ih, b_hh = params[f"gru_l{layer}"]
        h = jnp.zeros((B, H), jnp.float32)
        outs = []
        for t in range(x.shape[0]):
            gx = x[t] @ w_ih.T + b_ih
            gh = h @ w_hh.T + b_hh
            r = jax.nn.sigmoid(gx[:, 0:H] + gh[:, 0:H])
            z = jax.nn.sigmoid(gx[:, H:2 * H] + gh[:, H:2 * H])
            n = jnp.tanh(gx[:, 2 * H:3 * H] + r * gh[:, 2 * H:3 * H])
            h = (1.0 - z) * n + z * h
            outs.append(h)
        x = jnp.stack(outs, axis=0)
        h_last = h
    w1, b1 = params["fc1"]
    w2, b2 = params["fc2"]
    y = jnp.maximum(h_last, 0.0)
    y = jnp.maximum(y @ w1.T + b1, 0.0)
    return y @ w2.T + b2


# ----------------------------------- Main -------------------------------------

if __name__ == "__main__":
    num_classes = 10
    input_size = 16
    hidden_size = 32
    num_layers = 2
    batch = 4
    seq = 8

    key = jax.random.PRNGKey(0)
    key, kx, kp = jax.random.split(key, 3)
    x = jax.random.normal(kx, (batch, seq, input_size), jnp.float32)
    params = init_params(kp, input_size, hidden_size, num_layers, num_classes)
    ref = reference_forward(x, params, num_layers, hidden_size)

    # f32 MXU path (tight verification vs pure-JAX reference).
    pp_f32 = prepare_pallas_params(params, input_size=input_size,
                                   hidden_size=hidden_size,
                                   num_classes=num_classes,
                                   num_layers=num_layers,
                                   compute_dtype="float32")
    out_f32 = gru_model_forward(x, pp_f32, num_layers=num_layers,
                                hidden_size=hidden_size,
                                num_classes=num_classes,
                                compute_dtype="float32")
    out_f32 = jax.block_until_ready(out_f32)
    assert out_f32.shape == (batch, num_classes)
    assert jnp.allclose(out_f32, ref, atol=2e-4, rtol=2e-4), "f32 mismatch"

    # bf16-fed MXU path (perf config for v6e/v7x): bf16 weights/activations,
    # f32 accumulation, f32 gate math.
    pp_bf16 = prepare_pallas_params(params, input_size=input_size,
                                    hidden_size=hidden_size,
                                    num_classes=num_classes,
                                    num_layers=num_layers,
                                    compute_dtype="bfloat16")
    out_bf16 = gru_model_forward(x, pp_bf16, num_layers=num_layers,
                                 hidden_size=hidden_size,
                                 num_classes=num_classes,
                                 compute_dtype="bfloat16")
    out_bf16 = jax.block_until_ready(out_bf16)
    assert out_bf16.shape == (batch, num_classes)
    assert jnp.allclose(out_bf16, ref, atol=1e-1, rtol=1e-1), "bf16 mismatch"

    print("KERNEL_OK")
</pallas_src>

<mosaic_0001>
module attributes {stable_mosaic.version = 11 : i64} {
  func.func @_fused_gru_kernel(%arg0: i32, %arg1: memref<8x8x128xf32, #tpu.memory_space<vmem>>, %arg2: memref<128x384xf32, #tpu.memory_space<vmem>>, %arg3: memref<128x384xf32, #tpu.memory_space<vmem>>, %arg4: memref<1x384xf32, #tpu.memory_space<vmem>>, %arg5: memref<1x128xf32, #tpu.memory_space<vmem>>, %arg6: memref<128x384xf32, #tpu.memory_space<vmem>>, %arg7: memref<128x384xf32, #tpu.memory_space<vmem>>, %arg8: memref<1x384xf32, #tpu.memory_space<vmem>>, %arg9: memref<1x128xf32, #tpu.memory_space<vmem>>, %arg10: memref<128x128xf32, #tpu.memory_space<vmem>>, %arg11: memref<1x128xf32, #tpu.memory_space<vmem>>, %arg12: memref<128x128xf32, #tpu.memory_space<vmem>>, %arg13: memref<1x128xf32, #tpu.memory_space<vmem>>, %arg14: memref<8x128xf32, #tpu.memory_space<vmem>>, %arg15: memref<1x64x384xf32, #tpu.memory_space<vmem>>, %arg16: memref<8x8x128xf32, #tpu.memory_space<vmem>>) attributes {dimension_semantics = [#tpu.dimension_semantics<parallel>], iteration_bounds = array<i64: 1>, scalar_prefetch = 0 : i64, scratch_operands = 2 : i64, tpu.core_type = #tpu.core_type<tc>, window_params = [{transform_indices = @transform_0, window_bounds = array<i64: 8, 8, 128>}, {pipeline_mode = #tpu.pipeline_mode<synchronous>, transform_indices = @transform_1, window_bounds = array<i64: 128, 384>}, {pipeline_mode = #tpu.pipeline_mode<synchronous>, transform_indices = @transform_2, window_bounds = array<i64: 128, 384>}, {pipeline_mode = #tpu.pipeline_mode<synchronous>, transform_indices = @transform_3, window_bounds = array<i64: 1, 384>}, {pipeline_mode = #tpu.pipeline_mode<synchronous>, transform_indices = @transform_4, window_bounds = array<i64: 1, 128>}, {pipeline_mode = #tpu.pipeline_mode<synchronous>, transform_indices = @transform_5, window_bounds = array<i64: 128, 384>}, {pipeline_mode = #tpu.pipeline_mode<synchronous>, transform_indices = @transform_6, window_bounds = array<i64: 128, 384>}, {pipeline_mode = #tpu.pipeline_mode<synchronous>, transform_indices = @transform_7, window_bounds = array<i64: 1, 384>}, {pipeline_mode = #tpu.pipeline_mode<synchronous>, transform_indices = @transform_8, window_bounds = array<i64: 1, 128>}, {pipeline_mode = #tpu.pipeline_mode<synchronous>, transform_indices = @transform_9, window_bounds = array<i64: 128, 128>}, {pipeline_mode = #tpu.pipeline_mode<synchronous>, transform_indices = @transform_10, window_bounds = array<i64: 1, 128>}, {pipeline_mode = #tpu.pipeline_mode<synchronous>, transform_indices = @transform_11, window_bounds = array<i64: 128, 128>}, {pipeline_mode = #tpu.pipeline_mode<synchronous>, transform_indices = @transform_12, window_bounds = array<i64: 1, 128>}, {transform_indices = @transform_13, window_bounds = array<i64: 8, 128>}]} {
    %c0 = arith.constant 0 : index
    %c0_0 = arith.constant 0 : index
    %0 = vector.load %arg3[%c0, %c0_0] : memref<128x384xf32, #tpu.memory_space<vmem>>, vector<128x384xf32>
    %c0_1 = arith.constant 0 : index
    %c0_2 = arith.constant 0 : index
    %1 = vector.load %arg5[%c0_1, %c0_2] : memref<1x128xf32, #tpu.memory_space<vmem>>, vector<1x128xf32>
    %2 = vector.shape_cast %1 : vector<1x128xf32> to vector<1x128xf32>
    %3 = vector.broadcast %2 : vector<1x128xf32> to vector<8x128xf32>
    %cst = arith.constant 0.000000e+00 : f32
    %4 = vector.broadcast %cst : f32 to vector<8x128xf32>
    %c0_3 = arith.constant 0 : index
    %c0_4 = arith.constant 0 : index
    %c0_5 = arith.constant 0 : index
    %5 = vector.load %arg1[%c0_3, %c0_4, %c0_5] : memref<8x8x128xf32, #tpu.memory_space<vmem>>, vector<8x8x128xf32>
    %6 = vector.shape_cast %5 : vector<8x8x128xf32> to vector<64x128xf32>
    %c0_6 = arith.constant 0 : index
    %c0_7 = arith.constant 0 : index
    %7 = vector.load %arg2[%c0_6, %c0_7] : memref<128x384xf32, #tpu.memory_space<vmem>>, vector<128x384xf32>
    %cst_8 = arith.constant dense<0.000000e+00> : vector<64x384xf32>
    %8 = tpu.matmul %6, %7, %cst_8 {dimension_numbers = #tpu.dot_dimension_numbers<[1], [0], [0], [1], [0, 0, 1, 1], [], []>} : vector<64x128xf32>, vector<128x384xf32>, vector<64x384xf32> -> vector<64x384xf32>
    %c0_9 = arith.constant 0 : index
    %c0_10 = arith.constant 0 : index
    %9 = vector.load %arg4[%c0_9, %c0_10] : memref<1x384xf32, #tpu.memory_space<vmem>>, vector<1x384xf32>
    %10 = vector.broadcast %9 : vector<1x384xf32> to vector<64x384xf32>
    %11 = arith.addf %8, %10 : vector<64x384xf32>
    %c0_11 = arith.constant 0 : index
    %c0_12 = arith.constant 0 : index
    %c0_13 = arith.constant 0 : index
    %12 = vector.load %arg15[%c0_11, %c0_12, %c0_13] : memref<1x64x384xf32, #tpu.memory_space<vmem>>, vector<1x64x384xf32>
    %13 = vector.shape_cast %12 : vector<1x64x384xf32> to vector<64x384xf32>
    %14 = vector.shape_cast %11 : vector<64x384xf32> to vector<1x64x384xf32>
    tpu.vector_store %arg15[%c0_11, %c0_12, %c0_13], %14 {strides = array<i32>} : memref<1x64x384xf32, #tpu.memory_space<vmem>>, vector<1x64x384xf32>,
    %c0_i32 = arith.constant 0 : i32
    %c8_i32 = arith.constant 8 : i32
    %15 = arith.muli %c0_i32, %c8_i32 : i32
    %16 = tpu.assume_multiple %15, 8 : i32
    %c0_14 = arith.constant 0 : index
    %17 = arith.index_cast %16 : i32 to index
    %c0_15 = arith.constant 0 : index
    %18 = vector.load %arg15[%c0_14, %17, %c0_15] : memref<1x64x384xf32, #tpu.memory_space<vmem>>, vector<1x8x384xf32>
    %19 = vector.shape_cast %18 : vector<1x8x384xf32> to vector<8x384xf32>
    %cst_16 = arith.constant dense<0.000000e+00> : vector<8x384xf32>
    %20 = tpu.matmul %4, %0, %cst_16 {dimension_numbers = #tpu.dot_dimension_numbers<[1], [0], [0], [1], [0, 0, 1, 1], [], []>} : vector<8x128xf32>, vector<128x384xf32>, vector<8x384xf32> -> vector<8x384xf32>
    %21 = vector.extract_strided_slice %19 {offsets = [0, 0], sizes = [8, 256], strides = [1, 1]} : vector<8x384xf32> to vector<8x256xf32>
    %22 = vector.extract_strided_slice %20 {offsets = [0, 0], sizes = [8, 256], strides = [1, 1]} : vector<8x384xf32> to vector<8x256xf32>
    %23 = arith.addf %21, %22 : vector<8x256xf32>
    %24 = arith.negf %23 : vector<8x256xf32>
    %25 = math.exp %24 : vector<8x256xf32>
    %cst_17 = arith.constant 1.000000e+00 : f32
    %26 = vector.broadcast %cst_17 : f32 to vector<8x256xf32>
    %27 = arith.addf %26, %25 : vector<8x256xf32>
    %28 = arith.divf %26, %27 : vector<8x256xf32>
    %29 = vector.extract_strided_slice %28 {offsets = [0, 0], sizes = [8, 128], strides = [1, 1]} : vector<8x256xf32> to vector<8x128xf32>
    %30 = vector.extract_strided_slice %28 {offsets = [0, 128], sizes = [8, 128], strides = [1, 1]} : vector<8x256xf32> to vector<8x128xf32>
    %31 = vector.extract_strided_slice %19 {offsets = [0, 256], sizes = [8, 128], strides = [1, 1]} : vector<8x384xf32> to vector<8x128xf32>
    %32 = vector.extract_strided_slice %20 {offsets = [0, 256], sizes = [8, 128], strides = [1, 1]} : vector<8x384xf32> to vector<8x128xf32>
    %33 = arith.addf %32, %3 : vector<8x128xf32>
    %34 = arith.mulf %29, %33 : vector<8x128xf32>
    %35 = arith.addf %31, %34 : vector<8x128xf32>
    %36 = math.tanh %35 : vector<8x128xf32>
    %cst_18 = arith.constant 1.000000e+00 : f32
    %37 = vector.broadcast %cst_18 : f32 to vector<8x128xf32>
    %38 = arith.subf %37, %30 : vector<8x128xf32>
    %39 = arith.mulf %38, %36 : vector<8x128xf32>
    %40 = arith.mulf %30, %4 : vector<8x128xf32>
    %41 = arith.addf %39, %40 : vector<8x128xf32>
    %c0_i32_19 = arith.constant 0 : i32
    %42 = arith.addi %c0_i32_19, %c0_i32 : i32
    %43 = arith.index_cast %42 : i32 to index
    %c0_20 = arith.constant 0 : index
    %c0_21 = arith.constant 0 : index
    %44 = vector.load %arg16[%43, %c0_20, %c0_21] : memref<8x8x128xf32, #tpu.memory_space<vmem>>, vector<1x8x128xf32>
    %45 = vector.shape_cast %44 : vector<1x8x128xf32> to vector<8x128xf32>
    %46 = vector.shape_cast %41 : vector<8x128xf32> to vector<1x8x128xf32>
    tpu.vector_store %arg16[%43, %c0_20, %c0_21], %46 {strides = array<i32>} : memref<8x8x128xf32, #tpu.memory_space<vmem>>, vector<1x8x128xf32>,
    %c1_i32 = arith.constant 1 : i32
    %c8_i32_22 = arith.constant 8 : i32
    %47 = arith.muli %c1_i32, %c8_i32_22 : i32
    %48 = tpu.assume_multiple %47, 8 : i32
    %c0_23 = arith.constant 0 : index
    %49 = arith.index_cast %48 : i32 to index
    %c0_24 = arith.constant 0 : index
    %50 = vector.load %arg15[%c0_23, %49, %c0_24] : memref<1x64x384xf32, #tpu.memory_space<vmem>>, vector<1x8x384xf32>
    %51 = vector.shape_cast %50 : vector<1x8x384xf32> to vector<8x384xf32>
    %cst_25 = arith.constant dense<0.000000e+00> : vector<8x384xf32>
    %52 = tpu.matmul %41, %0, %cst_25 {dimension_numbers = #tpu.dot_dimension_numbers<[1], [0], [0], [1], [0, 0, 1, 1], [], []>} : vector<8x128xf32>, vector<128x384xf32>, vector<8x384xf32> -> vector<8x384xf32>
    %53 = vector.extract_strided_slice %51 {offsets = [0, 0], sizes = [8, 256], strides = [1, 1]} : vector<8x384xf32> to vector<8x256xf32>
    %54 = vector.extract_strided_slice %52 {offsets = [0, 0], sizes = [8, 256], strides = [1, 1]} : vector<8x384xf32> to vector<8x256xf32>
    %55 = arith.addf %53, %54 : vector<8x256xf32>
    %56 = arith.negf %55 : vector<8x256xf32>
    %57 = math.exp %56 : vector<8x256xf32>
    %cst_26 = arith.constant 1.000000e+00 : f32
    %58 = vector.broadcast %cst_26 : f32 to vector<8x256xf32>
    %59 = arith.addf %58, %57 : vector<8x256xf32>
    %60 = arith.divf %58, %59 : vector<8x256xf32>
    %61 = vector.extract_strided_slice %60 {offsets = [0, 0], sizes = [8, 128], strides = [1, 1]} : vector<8x256xf32> to vector<8x128xf32>
    %62 = vector.extract_strided_slice %60 {offsets = [0, 128], sizes = [8, 128], strides = [1, 1]} : vector<8x256xf32> to vector<8x128xf32>
    %63 = vector.extract_strided_slice %51 {offsets = [0, 256], sizes = [8, 128], strides = [1, 1]} : vector<8x384xf32> to vector<8x128xf32>
    %64 = vector.extract_strided_slice %52 {offsets = [0, 256], sizes = [8, 128], strides = [1, 1]} : vector<8x384xf32> to vector<8x128xf32>
    %65 = arith.addf %64, %3 : vector<8x128xf32>
    %66 = arith.mulf %61, %65 : vector<8x128xf32>
    %67 = arith.addf %63, %66 : vector<8x128xf32>
    %68 = math.tanh %67 : vector<8x128xf32>
    %cst_27 = arith.constant 1.000000e+00 : f32
    %69 = vector.broadcast %cst_27 : f32 to vector<8x128xf32>
    %70 = arith.subf %69, %62 : vector<8x128xf32>
    %71 = arith.mulf %70, %68 : vector<8x128xf32>
    %72 = arith.mulf %62, %41 : vector<8x128xf32>
    %73 = arith.addf %71, %72 : vector<8x128xf32>
    %c0_i32_28 = arith.constant 0 : i32
    %74 = arith.addi %c0_i32_28, %c1_i32 : i32
    %75 = arith.index_cast %74 : i32 to index
    %c0_29 = arith.constant 0 : index
    %c0_30 = arith.constant 0 : index
    %76 = vector.load %arg16[%75, %c0_29, %c0_30] : memref<8x8x128xf32, #tpu.memory_space<vmem>>, vector<1x8x128xf32>
    %77 = vector.shape_cast %76 : vector<1x8x128xf32> to vector<8x128xf32>
    %78 = vector.shape_cast %73 : vector<8x128xf32> to vector<1x8x128xf32>
    tpu.vector_store %arg16[%75, %c0_29, %c0_30], %78 {strides = array<i32>} : memref<8x8x128xf32, #tpu.memory_space<vmem>>, vector<1x8x128xf32>,
    %c2_i32 = arith.constant 2 : i32
    %c8_i32_31 = arith.constant 8 : i32
    %79 = arith.muli %c2_i32, %c8_i32_31 : i32
    %80 = tpu.assume_multiple %79, 8 : i32
    %c0_32 = arith.constant 0 : index
    %81 = arith.index_cast %80 : i32 to index
    %c0_33 = arith.constant 0 : index
    %82 = vector.load %arg15[%c0_32, %81, %c0_33] : memref<1x64x384xf32, #tpu.memory_space<vmem>>, vector<1x8x384xf32>
    %83 = vector.shape_cast %82 : vector<1x8x384xf32> to vector<8x384xf32>
    %cst_34 = arith.constant dense<0.000000e+00> : vector<8x384xf32>
    %84 = tpu.matmul %73, %0, %cst_34 {dimension_numbers = #tpu.dot_dimension_numbers<[1], [0], [0], [1], [0, 0, 1, 1], [], []>} : vector<8x128xf32>, vector<128x384xf32>, vector<8x384xf32> -> vector<8x384xf32>
    %85 = vector.extract_strided_slice %83 {offsets = [0, 0], sizes = [8, 256], strides = [1, 1]} : vector<8x384xf32> to vector<8x256xf32>
    %86 = vector.extract_strided_slice %84 {offsets = [0, 0], sizes = [8, 256], strides = [1, 1]} : vector<8x384xf32> to vector<8x256xf32>
    %87 = arith.addf %85, %86 : vector<8x256xf32>
    %88 = arith.negf %87 : vector<8x256xf32>
    %89 = math.exp %88 : vector<8x256xf32>
    %cst_35 = arith.constant 1.000000e+00 : f32
    %90 = vector.broadcast %cst_35 : f32 to vector<8x256xf32>
    %91 = arith.addf %90, %89 : vector<8x256xf32>
    %92 = arith.divf %90, %91 : vector<8x256xf32>
    %93 = vector.extract_strided_slice %92 {offsets = [0, 0], sizes = [8, 128], strides = [1, 1]} : vector<8x256xf32> to vector<8x128xf32>
    %94 = vector.extract_strided_slice %92 {offsets = [0, 128], sizes = [8, 128], strides = [1, 1]} : vector<8x256xf32> to vector<8x128xf32>
    %95 = vector.extract_strided_slice %83 {offsets = [0, 256], sizes = [8, 128], strides = [1, 1]} : vector<8x384xf32> to vector<8x128xf32>
    %96 = vector.extract_strided_slice %84 {offsets = [0, 256], sizes = [8, 128], strides = [1, 1]} : vector<8x384xf32> to vector<8x128xf32>
    %97 = arith.addf %96, %3 : vector<8x128xf32>
    %98 = arith.mulf %93, %97 : vector<8x128xf32>
    %99 = arith.addf %95, %98 : vector<8x128xf32>
    %100 = math.tanh %99 : vector<8x128xf32>
    %cst_36 = arith.constant 1.000000e+00 : f32
    %101 = vector.broadcast %cst_36 : f32 to vector<8x128xf32>
    %102 = arith.subf %101, %94 : vector<8x128xf32>
    %103 = arith.mulf %102, %100 : vector<8x128xf32>
    %104 = arith.mulf %94, %73 : vector<8x128xf32>
    %105 = arith.addf %103, %104 : vector<8x128xf32>
    %c0_i32_37 = arith.constant 0 : i32
    %106 = arith.addi %c0_i32_37, %c2_i32 : i32
    %107 = arith.index_cast %106 : i32 to index
    %c0_38 = arith.constant 0 : index
    %c0_39 = arith.constant 0 : index
    %108 = vector.load %arg16[%107, %c0_38, %c0_39] : memref<8x8x128xf32, #tpu.memory_space<vmem>>, vector<1x8x128xf32>
    %109 = vector.shape_cast %108 : vector<1x8x128xf32> to vector<8x128xf32>
    %110 = vector.shape_cast %105 : vector<8x128xf32> to vector<1x8x128xf32>
    tpu.vector_store %arg16[%107, %c0_38, %c0_39], %110 {strides = array<i32>} : memref<8x8x128xf32, #tpu.memory_space<vmem>>, vector<1x8x128xf32>,
    %c3_i32 = arith.constant 3 : i32
    %c8_i32_40 = arith.constant 8 : i32
    %111 = arith.muli %c3_i32, %c8_i32_40 : i32
    %112 = tpu.assume_multiple %111, 8 : i32
    %c0_41 = arith.constant 0 : index
    %113 = arith.index_cast %112 : i32 to index
    %c0_42 = arith.constant 0 : index
    %114 = vector.load %arg15[%c0_41, %113, %c0_42] : memref<1x64x384xf32, #tpu.memory_space<vmem>>, vector<1x8x384xf32>
    %115 = vector.shape_cast %114 : vector<1x8x384xf32> to vector<8x384xf32>
    %cst_43 = arith.constant dense<0.000000e+00> : vector<8x384xf32>
    %116 = tpu.matmul %105, %0, %cst_43 {dimension_numbers = #tpu.dot_dimension_numbers<[1], [0], [0], [1], [0, 0, 1, 1], [], []>} : vector<8x128xf32>, vector<128x384xf32>, vector<8x384xf32> -> vector<8x384xf32>
    %117 = vector.extract_strided_slice %115 {offsets = [0, 0], sizes = [8, 256], strides = [1, 1]} : vector<8x384xf32> to vector<8x256xf32>
    %118 = vector.extract_strided_slice %116 {offsets = [0, 0], sizes = [8, 256], strides = [1, 1]} : vector<8x384xf32> to vector<8x256xf32>
    %119 = arith.addf %117, %118 : vector<8x256xf32>
    %120 = arith.negf %119 : vector<8x256xf32>
    %121 = math.exp %120 : vector<8x256xf32>
    %cst_44 = arith.constant 1.000000e+00 : f32
    %122 = vector.broadcast %cst_44 : f32 to vector<8x256xf32>
    %123 = arith.addf %122, %121 : vector<8x256xf32>
    %124 = arith.divf %122, %123 : vector<8x256xf32>
    %125 = vector.extract_strided_slice %124 {offsets = [0, 0], sizes = [8, 128], strides = [1, 1]} : vector<8x256xf32> to vector<8x128xf32>
    %126 = vector.extract_strided_slice %124 {offsets = [0, 128], sizes = [8, 128], strides = [1, 1]} : vector<8x256xf32> to vector<8x128xf32>
    %127 = vector.extract_strided_slice %115 {offsets = [0, 256], sizes = [8, 128], strides = [1, 1]} : vector<8x384xf32> to vector<8x128xf32>
    %128 = vector.extract_strided_slice %116 {offsets = [0, 256], sizes = [8, 128], strides = [1, 1]} : vector<8x384xf32> to vector<8x128xf32>
    %129 = arith.addf %128, %3 : vector<8x128xf32>
    %130 = arith.mulf %125, %129 : vector<8x128xf32>
    %131 = arith.addf %127, %130 : vector<8x128xf32>
    %132 = math.tanh %131 : vector<8x128xf32>
    %cst_45 = arith.constant 1.000000e+00 : f32
    %133 = vector.broadcast %cst_45 : f32 to vector<8x128xf32>
    %134 = arith.subf %133, %126 : vector<8x128xf32>
    %135 = arith.mulf %134, %132 : vector<8x128xf32>
    %136 = arith.mulf %126, %105 : vector<8x128xf32>
    %137 = arith.addf %135, %136 : vector<8x128xf32>
    %c0_i32_46 = arith.constant 0 : i32
    %138 = arith.addi %c0_i32_46, %c3_i32 : i32
    %139 = arith.index_cast %138 : i32 to index
    %c0_47 = arith.constant 0 : index
    %c0_48 = arith.constant 0 : index
    %140 = vector.load %arg16[%139, %c0_47, %c0_48] : memref<8x8x128xf32, #tpu.memory_space<vmem>>, vector<1x8x128xf32>
    %141 = vector.shape_cast %140 : vector<1x8x128xf32> to vector<8x128xf32>
    %142 = vector.shape_cast %137 : vector<8x128xf32> to vector<1x8x128xf32>
    tpu.vector_store %arg16[%139, %c0_47, %c0_48], %142 {strides = array<i32>} : memref<8x8x128xf32, #tpu.memory_space<vmem>>, vector<1x8x128xf32>,
    %c4_i32 = arith.constant 4 : i32
    %c8_i32_49 = arith.constant 8 : i32
    %143 = arith.muli %c4_i32, %c8_i32_49 : i32
    %144 = tpu.assume_multiple %143, 8 : i32
    %c0_50 = arith.constant 0 : index
    %145 = arith.index_cast %144 : i32 to index
    %c0_51 = arith.constant 0 : index
    %146 = vector.load %arg15[%c0_50, %145, %c0_51] : memref<1x64x384xf32, #tpu.memory_space<vmem>>, vector<1x8x384xf32>
    %147 = vector.shape_cast %146 : vector<1x8x384xf32> to vector<8x384xf32>
    %cst_52 = arith.constant dense<0.000000e+00> : vector<8x384xf32>
    %148 = tpu.matmul %137, %0, %cst_52 {dimension_numbers = #tpu.dot_dimension_numbers<[1], [0], [0], [1], [0, 0, 1, 1], [], []>} : vector<8x128xf32>, vector<128x384xf32>, vector<8x384xf32> -> vector<8x384xf32>
    %149 = vector.extract_strided_slice %147 {offsets = [0, 0], sizes = [8, 256], strides = [1, 1]} : vector<8x384xf32> to vector<8x256xf32>
    %150 = vector.extract_strided_slice %148 {offsets = [0, 0], sizes = [8, 256], strides = [1, 1]} : vector<8x384xf32> to vector<8x256xf32>
    %151 = arith.addf %149, %150 : vector<8x256xf32>
    %152 = arith.negf %151 : vector<8x256xf32>
    %153 = math.exp %152 : vector<8x256xf32>
    %cst_53 = arith.constant 1.000000e+00 : f32
    %154 = vector.broadcast %cst_53 : f32 to vector<8x256xf32>
    %155 = arith.addf %154, %153 : vector<8x256xf32>
    %156 = arith.divf %154, %155 : vector<8x256xf32>
    %157 = vector.extract_strided_slice %156 {offsets = [0, 0], sizes = [8, 128], strides = [1, 1]} : vector<8x256xf32> to vector<8x128xf32>
    %158 = vector.extract_strided_slice %156 {offsets = [0, 128], sizes = [8, 128], strides = [1, 1]} : vector<8x256xf32> to vector<8x128xf32>
    %159 = vector.extract_strided_slice %147 {offsets = [0, 256], sizes = [8, 128], strides = [1, 1]} : vector<8x384xf32> to vector<8x128xf32>
    %160 = vector.extract_strided_slice %148 {offsets = [0, 256], sizes = [8, 128], strides = [1, 1]} : vector<8x384xf32> to vector<8x128xf32>
    %161 = arith.addf %160, %3 : vector<8x128xf32>
    %162 = arith.mulf %157, %161 : vector<8x128xf32>
    %163 = arith.addf %159, %162 : vector<8x128xf32>
    %164 = math.tanh %163 : vector<8x128xf32>
    %cst_54 = arith.constant 1.000000e+00 : f32
    %165 = vector.broadcast %cst_54 : f32 to vector<8x128xf32>
    %166 = arith.subf %165, %158 : vector<8x128xf32>
    %167 = arith.mulf %166, %164 : vector<8x128xf32>
    %168 = arith.mulf %158, %137 : vector<8x128xf32>
    %169 = arith.addf %167, %168 : vector<8x128xf32>
    %c0_i32_55 = arith.constant 0 : i32
    %170 = arith.addi %c0_i32_55, %c4_i32 : i32
    %171 = arith.index_cast %170 : i32 to index
    %c0_56 = arith.constant 0 : index
    %c0_57 = arith.constant 0 : index
    %172 = vector.load %arg16[%171, %c0_56, %c0_57] : memref<8x8x128xf32, #tpu.memory_space<vmem>>, vector<1x8x128xf32>
    %173 = vector.shape_cast %172 : vector<1x8x128xf32> to vector<8x128xf32>
    %174 = vector.shape_cast %169 : vector<8x128xf32> to vector<1x8x128xf32>
    tpu.vector_store %arg16[%171, %c0_56, %c0_57], %174 {strides = array<i32>} : memref<8x8x128xf32, #tpu.memory_space<vmem>>, vector<1x8x128xf32>,
    %c5_i32 = arith.constant 5 : i32
    %c8_i32_58 = arith.constant 8 : i32
    %175 = arith.muli %c5_i32, %c8_i32_58 : i32
    %176 = tpu.assume_multiple %175, 8 : i32
    %c0_59 = arith.constant 0 : index
    %177 = arith.index_cast %176 : i32 to index
    %c0_60 = arith.constant 0 : index
    %178 = vector.load %arg15[%c0_59, %177, %c0_60] : memref<1x64x384xf32, #tpu.memory_space<vmem>>, vector<1x8x384xf32>
    %179 = vector.shape_cast %178 : vector<1x8x384xf32> to vector<8x384xf32>
    %cst_61 = arith.constant dense<0.000000e+00> : vector<8x384xf32>
    %180 = tpu.matmul %169, %0, %cst_61 {dimension_numbers = #tpu.dot_dimension_numbers<[1], [0], [0], [1], [0, 0, 1, 1], [], []>} : vector<8x128xf32>, vector<128x384xf32>, vector<8x384xf32> -> vector<8x384xf32>
    %181 = vector.extract_strided_slice %179 {offsets = [0, 0], sizes = [8, 256], strides = [1, 1]} : vector<8x384xf32> to vector<8x256xf32>
    %182 = vector.extract_strided_slice %180 {offsets = [0, 0], sizes = [8, 256], strides = [1, 1]} : vector<8x384xf32> to vector<8x256xf32>
    %183 = arith.addf %181, %182 : vector<8x256xf32>
    %184 = arith.negf %183 : vector<8x256xf32>
    %185 = math.exp %184 : vector<8x256xf32>
    %cst_62 = arith.constant 1.000000e+00 : f32
    %186 = vector.broadcast %cst_62 : f32 to vector<8x256xf32>
    %187 = arith.addf %186, %185 : vector<8x256xf32>
    %188 = arith.divf %186, %187 : vector<8x256xf32>
    %189 = vector.extract_strided_slice %188 {offsets = [0, 0], sizes = [8, 128], strides = [1, 1]} : vector<8x256xf32> to vector<8x128xf32>
    %190 = vector.extract_strided_slice %188 {offsets = [0, 128], sizes = [8, 128], strides = [1, 1]} : vector<8x256xf32> to vector<8x128xf32>
    %191 = vector.extract_strided_slice %179 {offsets = [0, 256], sizes = [8, 128], strides = [1, 1]} : vector<8x384xf32> to vector<8x128xf32>
    %192 = vector.extract_strided_slice %180 {offsets = [0, 256], sizes = [8, 128], strides = [1, 1]} : vector<8x384xf32> to vector<8x128xf32>
    %193 = arith.addf %192, %3 : vector<8x128xf32>
    %194 = arith.mulf %189, %193 : vector<8x128xf32>
    %195 = arith.addf %191, %194 : vector<8x128xf32>
    %196 = math.tanh %195 : vector<8x128xf32>
    %cst_63 = arith.constant 1.000000e+00 : f32
    %197 = vector.broadcast %cst_63 : f32 to vector<8x128xf32>
    %198 = arith.subf %197, %190 : vector<8x128xf32>
    %199 = arith.mulf %198, %196 : vector<8x128xf32>
    %200 = arith.mulf %190, %169 : vector<8x128xf32>
    %201 = arith.addf %199, %200 : vector<8x128xf32>
    %c0_i32_64 = arith.constant 0 : i32
    %202 = arith.addi %c0_i32_64, %c5_i32 : i32
    %203 = arith.index_cast %202 : i32 to index
    %c0_65 = arith.constant 0 : index
    %c0_66 = arith.constant 0 : index
    %204 = vector.load %arg16[%203, %c0_65, %c0_66] : memref<8x8x128xf32, #tpu.memory_space<vmem>>, vector<1x8x128xf32>
    %205 = vector.shape_cast %204 : vector<1x8x128xf32> to vector<8x128xf32>
    %206 = vector.shape_cast %201 : vector<8x128xf32> to vector<1x8x128xf32>
    tpu.vector_store %arg16[%203, %c0_65, %c0_66], %206 {strides = array<i32>} : memref<8x8x128xf32, #tpu.memory_space<vmem>>, vector<1x8x128xf32>,
    %c6_i32 = arith.constant 6 : i32
    %c8_i32_67 = arith.constant 8 : i32
    %207 = arith.muli %c6_i32, %c8_i32_67 : i32
    %208 = tpu.assume_multiple %207, 8 : i32
    %c0_68 = arith.constant 0 : index
    %209 = arith.index_cast %208 : i32 to index
    %c0_69 = arith.constant 0 : index
    %210 = vector.load %arg15[%c0_68, %209, %c0_69] : memref<1x64x384xf32, #tpu.memory_space<vmem>>, vector<1x8x384xf32>
    %211 = vector.shape_cast %210 : vector<1x8x384xf32> to vector<8x384xf32>
    %cst_70 = arith.constant dense<0.000000e+00> : vector<8x384xf32>
    %212 = tpu.matmul %201, %0, %cst_70 {dimension_numbers = #tpu.dot_dimension_numbers<[1], [0], [0], [1], [0, 0, 1, 1], [], []>} : vector<8x128xf32>, vector<128x384xf32>, vector<8x384xf32> -> vector<8x384xf32>
    %213 = vector.extract_strided_slice %211 {offsets = [0, 0], sizes = [8, 256], strides = [1, 1]} : vector<8x384xf32> to vector<8x256xf32>
    %214 = vector.extract_strided_slice %212 {offsets = [0, 0], sizes = [8, 256], strides = [1, 1]} : vector<8x384xf32> to vector<8x256xf32>
    %215 = arith.addf %213, %214 : vector<8x256xf32>
    %216 = arith.negf %215 : vector<8x256xf32>
    %217 = math.exp %216 : vector<8x256xf32>
    %cst_71 = arith.constant 1.000000e+00 : f32
    %218 = vector.broadcast %cst_71 : f32 to vector<8x256xf32>
    %219 = arith.addf %218, %217 : vector<8x256xf32>
    %220 = arith.divf %218, %219 : vector<8x256xf32>
    %221 = vector.extract_strided_slice %220 {offsets = [0, 0], sizes = [8, 128], strides = [1, 1]} : vector<8x256xf32> to vector<8x128xf32>
    %222 = vector.extract_strided_slice %220 {offsets = [0, 128], sizes = [8, 128], strides = [1, 1]} : vector<8x256xf32> to vector<8x128xf32>
    %223 = vector.extract_strided_slice %211 {offsets = [0, 256], sizes = [8, 128], strides = [1, 1]} : vector<8x384xf32> to vector<8x128xf32>
    %224 = vector.extract_strided_slice %212 {offsets = [0, 256], sizes = [8, 128], strides = [1, 1]} : vector<8x384xf32> to vector<8x128xf32>
    %225 = arith.addf %224, %3 : vector<8x128xf32>
    %226 = arith.mulf %221, %225 : vector<8x128xf32>
    %227 = arith.addf %223, %226 : vector<8x128xf32>
    %228 = math.tanh %227 : vector<8x128xf32>
    %cst_72 = arith.constant 1.000000e+00 : f32
    %229 = vector.broadcast %cst_72 : f32 to vector<8x128xf32>
    %230 = arith.subf %229, %222 : vector<8x128xf32>
    %231 = arith.mulf %230, %228 : vector<8x128xf32>
    %232 = arith.mulf %222, %201 : vector<8x128xf32>
    %233 = arith.addf %231, %232 : vector<8x128xf32>
    %c0_i32_73 = arith.constant 0 : i32
    %234 = arith.addi %c0_i32_73, %c6_i32 : i32
    %235 = arith.index_cast %234 : i32 to index
    %c0_74 = arith.constant 0 : index
    %c0_75 = arith.constant 0 : index
    %236 = vector.load %arg16[%235, %c0_74, %c0_75] : memref<8x8x128xf32, #tpu.memory_space<vmem>>, vector<1x8x128xf32>
    %237 = vector.shape_cast %236 : vector<1x8x128xf32> to vector<8x128xf32>
    %238 = vector.shape_cast %233 : vector<8x128xf32> to vector<1x8x128xf32>
    tpu.vector_store %arg16[%235, %c0_74, %c0_75], %238 {strides = array<i32>} : memref<8x8x128xf32, #tpu.memory_space<vmem>>, vector<1x8x128xf32>,
    %c7_i32 = arith.constant 7 : i32
    %c8_i32_76 = arith.constant 8 : i32
    %239 = arith.muli %c7_i32, %c8_i32_76 : i32
    %240 = tpu.assume_multiple %239, 8 : i32
    %c0_77 = arith.constant 0 : index
    %241 = arith.index_cast %240 : i32 to index
    %c0_78 = arith.constant 0 : index
    %242 = vector.load %arg15[%c0_77, %241, %c0_78] : memref<1x64x384xf32, #tpu.memory_space<vmem>>, vector<1x8x384xf32>
    %243 = vector.shape_cast %242 : vector<1x8x384xf32> to vector<8x384xf32>
    %cst_79 = arith.constant dense<0.000000e+00> : vector<8x384xf32>
    %244 = tpu.matmul %233, %0, %cst_79 {dimension_numbers = #tpu.dot_dimension_numbers<[1], [0], [0], [1], [0, 0, 1, 1], [], []>} : vector<8x128xf32>, vector<128x384xf32>, vector<8x384xf32> -> vector<8x384xf32>
    %245 = vector.extract_strided_slice %243 {offsets = [0, 0], sizes = [8, 256], strides = [1, 1]} : vector<8x384xf32> to vector<8x256xf32>
    %246 = vector.extract_strided_slice %244 {offsets = [0, 0], sizes = [8, 256], strides = [1, 1]} : vector<8x384xf32> to vector<8x256xf32>
    %247 = arith.addf %245, %246 : vector<8x256xf32>
    %248 = arith.negf %247 : vector<8x256xf32>
    %249 = math.exp %248 : vector<8x256xf32>
    %cst_80 = arith.constant 1.000000e+00 : f32
    %250 = vector.broadcast %cst_80 : f32 to vector<8x256xf32>
    %251 = arith.addf %250, %249 : vector<8x256xf32>
    %252 = arith.divf %250, %251 : vector<8x256xf32>
    %253 = vector.extract_strided_slice %252 {offsets = [0, 0], sizes = [8, 128], strides = [1, 1]} : vector<8x256xf32> to vector<8x128xf32>
    %254 = vector.extract_strided_slice %252 {offsets = [0, 128], sizes = [8, 128], strides = [1, 1]} : vector<8x256xf32> to vector<8x128xf32>
    %255 = vector.extract_strided_slice %243 {offsets = [0, 256], sizes = [8, 128], strides = [1, 1]} : vector<8x384xf32> to vector<8x128xf32>
    %256 = vector.extract_strided_slice %244 {offsets = [0, 256], sizes = [8, 128], strides = [1, 1]} : vector<8x384xf32> to vector<8x128xf32>
    %257 = arith.addf %256, %3 : vector<8x128xf32>
    %258 = arith.mulf %253, %257 : vector<8x128xf32>
    %259 = arith.addf %255, %258 : vector<8x128xf32>
    %260 = math.tanh %259 : vector<8x128xf32>
    %cst_81 = arith.constant 1.000000e+00 : f32
    %261 = vector.broadcast %cst_81 : f32 to vector<8x128xf32>
    %262 = arith.subf %261, %254 : vector<8x128xf32>
    %263 = arith.mulf %262, %260 : vector<8x128xf32>
    %264 = arith.mulf %254, %233 : vector<8x128xf32>
    %265 = arith.addf %263, %264 : vector<8x128xf32>
    %c0_i32_82 = arith.constant 0 : i32
    %266 = arith.addi %c0_i32_82, %c7_i32 : i32
    %267 = arith.index_cast %266 : i32 to index
    %c0_83 = arith.constant 0 : index
    %c0_84 = arith.constant 0 : index
    %268 = vector.load %arg16[%267, %c0_83, %c0_84] : memref<8x8x128xf32, #tpu.memory_space<vmem>>, vector<1x8x128xf32>
    %269 = vector.shape_cast %268 : vector<1x8x128xf32> to vector<8x128xf32>
    %270 = vector.shape_cast %265 : vector<8x128xf32> to vector<1x8x128xf32>
    tpu.vector_store %arg16[%267, %c0_83, %c0_84], %270 {strides = array<i32>} : memref<8x8x128xf32, #tpu.memory_space<vmem>>, vector<1x8x128xf32>,
    %c8_i32_85 = arith.constant 8 : i32
    %c0_86 = arith.constant 0 : index
    %c0_87 = arith.constant 0 : index
    %271 = vector.load %arg7[%c0_86, %c0_87] : memref<128x384xf32, #tpu.memory_space<vmem>>, vector<128x384xf32>
    %c0_88 = arith.constant 0 : index
    %c0_89 = arith.constant 0 : index
    %272 = vector.load %arg9[%c0_88, %c0_89] : memref<1x128xf32, #tpu.memory_space<vmem>>, vector<1x128xf32>
    %273 = vector.shape_cast %272 : vector<1x128xf32> to vector<1x128xf32>
    %274 = vector.broadcast %273 : vector<1x128xf32> to vector<8x128xf32>
    %cst_90 = arith.constant 0.000000e+00 : f32
    %275 = vector.broadcast %cst_90 : f32 to vector<8x128xf32>
    %c0_91 = arith.constant 0 : index
    %c0_92 = arith.constant 0 : index
    %c0_93 = arith.constant 0 : index
    %276 = vector.load %arg16[%c0_91, %c0_92, %c0_93] : memref<8x8x128xf32, #tpu.memory_space<vmem>>, vector<8x8x128xf32>
    %277 = vector.shape_cast %276 : vector<8x8x128xf32> to vector<64x128xf32>
    %c0_94 = arith.constant 0 : index
    %c0_95 = arith.constant 0 : index
    %278 = vector.load %arg6[%c0_94, %c0_95] : memref<128x384xf32, #tpu.memory_space<vmem>>, vector<128x384xf32>
    %cst_96 = arith.constant dense<0.000000e+00> : vector<64x384xf32>
    %279 = tpu.matmul %277, %278, %cst_96 {dimension_numbers = #tpu.dot_dimension_numbers<[1], [0], [0], [1], [0, 0, 1, 1], [], []>} : vector<64x128xf32>, vector<128x384xf32>, vector<64x384xf32> -> vector<64x384xf32>
    %c0_97 = arith.constant 0 : index
    %c0_98 = arith.constant 0 : index
    %280 = vector.load %arg8[%c0_97, %c0_98] : memref<1x384xf32, #tpu.memory_space<vmem>>, vector<1x384xf32>
    %281 = vector.broadcast %280 : vector<1x384xf32> to vector<64x384xf32>
    %282 = arith.addf %279, %281 : vector<64x384xf32>
    %c0_99 = arith.constant 0 : index
    %c0_100 = arith.constant 0 : index
    %c0_101 = arith.constant 0 : index
    %283 = vector.load %arg15[%c0_99, %c0_100, %c0_101] : memref<1x64x384xf32, #tpu.memory_space<vmem>>, vector<1x64x384xf32>
    %284 = vector.shape_cast %283 : vector<1x64x384xf32> to vector<64x384xf32>
    %285 = vector.shape_cast %282 : vector<64x384xf32> to vector<1x64x384xf32>
    tpu.vector_store %arg15[%c0_99, %c0_100, %c0_101], %285 {strides = array<i32>} : memref<1x64x384xf32, #tpu.memory_space<vmem>>, vector<1x64x384xf32>,
    %c0_i32_102 = arith.constant 0 : i32
    %c8_i32_103 = arith.constant 8 : i32
    %286 = arith.muli %c0_i32_102, %c8_i32_103 : i32
    %287 = tpu.assume_multiple %286, 8 : i32
    %c0_104 = arith.constant 0 : index
    %288 = arith.index_cast %287 : i32 to index
    %c0_105 = arith.constant 0 : index
    %289 = vector.load %arg15[%c0_104, %288, %c0_105] : memref<1x64x384xf32, #tpu.memory_space<vmem>>, vector<1x8x384xf32>
    %290 = vector.shape_cast %289 : vector<1x8x384xf32> to vector<8x384xf32>
    %cst_106 = arith.constant dense<0.000000e+00> : vector<8x384xf32>
    %291 = tpu.matmul %275, %271, %cst_106 {dimension_numbers = #tpu.dot_dimension_numbers<[1], [0], [0], [1], [0, 0, 1, 1], [], []>} : vector<8x128xf32>, vector<128x384xf32>, vector<8x384xf32> -> vector<8x384xf32>
    %292 = vector.extract_strided_slice %290 {offsets = [0, 0], sizes = [8, 256], strides = [1, 1]} : vector<8x384xf32> to vector<8x256xf32>
    %293 = vector.extract_strided_slice %291 {offsets = [0, 0], sizes = [8, 256], strides = [1, 1]} : vector<8x384xf32> to vector<8x256xf32>
    %294 = arith.addf %292, %293 : vector<8x256xf32>
    %295 = arith.negf %294 : vector<8x256xf32>
    %296 = math.exp %295 : vector<8x256xf32>
    %cst_107 = arith.constant 1.000000e+00 : f32
    %297 = vector.broadcast %cst_107 : f32 to vector<8x256xf32>
    %298 = arith.addf %297, %296 : vector<8x256xf32>
    %299 = arith.divf %297, %298 : vector<8x256xf32>
    %300 = vector.extract_strided_slice %299 {offsets = [0, 0], sizes = [8, 128], strides = [1, 1]} : vector<8x256xf32> to vector<8x128xf32>
    %301 = vector.extract_strided_slice %299 {offsets = [0, 128], sizes = [8, 128], strides = [1, 1]} : vector<8x256xf32> to vector<8x128xf32>
    %302 = vector.extract_strided_slice %290 {offsets = [0, 256], sizes = [8, 128], strides = [1, 1]} : vector<8x384xf32> to vector<8x128xf32>
    %303 = vector.extract_strided_slice %291 {offsets = [0, 256], sizes = [8, 128], strides = [1, 1]} : vector<8x384xf32> to vector<8x128xf32>
    %304 = arith.addf %303, %274 : vector<8x128xf32>
    %305 = arith.mulf %300, %304 : vector<8x128xf32>
    %306 = arith.addf %302, %305 : vector<8x128xf32>
    %307 = math.tanh %306 : vector<8x128xf32>
    %cst_108 = arith.constant 1.000000e+00 : f32
    %308 = vector.broadcast %cst_108 : f32 to vector<8x128xf32>
    %309 = arith.subf %308, %301 : vector<8x128xf32>
    %310 = arith.mulf %309, %307 : vector<8x128xf32>
    %311 = arith.mulf %301, %275 : vector<8x128xf32>
    %312 = arith.addf %310, %311 : vector<8x128xf32>
    %c1_i32_109 = arith.constant 1 : i32
    %c8_i32_110 = arith.constant 8 : i32
    %313 = arith.muli %c1_i32_109, %c8_i32_110 : i32
    %314 = tpu.assume_multiple %313, 8 : i32
    %c0_111 = arith.constant 0 : index
    %315 = arith.index_cast %314 : i32 to index
    %c0_112 = arith.constant 0 : index
    %316 = vector.load %arg15[%c0_111, %315, %c0_112] : memref<1x64x384xf32, #tpu.memory_space<vmem>>, vector<1x8x384xf32>
    %317 = vector.shape_cast %316 : vector<1x8x384xf32> to vector<8x384xf32>
    %cst_113 = arith.constant dense<0.000000e+00> : vector<8x384xf32>
    %318 = tpu.matmul %312, %271, %cst_113 {dimension_numbers = #tpu.dot_dimension_numbers<[1], [0], [0], [1], [0, 0, 1, 1], [], []>} : vector<8x128xf32>, vector<128x384xf32>, vector<8x384xf32> -> vector<8x384xf32>
    %319 = vector.extract_strided_slice %317 {offsets = [0, 0], sizes = [8, 256], strides = [1, 1]} : vector<8x384xf32> to vector<8x256xf32>
    %320 = vector.extract_strided_slice %318 {offsets = [0, 0], sizes = [8, 256], strides = [1, 1]} : vector<8x384xf32> to vector<8x256xf32>
    %321 = arith.addf %319, %320 : vector<8x256xf32>
    %322 = arith.negf %321 : vector<8x256xf32>
    %323 = math.exp %322 : vector<8x256xf32>
    %cst_114 = arith.constant 1.000000e+00 : f32
    %324 = vector.broadcast %cst_114 : f32 to vector<8x256xf32>
    %325 = arith.addf %324, %323 : vector<8x256xf32>
    %326 = arith.divf %324, %325 : vector<8x256xf32>
    %327 = vector.extract_strided_slice %326 {offsets = [0, 0], sizes = [8, 128], strides = [1, 1]} : vector<8x256xf32> to vector<8x128xf32>
    %328 = vector.extract_strided_slice %326 {offsets = [0, 128], sizes = [8, 128], strides = [1, 1]} : vector<8x256xf32> to vector<8x128xf32>
    %329 = vector.extract_strided_slice %317 {offsets = [0, 256], sizes = [8, 128], strides = [1, 1]} : vector<8x384xf32> to vector<8x128xf32>
    %330 = vector.extract_strided_slice %318 {offsets = [0, 256], sizes = [8, 128], strides = [1, 1]} : vector<8x384xf32> to vector<8x128xf32>
    %331 = arith.addf %330, %274 : vector<8x128xf32>
    %332 = arith.mulf %327, %331 : vector<8x128xf32>
    %333 = arith.addf %329, %332 : vector<8x128xf32>
    %334 = math.tanh %333 : vector<8x128xf32>
    %cst_115 = arith.constant 1.000000e+00 : f32
    %335 = vector.broadcast %cst_115 : f32 to vector<8x128xf32>
    %336 = arith.subf %335, %328 : vector<8x128xf32>
    %337 = arith.mulf %336, %334 : vector<8x128xf32>
    %338 = arith.mulf %328, %312 : vector<8x128xf32>
    %339 = arith.addf %337, %338 : vector<8x128xf32>
    %c2_i32_116 = arith.constant 2 : i32
    %c8_i32_117 = arith.constant 8 : i32
    %340 = arith.muli %c2_i32_116, %c8_i32_117 : i32
    %341 = tpu.assume_multiple %340, 8 : i32
    %c0_118 = arith.constant 0 : index
    %342 = arith.index_cast %341 : i32 to index
    %c0_119 = arith.constant 0 : index
    %343 = vector.load %arg15[%c0_118, %342, %c0_119] : memref<1x64x384xf32, #tpu.memory_space<vmem>>, vector<1x8x384xf32>
    %344 = vector.shape_cast %343 : vector<1x8x384xf32> to vector<8x384xf32>
    %cst_120 = arith.constant dense<0.000000e+00> : vector<8x384xf32>
    %345 = tpu.matmul %339, %271, %cst_120 {dimension_numbers = #tpu.dot_dimension_numbers<[1], [0], [0], [1], [0, 0, 1, 1], [], []>} : vector<8x128xf32>, vector<128x384xf32>, vector<8x384xf32> -> vector<8x384xf32>
    %346 = vector.extract_strided_slice %344 {offsets = [0, 0], sizes = [8, 256], strides = [1, 1]} : vector<8x384xf32> to vector<8x256xf32>
    %347 = vector.extract_strided_slice %345 {offsets = [0, 0], sizes = [8, 256], strides = [1, 1]} : vector<8x384xf32> to vector<8x256xf32>
    %348 = arith.addf %346, %347 : vector<8x256xf32>
    %349 = arith.negf %348 : vector<8x256xf32>
    %350 = math.exp %349 : vector<8x256xf32>
    %cst_121 = arith.constant 1.000000e+00 : f32
    %351 = vector.broadcast %cst_121 : f32 to vector<8x256xf32>
    %352 = arith.addf %351, %350 : vector<8x256xf32>
    %353 = arith.divf %351, %352 : vector<8x256xf32>
    %354 = vector.extract_strided_slice %353 {offsets = [0, 0], sizes = [8, 128], strides = [1, 1]} : vector<8x256xf32> to vector<8x128xf32>
    %355 = vector.extract_strided_slice %353 {offsets = [0, 128], sizes = [8, 128], strides = [1, 1]} : vector<8x256xf32> to vector<8x128xf32>
    %356 = vector.extract_strided_slice %344 {offsets = [0, 256], sizes = [8, 128], strides = [1, 1]} : vector<8x384xf32> to vector<8x128xf32>
    %357 = vector.extract_strided_slice %345 {offsets = [0, 256], sizes = [8, 128], strides = [1, 1]} : vector<8x384xf32> to vector<8x128xf32>
    %358 = arith.addf %357, %274 : vector<8x128xf32>
    %359 = arith.mulf %354, %358 : vector<8x128xf32>
    %360 = arith.addf %356, %359 : vector<8x128xf32>
    %361 = math.tanh %360 : vector<8x128xf32>
    %cst_122 = arith.constant 1.000000e+00 : f32
    %362 = vector.broadcast %cst_122 : f32 to vector<8x128xf32>
    %363 = arith.subf %362, %355 : vector<8x128xf32>
    %364 = arith.mulf %363, %361 : vector<8x128xf32>
    %365 = arith.mulf %355, %339 : vector<8x128xf32>
    %366 = arith.addf %364, %365 : vector<8x128xf32>
    %c3_i32_123 = arith.constant 3 : i32
    %c8_i32_124 = arith.constant 8 : i32
    %367 = arith.muli %c3_i32_123, %c8_i32_124 : i32
    %368 = tpu.assume_multiple %367, 8 : i32
    %c0_125 = arith.constant 0 : index
    %369 = arith.index_cast %368 : i32 to index
    %c0_126 = arith.constant 0 : index
    %370 = vector.load %arg15[%c0_125, %369, %c0_126] : memref<1x64x384xf32, #tpu.memory_space<vmem>>, vector<1x8x384xf32>
    %371 = vector.shape_cast %370 : vector<1x8x384xf32> to vector<8x384xf32>
    %cst_127 = arith.constant dense<0.000000e+00> : vector<8x384xf32>
    %372 = tpu.matmul %366, %271, %cst_127 {dimension_numbers = #tpu.dot_dimension_numbers<[1], [0], [0], [1], [0, 0, 1, 1], [], []>} : vector<8x128xf32>, vector<128x384xf32>, vector<8x384xf32> -> vector<8x384xf32>
    %373 = vector.extract_strided_slice %371 {offsets = [0, 0], sizes = [8, 256], strides = [1, 1]} : vector<8x384xf32> to vector<8x256xf32>
    %374 = vector.extract_strided_slice %372 {offsets = [0, 0], sizes = [8, 256], strides = [1, 1]} : vector<8x384xf32> to vector<8x256xf32>
    %375 = arith.addf %373, %374 : vector<8x256xf32>
    %376 = arith.negf %375 : vector<8x256xf32>
    %377 = math.exp %376 : vector<8x256xf32>
    %cst_128 = arith.constant 1.000000e+00 : f32
    %378 = vector.broadcast %cst_128 : f32 to vector<8x256xf32>
    %379 = arith.addf %378, %377 : vector<8x256xf32>
    %380 = arith.divf %378, %379 : vector<8x256xf32>
    %381 = vector.extract_strided_slice %380 {offsets = [0, 0], sizes = [8, 128], strides = [1, 1]} : vector<8x256xf32> to vector<8x128xf32>
    %382 = vector.extract_strided_slice %380 {offsets = [0, 128], sizes = [8, 128], strides = [1, 1]} : vector<8x256xf32> to vector<8x128xf32>
    %383 = vector.extract_strided_slice %371 {offsets = [0, 256], sizes = [8, 128], strides = [1, 1]} : vector<8x384xf32> to vector<8x128xf32>
    %384 = vector.extract_strided_slice %372 {offsets = [0, 256], sizes = [8, 128], strides = [1, 1]} : vector<8x384xf32> to vector<8x128xf32>
    %385 = arith.addf %384, %274 : vector<8x128xf32>
    %386 = arith.mulf %381, %385 : vector<8x128xf32>
    %387 = arith.addf %383, %386 : vector<8x128xf32>
    %388 = math.tanh %387 : vector<8x128xf32>
    %cst_129 = arith.constant 1.000000e+00 : f32
    %389 = vector.broadcast %cst_129 : f32 to vector<8x128xf32>
    %390 = arith.subf %389, %382 : vector<8x128xf32>
    %391 = arith.mulf %390, %388 : vector<8x128xf32>
    %392 = arith.mulf %382, %366 : vector<8x128xf32>
    %393 = arith.addf %391, %392 : vector<8x128xf32>
    %c4_i32_130 = arith.constant 4 : i32
    %c8_i32_131 = arith.constant 8 : i32
    %394 = arith.muli %c4_i32_130, %c8_i32_131 : i32
    %395 = tpu.assume_multiple %394, 8 : i32
    %c0_132 = arith.constant 0 : index
    %396 = arith.index_cast %395 : i32 to index
    %c0_133 = arith.constant 0 : index
    %397 = vector.load %arg15[%c0_132, %396, %c0_133] : memref<1x64x384xf32, #tpu.memory_space<vmem>>, vector<1x8x384xf32>
    %398 = vector.shape_cast %397 : vector<1x8x384xf32> to vector<8x384xf32>
    %cst_134 = arith.constant dense<0.000000e+00> : vector<8x384xf32>
    %399 = tpu.matmul %393, %271, %cst_134 {dimension_numbers = #tpu.dot_dimension_numbers<[1], [0], [0], [1], [0, 0, 1, 1], [], []>} : vector<8x128xf32>, vector<128x384xf32>, vector<8x384xf32> -> vector<8x384xf32>
    %400 = vector.extract_strided_slice %398 {offsets = [0, 0], sizes = [8, 256], strides = [1, 1]} : vector<8x384xf32> to vector<8x256xf32>
    %401 = vector.extract_strided_slice %399 {offsets = [0, 0], sizes = [8, 256], strides = [1, 1]} : vector<8x384xf32> to vector<8x256xf32>
    %402 = arith.addf %400, %401 : vector<8x256xf32>
    %403 = arith.negf %402 : vector<8x256xf32>
    %404 = math.exp %403 : vector<8x256xf32>
    %cst_135 = arith.constant 1.000000e+00 : f32
    %405 = vector.broadcast %cst_135 : f32 to vector<8x256xf32>
    %406 = arith.addf %405, %404 : vector<8x256xf32>
    %407 = arith.divf %405, %406 : vector<8x256xf32>
    %408 = vector.extract_strided_slice %407 {offsets = [0, 0], sizes = [8, 128], strides = [1, 1]} : vector<8x256xf32> to vector<8x128xf32>
    %409 = vector.extract_strided_slice %407 {offsets = [0, 128], sizes = [8, 128], strides = [1, 1]} : vector<8x256xf32> to vector<8x128xf32>
    %410 = vector.extract_strided_slice %398 {offsets = [0, 256], sizes = [8, 128], strides = [1, 1]} : vector<8x384xf32> to vector<8x128xf32>
    %411 = vector.extract_strided_slice %399 {offsets = [0, 256], sizes = [8, 128], strides = [1, 1]} : vector<8x384xf32> to vector<8x128xf32>
    %412 = arith.addf %411, %274 : vector<8x128xf32>
    %413 = arith.mulf %408, %412 : vector<8x128xf32>
    %414 = arith.addf %410, %413 : vector<8x128xf32>
    %415 = math.tanh %414 : vector<8x128xf32>
    %cst_136 = arith.constant 1.000000e+00 : f32
    %416 = vector.broadcast %cst_136 : f32 to vector<8x128xf32>
    %417 = arith.subf %416, %409 : vector<8x128xf32>
    %418 = arith.mulf %417, %415 : vector<8x128xf32>
    %419 = arith.mulf %409, %393 : vector<8x128xf32>
    %420 = arith.addf %418, %419 : vector<8x128xf32>
    %c5_i32_137 = arith.constant 5 : i32
    %c8_i32_138 = arith.constant 8 : i32
    %421 = arith.muli %c5_i32_137, %c8_i32_138 : i32
    %422 = tpu.assume_multiple %421, 8 : i32
    %c0_139 = arith.constant 0 : index
    %423 = arith.index_cast %422 : i32 to index
    %c0_140 = arith.constant 0 : index
    %424 = vector.load %arg15[%c0_139, %423, %c0_140] : memref<1x64x384xf32, #tpu.memory_space<vmem>>, vector<1x8x384xf32>
    %425 = vector.shape_cast %424 : vector<1x8x384xf32> to vector<8x384xf32>
    %cst_141 = arith.constant dense<0.000000e+00> : vector<8x384xf32>
    %426 = tpu.matmul %420, %271, %cst_141 {dimension_numbers = #tpu.dot_dimension_numbers<[1], [0], [0], [1], [0, 0, 1, 1], [], []>} : vector<8x128xf32>, vector<128x384xf32>, vector<8x384xf32> -> vector<8x384xf32>
    %427 = vector.extract_strided_slice %425 {offsets = [0, 0], sizes = [8, 256], strides = [1, 1]} : vector<8x384xf32> to vector<8x256xf32>
    %428 = vector.extract_strided_slice %426 {offsets = [0, 0], sizes = [8, 256], strides = [1, 1]} : vector<8x384xf32> to vector<8x256xf32>
    %429 = arith.addf %427, %428 : vector<8x256xf32>
    %430 = arith.negf %429 : vector<8x256xf32>
    %431 = math.exp %430 : vector<8x256xf32>
    %cst_142 = arith.constant 1.000000e+00 : f32
    %432 = vector.broadcast %cst_142 : f32 to vector<8x256xf32>
    %433 = arith.addf %432, %431 : vector<8x256xf32>
    %434 = arith.divf %432, %433 : vector<8x256xf32>
    %435 = vector.extract_strided_slice %434 {offsets = [0, 0], sizes = [8, 128], strides = [1, 1]} : vector<8x256xf32> to vector<8x128xf32>
    %436 = vector.extract_strided_slice %434 {offsets = [0, 128], sizes = [8, 128], strides = [1, 1]} : vector<8x256xf32> to vector<8x128xf32>
    %437 = vector.extract_strided_slice %425 {offsets = [0, 256], sizes = [8, 128], strides = [1, 1]} : vector<8x384xf32> to vector<8x128xf32>
    %438 = vector.extract_strided_slice %426 {offsets = [0, 256], sizes = [8, 128], strides = [1, 1]} : vector<8x384xf32> to vector<8x128xf32>
    %439 = arith.addf %438, %274 : vector<8x128xf32>
    %440 = arith.mulf %435, %439 : vector<8x128xf32>
    %441 = arith.addf %437, %440 : vector<8x128xf32>
    %442 = math.tanh %441 : vector<8x128xf32>
    %cst_143 = arith.constant 1.000000e+00 : f32
    %443 = vector.broadcast %cst_143 : f32 to vector<8x128xf32>
    %444 = arith.subf %443, %436 : vector<8x128xf32>
    %445 = arith.mulf %444, %442 : vector<8x128xf32>
    %446 = arith.mulf %436, %420 : vector<8x128xf32>
    %447 = arith.addf %445, %446 : vector<8x128xf32>
    %c6_i32_144 = arith.constant 6 : i32
    %c8_i32_145 = arith.constant 8 : i32
    %448 = arith.muli %c6_i32_144, %c8_i32_145 : i32
    %449 = tpu.assume_multiple %448, 8 : i32
    %c0_146 = arith.constant 0 : index
    %450 = arith.index_cast %449 : i32 to index
    %c0_147 = arith.constant 0 : index
    %451 = vector.load %arg15[%c0_146, %450, %c0_147] : memref<1x64x384xf32, #tpu.memory_space<vmem>>, vector<1x8x384xf32>
    %452 = vector.shape_cast %451 : vector<1x8x384xf32> to vector<8x384xf32>
    %cst_148 = arith.constant dense<0.000000e+00> : vector<8x384xf32>
    %453 = tpu.matmul %447, %271, %cst_148 {dimension_numbers = #tpu.dot_dimension_numbers<[1], [0], [0], [1], [0, 0, 1, 1], [], []>} : vector<8x128xf32>, vector<128x384xf32>, vector<8x384xf32> -> vector<8x384xf32>
    %454 = vector.extract_strided_slice %452 {offsets = [0, 0], sizes = [8, 256], strides = [1, 1]} : vector<8x384xf32> to vector<8x256xf32>
    %455 = vector.extract_strided_slice %453 {offsets = [0, 0], sizes = [8, 256], strides = [1, 1]} : vector<8x384xf32> to vector<8x256xf32>
    %456 = arith.addf %454, %455 : vector<8x256xf32>
    %457 = arith.negf %456 : vector<8x256xf32>
    %458 = math.exp %457 : vector<8x256xf32>
    %cst_149 = arith.constant 1.000000e+00 : f32
    %459 = vector.broadcast %cst_149 : f32 to vector<8x256xf32>
    %460 = arith.addf %459, %458 : vector<8x256xf32>
    %461 = arith.divf %459, %460 : vector<8x256xf32>
    %462 = vector.extract_strided_slice %461 {offsets = [0, 0], sizes = [8, 128], strides = [1, 1]} : vector<8x256xf32> to vector<8x128xf32>
    %463 = vector.extract_strided_slice %461 {offsets = [0, 128], sizes = [8, 128], strides = [1, 1]} : vector<8x256xf32> to vector<8x128xf32>
    %464 = vector.extract_strided_slice %452 {offsets = [0, 256], sizes = [8, 128], strides = [1, 1]} : vector<8x384xf32> to vector<8x128xf32>
    %465 = vector.extract_strided_slice %453 {offsets = [0, 256], sizes = [8, 128], strides = [1, 1]} : vector<8x384xf32> to vector<8x128xf32>
    %466 = arith.addf %465, %274 : vector<8x128xf32>
    %467 = arith.mulf %462, %466 : vector<8x128xf32>
    %468 = arith.addf %464, %467 : vector<8x128xf32>
    %469 = math.tanh %468 : vector<8x128xf32>
    %cst_150 = arith.constant 1.000000e+00 : f32
    %470 = vector.broadcast %cst_150 : f32 to vector<8x128xf32>
    %471 = arith.subf %470, %463 : vector<8x128xf32>
    %472 = arith.mulf %471, %469 : vector<8x128xf32>
    %473 = arith.mulf %463, %447 : vector<8x128xf32>
    %474 = arith.addf %472, %473 : vector<8x128xf32>
    %c7_i32_151 = arith.constant 7 : i32
    %c8_i32_152 = arith.constant 8 : i32
    %475 = arith.muli %c7_i32_151, %c8_i32_152 : i32
    %476 = tpu.assume_multiple %475, 8 : i32
    %c0_153 = arith.constant 0 : index
    %477 = arith.index_cast %476 : i32 to index
    %c0_154 = arith.constant 0 : index
    %478 = vector.load %arg15[%c0_153, %477, %c0_154] : memref<1x64x384xf32, #tpu.memory_space<vmem>>, vector<1x8x384xf32>
    %479 = vector.shape_cast %478 : vector<1x8x384xf32> to vector<8x384xf32>
    %cst_155 = arith.constant dense<0.000000e+00> : vector<8x384xf32>
    %480 = tpu.matmul %474, %271, %cst_155 {dimension_numbers = #tpu.dot_dimension_numbers<[1], [0], [0], [1], [0, 0, 1, 1], [], []>} : vector<8x128xf32>, vector<128x384xf32>, vector<8x384xf32> -> vector<8x384xf32>
    %481 = vector.extract_strided_slice %479 {offsets = [0, 0], sizes = [8, 256], strides = [1, 1]} : vector<8x384xf32> to vector<8x256xf32>
    %482 = vector.extract_strided_slice %480 {offsets = [0, 0], sizes = [8, 256], strides = [1, 1]} : vector<8x384xf32> to vector<8x256xf32>
    %483 = arith.addf %481, %482 : vector<8x256xf32>
    %484 = arith.negf %483 : vector<8x256xf32>
    %485 = math.exp %484 : vector<8x256xf32>
    %cst_156 = arith.constant 1.000000e+00 : f32
    %486 = vector.broadcast %cst_156 : f32 to vector<8x256xf32>
    %487 = arith.addf %486, %485 : vector<8x256xf32>
    %488 = arith.divf %486, %487 : vector<8x256xf32>
    %489 = vector.extract_strided_slice %488 {offsets = [0, 0], sizes = [8, 128], strides = [1, 1]} : vector<8x256xf32> to vector<8x128xf32>
    %490 = vector.extract_strided_slice %488 {offsets = [0, 128], sizes = [8, 128], strides = [1, 1]} : vector<8x256xf32> to vector<8x128xf32>
    %491 = vector.extract_strided_slice %479 {offsets = [0, 256], sizes = [8, 128], strides = [1, 1]} : vector<8x384xf32> to vector<8x128xf32>
    %492 = vector.extract_strided_slice %480 {offsets = [0, 256], sizes = [8, 128], strides = [1, 1]} : vector<8x384xf32> to vector<8x128xf32>
    %493 = arith.addf %492, %274 : vector<8x128xf32>
    %494 = arith.mulf %489, %493 : vector<8x128xf32>
    %495 = arith.addf %491, %494 : vector<8x128xf32>
    %496 = math.tanh %495 : vector<8x128xf32>
    %cst_157 = arith.constant 1.000000e+00 : f32
    %497 = vector.broadcast %cst_157 : f32 to vector<8x128xf32>
    %498 = arith.subf %497, %490 : vector<8x128xf32>
    %499 = arith.mulf %498, %496 : vector<8x128xf32>
    %500 = arith.mulf %490, %474 : vector<8x128xf32>
    %501 = arith.addf %499, %500 : vector<8x128xf32>
    %c8_i32_158 = arith.constant 8 : i32
    %cst_159 = arith.constant 0.000000e+00 : f32
    %502 = vector.broadcast %cst_159 : f32 to vector<8x128xf32>
    %503 = arith.maximumf %501, %502 : vector<8x128xf32>
    %c0_160 = arith.constant 0 : index
    %c0_161 = arith.constant 0 : index
    %504 = vector.load %arg10[%c0_160, %c0_161] : memref<128x128xf32, #tpu.memory_space<vmem>>, vector<128x128xf32>
    %cst_162 = arith.constant dense<0.000000e+00> : vector<8x128xf32>
    %505 = tpu.matmul %503, %504, %cst_162 {dimension_numbers = #tpu.dot_dimension_numbers<[1], [0], [0], [1], [0, 0, 1, 1], [], []>} : vector<8x128xf32>, vector<128x128xf32>, vector<8x128xf32> -> vector<8x128xf32>
    %c0_163 = arith.constant 0 : index
    %c0_164 = arith.constant 0 : index
    %506 = vector.load %arg11[%c0_163, %c0_164] : memref<1x128xf32, #tpu.memory_space<vmem>>, vector<1x128xf32>
    %507 = vector.broadcast %506 : vector<1x128xf32> to vector<8x128xf32>
    %508 = arith.addf %505, %507 : vector<8x128xf32>
    %cst_165 = arith.constant 0.000000e+00 : f32
    %509 = vector.broadcast %cst_165 : f32 to vector<8x128xf32>
    %510 = arith.maximumf %508, %509 : vector<8x128xf32>
    %c0_166 = arith.constant 0 : index
    %c0_167 = arith.constant 0 : index
    %511 = vector.load %arg12[%c0_166, %c0_167] : memref<128x128xf32, #tpu.memory_space<vmem>>, vector<128x128xf32>
    %cst_168 = arith.constant dense<0.000000e+00> : vector<8x128xf32>
    %512 = tpu.matmul %510, %511, %cst_168 {dimension_numbers = #tpu.dot_dimension_numbers<[1], [0], [0], [1], [0, 0, 1, 1], [], []>} : vector<8x128xf32>, vector<128x128xf32>, vector<8x128xf32> -> vector<8x128xf32>
    %c0_169 = arith.constant 0 : index
    %c0_170 = arith.constant 0 : index
    %513 = vector.load %arg13[%c0_169, %c0_170] : memref<1x128xf32, #tpu.memory_space<vmem>>, vector<1x128xf32>
    %514 = vector.broadcast %513 : vector<1x128xf32> to vector<8x128xf32>
    %515 = arith.addf %512, %514 : vector<8x128xf32>
    %c0_171 = arith.constant 0 : index
    %c0_172 = arith.constant 0 : index
    %516 = vector.load %arg14[%c0_171, %c0_172] : memref<8x128xf32, #tpu.memory_space<vmem>>, vector<8x128xf32>
    tpu.vector_store %arg14[%c0_171, %c0_172], %515 {strides = array<i32>} : memref<8x128xf32, #tpu.memory_space<vmem>>, vector<8x128xf32>,
    return
  }
  func.func @transform_0(%arg0: i32) -> (i32, i32, i32) {
    %c0_i32 = arith.constant 0 : i32
    %c0_i32_0 = arith.constant 0 : i32
    %c0_i32_1 = arith.constant 0 : i32
    return %c0_i32, %arg0, %c0_i32_0 : i32, i32, i32
  }
  func.func @transform_1(%arg0: i32) -> (i32, i32) {
    %c0_i32 = arith.constant 0 : i32
    %c0_i32_0 = arith.constant 0 : i32
    %c0_i32_1 = arith.constant 0 : i32
    return %c0_i32, %c0_i32_0 : i32, i32
  }
  func.func @transform_2(%arg0: i32) -> (i32, i32) {
    %c0_i32 = arith.constant 0 : i32
    %c0_i32_0 = arith.constant 0 : i32
    %c0_i32_1 = arith.constant 0 : i32
    return %c0_i32, %c0_i32_0 : i32, i32
  }
  func.func @transform_3(%arg0: i32) -> (i32, i32) {
    %c0_i32 = arith.constant 0 : i32
    %c0_i32_0 = arith.constant 0 : i32
    %c0_i32_1 = arith.constant 0 : i32
    return %c0_i32, %c0_i32_0 : i32, i32
  }
  func.func @transform_4(%arg0: i32) -> (i32, i32) {
    %c0_i32 = arith.constant 0 : i32
    %c0_i32_0 = arith.constant 0 : i32
    %c0_i32_1 = arith.constant 0 : i32
    return %c0_i32, %c0_i32_0 : i32, i32
  }
  func.func @transform_5(%arg0: i32) -> (i32, i32) {
    %c0_i32 = arith.constant 0 : i32
    %c0_i32_0 = arith.constant 0 : i32
    %c0_i32_1 = arith.constant 0 : i32
    return %c0_i32, %c0_i32_0 : i32, i32
  }
  func.func @transform_6(%arg0: i32) -> (i32, i32) {
    %c0_i32 = arith.constant 0 : i32
    %c0_i32_0 = arith.constant 0 : i32
    %c0_i32_1 = arith.constant 0 : i32
    return %c0_i32, %c0_i32_0 : i32, i32
  }
  func.func @transform_7(%arg0: i32) -> (i32, i32) {
    %c0_i32 = arith.constant 0 : i32
    %c0_i32_0 = arith.constant 0 : i32
    %c0_i32_1 = arith.constant 0 : i32
    return %c0_i32, %c0_i32_0 : i32, i32
  }
  func.func @transform_8(%arg0: i32) -> (i32, i32) {
    %c0_i32 = arith.constant 0 : i32
    %c0_i32_0 = arith.constant 0 : i32
    %c0_i32_1 = arith.constant 0 : i32
    return %c0_i32, %c0_i32_0 : i32, i32
  }
  func.func @transform_9(%arg0: i32) -> (i32, i32) {
    %c0_i32 = arith.constant 0 : i32
    %c0_i32_0 = arith.constant 0 : i32
    %c0_i32_1 = arith.constant 0 : i32
    return %c0_i32, %c0_i32_0 : i32, i32
  }
  func.func @transform_10(%arg0: i32) -> (i32, i32) {
    %c0_i32 = arith.constant 0 : i32
    %c0_i32_0 = arith.constant 0 : i32
    %c0_i32_1 = arith.constant 0 : i32
    return %c0_i32, %c0_i32_0 : i32, i32
  }
  func.func @transform_11(%arg0: i32) -> (i32, i32) {
    %c0_i32 = arith.constant 0 : i32
    %c0_i32_0 = arith.constant 0 : i32
    %c0_i32_1 = arith.constant 0 : i32
    return %c0_i32, %c0_i32_0 : i32, i32
  }
  func.func @transform_12(%arg0: i32) -> (i32, i32) {
    %c0_i32 = arith.constant 0 : i32
    %c0_i32_0 = arith.constant 0 : i32
    %c0_i32_1 = arith.constant 0 : i32
    return %c0_i32, %c0_i32_0 : i32, i32
  }
  func.func @transform_13(%arg0: i32) -> (i32, i32) {
    %c0_i32 = arith.constant 0 : i32
    %c0_i32_0 = arith.constant 0 : i32
    return %arg0, %c0_i32 : i32, i32
  }
}

</mosaic_0001>

<llo_original>
// kernel: gru_model_forward.1
$region0: #{gru_model_forward.1}
  #allocation0 [shape = 'u32[]', space=smem, size = 0x4, offset = 0x4, fixed_abs, tag = 'smem constant byte address 0x4 - core index']
  #allocation1 [shape = 'u32[72,128]{1,0:T(1,128)}', space=vmem, size = 0x9000, scoped, tag = 'internal scratch']
  #allocation2 [shape = 'f32[1,64,384]{2,1,0:T(8,128)}', space=vmem, size = 0x18000, scoped, tag = 'scratch operand']
  #allocation3 [shape = 'f32[8,8,128]{2,1,0:T(8,128)}', space=vmem, size = 0x8000, scoped, tag = 'scratch operand']
  %s0 = inlined_call_operand.vmem [shape: f32[8,8,128], index: 0, kind: input, shape index: {}]
  %s1 = inlined_call_operand.hbm [shape: f32[128,384], index: 1, kind: input, shape index: {}]
  %s2 = inlined_call_operand.hbm [shape: f32[128,384], index: 2, kind: input, shape index: {}]
  %s3 = inlined_call_operand.vmem [shape: f32[1,384], index: 3, kind: input, shape index: {}]
  %s4 = inlined_call_operand.vmem [shape: f32[1,128], index: 4, kind: input, shape index: {}]
  %s5 = inlined_call_operand.hbm [shape: f32[128,384], index: 5, kind: input, shape index: {}]
  %s6 = inlined_call_operand.hbm [shape: f32[128,384], index: 6, kind: input, shape index: {}]
  %s7 = inlined_call_operand.vmem [shape: f32[1,384], index: 7, kind: input, shape index: {}]
  %s8 = inlined_call_operand.vmem [shape: f32[1,128], index: 8, kind: input, shape index: {}]
  %s9 = inlined_call_operand.vmem [shape: f32[128,128], index: 9, kind: input, shape index: {}]
  %s10 = inlined_call_operand.vmem [shape: f32[1,128], index: 10, kind: input, shape index: {}]
  %s11 = inlined_call_operand.hbm [shape: f32[128,128], index: 11, kind: input, shape index: {}]
  %s12 = inlined_call_operand.vmem [shape: f32[1,128], index: 12, kind: input, shape index: {}]
  %s13 = inlined_call_operand.vmem [shape: f32[8,128], index: 13, kind: output, shape index: {}]
  %s14 = sld [smem:[#allocation0]]
  $region82: #{gru_model_forward.1} parent=0
    _
  %s16 = ssub.s32 1, %s14
  %s17 = scalar_select 0, %s16, %s14
  $region1: #{gru_model_forward.1} parent=0
    #allocation4 [shape = 'u8[196608]{0}', space=vmem, size = 0x30000, scoped, tag = 'input window, operand 1, single buffered']
    #allocation5 [shape = 's32[1]{0}', space=sflag, size = 0x4, scoped, tag = 'scoped memory for gru_model_forward.1']
    #allocation6 [shape = 'u8[196608]{0}', space=vmem, size = 0x30000, scoped, tag = 'input window, operand 2, single buffered']
    #allocation7 [shape = 's32[1]{0}', space=sflag, size = 0x4, scoped, tag = 'scoped memory for gru_model_forward.1']
    #allocation8 [shape = 'u8[196608]{0}', space=vmem, size = 0x30000, scoped, tag = 'input window, operand 5, single buffered']
    #allocation9 [shape = 'u8[196608]{0}', space=vmem, size = 0x30000, scoped, tag = 'input window, operand 6, single buffered']
    #allocation10 [shape = 's32[1]{0}', space=sflag, size = 0x4, scoped, tag = 'scoped memory for gru_model_forward.1']
    #allocation11 [shape = 'u8[65536]{0}', space=vmem, size = 0x10000, scoped, tag = 'input window, operand 11, single buffered']
    %18 = vsyncpa [#allocation5], 0
    %19 = vsyncpa [#allocation7], 0
    %20 = vsyncpa [#allocation10], 0
    // Predicated region
    $region2: #{gru_model_forward.1} parent=1 // pred_check
      _
    $region3: #{gru_model_forward.1} parent=1 // pred_check_branch
      %22 = sbr.rel (0) target = $region5
    $region4: #{gru_model_forward.1} parent=1 // pred_region
      _
    $region5: #{gru_model_forward.1} parent=1 // pred_fallthru
      _
    // Predicated region
    $region6: #{gru_model_forward.1} parent=1 // pred_check
      _
    $region7: #{gru_model_forward.1} parent=1 // pred_check_branch
      %24 = sbr.rel (0) target = $region9
    $region8: #{gru_model_forward.1} parent=1 // pred_region
      %26 = vsyncadd [#allocation5], 0
      %s27 = sshll.u32 %s1, 4
      %s28 = int_to_ptr.hbm [resolvable:$true] %s27
      %s29 = sshll.u32 [#allocation4], 4
      %s30 = int_to_ptr.vmem [resolvable:$true] %s29
      %35 = dma.hbm_to_vmem [thread:$0]  %s28, 6144, %s30, [#allocation5], 384, 384, 24
    $region9: #{gru_model_forward.1} parent=1 // pred_fallthru
      _
    // Predicated region
    $region10: #{gru_model_forward.1} parent=1 // pred_check
      _
    $region11: #{gru_model_forward.1} parent=1 // pred_check_branch
      %37 = sbr.rel (0) target = $region13
    $region12: #{gru_model_forward.1} parent=1 // pred_region
      %39 = vsyncadd [#allocation7], 0
      %s40 = sshll.u32 %s2, 4
      %s41 = int_to_ptr.hbm [resolvable:$true] %s40
      %s42 = sshll.u32 [#allocation6], 4
      %s43 = int_to_ptr.vmem [resolvable:$true] %s42
      %48 = dma.hbm_to_vmem [thread:$0]  %s41, 6144, %s43, [#allocation7], 384, 384, 24
    $region13: #{gru_model_forward.1} parent=1 // pred_fallthru
      _
    // Predicated region
    $region14: #{gru_model_forward.1} parent=1 // pred_check
      _
    $region15: #{gru_model_forward.1} parent=1 // pred_check_branch
      %50 = sbr.rel (0) target = $region17
    $region16: #{gru_model_forward.1} parent=1 // pred_region
      _
    $region17: #{gru_model_forward.1} parent=1 // pred_fallthru
      _
    // Predicated region
    $region18: #{gru_model_forward.1} parent=1 // pred_check
      _
    $region19: #{gru_model_forward.1} parent=1 // pred_check_branch
      %52 = sbr.rel (0) target = $region21
    $region20: #{gru_model_forward.1} parent=1 // pred_region
      _
    $region21: #{gru_model_forward.1} parent=1 // pred_fallthru
      _
    // Predicated region
    $region22: #{gru_model_forward.1} parent=1 // pred_check
      _
    $region23: #{gru_model_forward.1} parent=1 // pred_check_branch
      %54 = sbr.rel (0) target = $region25
    $region24: #{gru_model_forward.1} parent=1 // pred_region
      %56 = vsyncadd [#allocation7], 0
      %s57 = sshll.u32 %s5, 4
      %s58 = int_to_ptr.hbm [resolvable:$true] %s57
      %s59 = sshll.u32 [#allocation8], 4
      %s60 = int_to_ptr.vmem [resolvable:$true] %s59
      %65 = dma.hbm_to_vmem [thread:$0]  %s58, 6144, %s60, [#allocation7], 384, 384, 24
    $region25: #{gru_model_forward.1} parent=1 // pred_fallthru
      _
    // Predicated region
    $region26: #{gru_model_forward.1} parent=1 // pred_check
      _
    $region27: #{gru_model_forward.1} parent=1 // pred_check_branch
      %67 = sbr.rel (0) target = $region29
    $region28: #{gru_model_forward.1} parent=1 // pred_region
      %69 = vsyncadd [#allocation10], 0
      %s70 = sshll.u32 %s6, 4
      %s71 = int_to_ptr.hbm [resolvable:$true] %s70
      %s72 = sshll.u32 [#allocation9], 4
      %s73 = int_to_ptr.vmem [resolvable:$true] %s72
      %78 = dma.hbm_to_vmem [thread:$0]  %s71, 6144, %s73, [#allocation10], 384, 384, 24
    $region29: #{gru_model_forward.1} parent=1 // pred_fallthru
      _
    // Predicated region
    $region30: #{gru_model_forward.1} parent=1 // pred_check
      _
    $region31: #{gru_model_forward.1} parent=1 // pred_check_branch
      %80 = sbr.rel (0) target = $region33
    $region32: #{gru_model_forward.1} parent=1 // pred_region
      _
    $region33: #{gru_model_forward.1} parent=1 // pred_fallthru
      _
    // Predicated region
    $region34: #{gru_model_forward.1} parent=1 // pred_check
      _
    $region35: #{gru_model_forward.1} parent=1 // pred_check_branch
      %82 = sbr.rel (0) target = $region37
    $region36: #{gru_model_forward.1} parent=1 // pred_region
      _
    $region37: #{gru_model_forward.1} parent=1 // pred_fallthru
      _
    // Predicated region
    $region38: #{gru_model_forward.1} parent=1 // pred_check
      _
    $region39: #{gru_model_forward.1} parent=1 // pred_check_branch
      %84 = sbr.rel (0) target = $region41
    $region40: #{gru_model_forward.1} parent=1 // pred_region
      _
    $region41: #{gru_model_forward.1} parent=1 // pred_fallthru
      _
    // Predicated region
    $region42: #{gru_model_forward.1} parent=1 // pred_check
      _
    $region43: #{gru_model_forward.1} parent=1 // pred_check_branch
      %86 = sbr.rel (0) target = $region45
    $region44: #{gru_model_forward.1} parent=1 // pred_region
      _
    $region45: #{gru_model_forward.1} parent=1 // pred_fallthru
      _
    // Predicated region
    $region46: #{gru_model_forward.1} parent=1 // pred_check
      _
    $region47: #{gru_model_forward.1} parent=1 // pred_check_branch
      %88 = sbr.rel (0) target = $region49
    $region48: #{gru_model_forward.1} parent=1 // pred_region
      %90 = vsyncadd [#allocation10], 0
      %s91 = sshll.u32 %s11, 4
      %s92 = int_to_ptr.hbm [resolvable:$true] %s91
      %s93 = sshll.u32 [#allocation11], 4
      %s94 = int_to_ptr.vmem [resolvable:$true] %s93
      %99 = dma.hbm_to_vmem [thread:$0]  %s92, 2048, %s94, [#allocation10], 128, 128, 8
    $region49: #{gru_model_forward.1} parent=1 // pred_fallthru
      _
    // Predicated region
    $region50: #{gru_model_forward.1} parent=1 // pred_check
      _
    $region51: #{gru_model_forward.1} parent=1 // pred_check_branch
      %101 = sbr.rel (0) target = $region53
    $region52: #{gru_model_forward.1} parent=1 // pred_region
      _
    $region53: #{gru_model_forward.1} parent=1 // pred_fallthru
      _
    // Predicated region
    $region54: #{gru_model_forward.1} parent=1 // pred_check
      _
    $region55: #{gru_model_forward.1} parent=1 // pred_check_branch
      %103 = sbr.rel (0) target = $region57
    $region56: #{gru_model_forward.1} parent=1 // pred_region
      %105 = dma.done [#allocation5], 6144
    $region57: #{gru_model_forward.1} parent=1 // pred_fallthru
      _
    // Predicated region
    $region58: #{gru_model_forward.1} parent=1 // pred_check
      _
    $region59: #{gru_model_forward.1} parent=1 // pred_check_branch
      %107 = sbr.rel (0) target = $region61
    $region60: #{gru_model_forward.1} parent=1 // pred_region
      %109 = dma.done [#allocation7], 6144
    $region61: #{gru_model_forward.1} parent=1 // pred_fallthru
      _
    // Predicated region
    $region62: #{gru_model_forward.1} parent=1 // pred_check
      _
    $region63: #{gru_model_forward.1} parent=1 // pred_check_branch
      %111 = sbr.rel (0) target = $region65
    $region64: #{gru_model_forward.1} parent=1 // pred_region
      %113 = dma.done [#allocation7], 6144
    $region65: #{gru_model_forward.1} parent=1 // pred_fallthru
      _
    // Predicated region
    $region66: #{gru_model_forward.1} parent=1 // pred_check
      _
    $region67: #{gru_model_forward.1} parent=1 // pred_check_branch
      %115 = sbr.rel (0) target = $region69
    $region68: #{gru_model_forward.1} parent=1 // pred_region
      %117 = dma.done [#allocation10], 6144
    $region69: #{gru_model_forward.1} parent=1 // pred_fallthru
      _
    // Predicated region
    $region70: #{gru_model_forward.1} parent=1 // pred_check
      _
    $region71: #{gru_model_forward.1} parent=1 // pred_check_branch
      %119 = sbr.rel (0) target = $region73
    $region72: #{gru_model_forward.1} parent=1 // pred_region
      %121 = dma.done [#allocation10], 2048
    $region73: #{gru_model_forward.1} parent=1 // pred_fallthru
      _
    %v122 = vld [vmem:[#allocation6] sm:$0xff]
    %v123 = vld [vmem:[#allocation6 + $0x8] sm:$0xff]
    %v124 = vld [vmem:[#allocation6 + $0x10] sm:$0xff]
    %v125 = vld [vmem:[#allocation6 + $0x18] sm:$0xff]
    %v126 = vld [vmem:[#allocation6 + $0x20] sm:$0xff]
    %v127 = vld [vmem:[#allocation6 + $0x28] sm:$0xff]
    %v128 = vld [vmem:[#allocation6 + $0x30] sm:$0xff]
    %v129 = vld [vmem:[#allocation6 + $0x38] sm:$0xff]
    %v130 = vld [vmem:[#allocation6 + $0x40] sm:$0xff]
    %v131 = vld [vmem:[#allocation6 + $0x48] sm:$0xff]
    %v132 = vld [vmem:[#allocation6 + $0x50] sm:$0xff]
    %v133 = vld [vmem:[#allocation6 + $0x58] sm:$0xff]
    %v134 = vld [vmem:[#allocation6 + $0x60] sm:$0xff]
    %v135 = vld [vmem:[#allocation6 + $0x68] sm:$0xff]
    %v136 = vld [vmem:[#allocation6 + $0x70] sm:$0xff]
    %v137 = vld [vmem:[#allocation6 + $0x78] sm:$0xff]
    %v138 = vld [vmem:[#allocation6 + $0x80] sm:$0xff]
    %v139 = vld [vmem:[#allocation6 + $0x88] sm:$0xff]
    %v140 = vld [vmem:[#allocation6 + $0x90] sm:$0xff]
    %v141 = vld [vmem:[#allocation6 + $0x98] sm:$0xff]
    %v142 = vld [vmem:[#allocation6 + $0xa0] sm:$0xff]
    %v143 = vld [vmem:[#allocation6 + $0xa8] sm:$0xff]
    %v144 = vld [vmem:[#allocation6 + $0xb0] sm:$0xff]
    %v145 = vld [vmem:[#allocation6 + $0xb8] sm:$0xff]
    %v146 = vld [vmem:[#allocation6 + $0xc0] sm:$0xff]
    %v147 = vld [vmem:[#allocation6 + $0xc8] sm:$0xff]
    %v148 = vld [vmem:[#allocation6 + $0xd0] sm:$0xff]
    %v149 = vld [vmem:[#allocation6 + $0xd8] sm:$0xff]
    %v150 = vld [vmem:[#allocation6 + $0xe0] sm:$0xff]
    %v151 = vld [vmem:[#allocation6 + $0xe8] sm:$0xff]
    %v152 = vld [vmem:[#allocation6 + $0xf0] sm:$0xff]
    %v153 = vld [vmem:[#allocation6 + $0xf8] sm:$0xff]
    %v154 = vld [vmem:[#allocation6 + $0x100] sm:$0xff]
    %v155 = vld [vmem:[#allocation6 + $0x108] sm:$0xff]
    %v156 = vld [vmem:[#allocation6 + $0x110] sm:$0xff]
    %v157 = vld [vmem:[#allocation6 + $0x118] sm:$0xff]
    %v158 = vld [vmem:[#allocation6 + $0x120] sm:$0xff]
    %v159 = vld [vmem:[#allocation6 + $0x128] sm:$0xff]
    %v160 = vld [vmem:[#allocation6 + $0x130] sm:$0xff]
    %v161 = vld [vmem:[#allocation6 + $0x138] sm:$0xff]
    %v162 = vld [vmem:[#allocation6 + $0x140] sm:$0xff]
    %v163 = vld [vmem:[#allocation6 + $0x148] sm:$0xff]
    %v164 = vld [vmem:[#allocation6 + $0x150] sm:$0xff]
    %v165 = vld [vmem:[#allocation6 + $0x158] sm:$0xff]
    %v166 = vld [vmem:[#allocation6 + $0x160] sm:$0xff]
    %v167 = vld [vmem:[#allocation6 + $0x168] sm:$0xff]
    %v168 = vld [vmem:[#allocation6 + $0x170] sm:$0xff]
    %v169 = vld [vmem:[#allocation6 + $0x178] sm:$0xff]
    %v170 = vld [vmem:[%s4] sm:$0x1]
    %v172 = vperm.slane %v170, 0
    %v174 = vld [vmem:[%s0] sm:$0xff]
    %v175 = vld [vmem:[%s0 + $0x8] sm:$0xff]
    %v176 = vld [vmem:[%s0 + $0x10] sm:$0xff]
    %v177 = vld [vmem:[%s0 + $0x18] sm:$0xff]
    %v178 = vld [vmem:[%s0 + $0x20] sm:$0xff]
    %v179 = vld [vmem:[%s0 + $0x28] sm:$0xff]
    %v180 = vld [vmem:[%s0 + $0x30] sm:$0xff]
    %v181 = vld [vmem:[%s0 + $0x38] sm:$0xff]
    %v182 = vld [vmem:[#allocation4] sm:$0xff]
    %v183 = vld [vmem:[#allocation4 + $0x8] sm:$0xff]
    %v184 = vld [vmem:[#allocation4 + $0x10] sm:$0xff]
    %v185 = vld [vmem:[#allocation4 + $0x18] sm:$0xff]
    %v186 = vld [vmem:[#allocation4 + $0x20] sm:$0xff]
    %v187 = vld [vmem:[#allocation4 + $0x28] sm:$0xff]
    %v188 = vld [vmem:[#allocation4 + $0x30] sm:$0xff]
    %v189 = vld [vmem:[#allocation4 + $0x38] sm:$0xff]
    %v190 = vld [vmem:[#allocation4 + $0x40] sm:$0xff]
    %v191 = vld [vmem:[#allocation4 + $0x48] sm:$0xff]
    %v192 = vld [vmem:[#allocation4 + $0x50] sm:$0xff]
    %v193 = vld [vmem:[#allocation4 + $0x58] sm:$0xff]
    %v194 = vld [vmem:[#allocation4 + $0x60] sm:$0xff]
    %v195 = vld [vmem:[#allocation4 + $0x68] sm:$0xff]
    %v196 = vld [vmem:[#allocation4 + $0x70] sm:$0xff]
    %v197 = vld [vmem:[#allocation4 + $0x78] sm:$0xff]
    %v198 = vld [vmem:[#allocation4 + $0x80] sm:$0xff]
    %v199 = vld [vmem:[#allocation4 + $0x88] sm:$0xff]
    %v200 = vld [vmem:[#allocation4 + $0x90] sm:$0xff]
    %v201 = vld [vmem:[#allocation4 + $0x98] sm:$0xff]
    %v202 = vld [vmem:[#allocation4 + $0xa0] sm:$0xff]
    %v203 = vld [vmem:[#allocation4 + $0xa8] sm:$0xff]
    %v204 = vld [vmem:[#allocation4 + $0xb0] sm:$0xff]
    %v205 = vld [vmem:[#allocation4 + $0xb8] sm:$0xff]
    %v206 = vld [vmem:[#allocation4 + $0xc0] sm:$0xff]
    %v207 = vld [vmem:[#allocation4 + $0xc8] sm:$0xff]
    %v208 = vld [vmem:[#allocation4 + $0xd0] sm:$0xff]
    %v209 = vld [vmem:[#allocation4 + $0xd8] sm:$0xff]
    %v210 = vld [vmem:[#allocation4 + $0xe0] sm:$0xff]
    %v211 = vld [vmem:[#allocation4 + $0xe8] sm:$0xff]
    %v212 = vld [vmem:[#allocation4 + $0xf0] sm:$0xff]
    %v213 = vld [vmem:[#allocation4 + $0xf8] sm:$0xff]
    %v214 = vld [vmem:[#allocation4 + $0x100] sm:$0xff]
    %v215 = vld [vmem:[#allocation4 + $0x108] sm:$0xff]
    %v216 = vld [vmem:[#allocation4 + $0x110] sm:$0xff]
    %v217 = vld [vmem:[#allocation4 + $0x118] sm:$0xff]
    %v218 = vld [vmem:[#allocation4 + $0x120] sm:$0xff]
    %v219 = vld [vmem:[#allocation4 + $0x128] sm:$0xff]
    %v220 = vld [vmem:[#allocation4 + $0x130] sm:$0xff]
    %v221 = vld [vmem:[#allocation4 + $0x138] sm:$0xff]
    %v222 = vld [vmem:[#allocation4 + $0x140] sm:$0xff]
    %v223 = vld [vmem:[#allocation4 + $0x148] sm:$0xff]
    %v224 = vld [vmem:[#allocation4 + $0x150] sm:$0xff]
    %v225 = vld [vmem:[#allocation4 + $0x158] sm:$0xff]
    %v226 = vld [vmem:[#allocation4 + $0x160] sm:$0xff]
    %v227 = vld [vmem:[#allocation4 + $0x168] sm:$0xff]
    %v228 = vld [vmem:[#allocation4 + $0x170] sm:$0xff]
    %v229 = vld [vmem:[#allocation4 + $0x178] sm:$0xff]
    %v230 = vld [vmem:[%s3] sm:$0x7]
    %v232 = vperm.slane %v230, 0
    %v233 = vperm.slane %v230, 1
    %v234 = vperm.slane %v230, 2
    %238 = vmatpush.msra.mxu0 %v227
    %239 = vmatpush.msra.mxu0 %v224
    %240 = vmatpush.msra.mxu0 %v221
    %241 = vmatpush.msra.mxu0 %v218
    %242 = vmatpush.msra.mxu0 %v215
    %243 = vmatpush.msra.mxu0 %v212
    %244 = vmatpush.msra.mxu0 %v209
    %245 = vmatpush.msra.mxu0 %v206
    %246 = vmatpush.msra.mxu0 %v203
    %247 = vmatpush.msra.mxu0 %v200
    %248 = vmatpush.msra.mxu0 %v197
    %249 = vmatpush.msra.mxu0 %v194
    %250 = vmatpush.msra.mxu0 %v191
    %251 = vmatpush.msra.mxu0 %v188
    %252 = vmatpush.msra.mxu0 %v185
    %253 = vmatpush.msra.mxu0 %v182
    %254 = vmatmul.f32.gmra.mxu0 %v174
    %v255 = vpop.f32.mrf.mxu0
    %v256 = vadd.f32 %v232, %v255
    %257 = vmatmul.f32.gmra.mxu0 %v175
    %v258 = vpop.f32.mrf.mxu0
    %v259 = vadd.f32 %v232, %v258
    %260 = vmatmul.f32.gmra.mxu0 %v176
    %v261 = vpop.f32.mrf.mxu0
    %v262 = vadd.f32 %v232, %v261
    %263 = vmatmul.f32.gmra.mxu0 %v177
    %v264 = vpop.f32.mrf.mxu0
    %v265 = vadd.f32 %v232, %v264
    %266 = vmatmul.f32.gmra.mxu0 %v178
    %v267 = vpop.f32.mrf.mxu0
    %v268 = vadd.f32 %v232, %v267
    %269 = vmatmul.f32.gmra.mxu0 %v179
    %v270 = vpop.f32.mrf.mxu0
    %v271 = vadd.f32 %v232, %v270
    %272 = vmatmul.f32.gmra.mxu0 %v180
    %v273 = vpop.f32.mrf.mxu0
    %v274 = vadd.f32 %v232, %v273
    %275 = vmatmul.f32.gmra.mxu0 %v181
    %v276 = vpop.f32.mrf.mxu0
    %v277 = vadd.f32 %v232, %v276
    %278 = vdwg.mxu0
    %279 = vmatpush.msra.mxu0 %v228
    %280 = vmatpush.msra.mxu0 %v225
    %281 = vmatpush.msra.mxu0 %v222
    %282 = vmatpush.msra.mxu0 %v219
    %283 = vmatpush.msra.mxu0 %v216
    %284 = vmatpush.msra.mxu0 %v213
    %285 = vmatpush.msra.mxu0 %v210
    %286 = vmatpush.msra.mxu0 %v207
    %287 = vmatpush.msra.mxu0 %v204
    %288 = vmatpush.msra.mxu0 %v201
    %289 = vmatpush.msra.mxu0 %v198
    %290 = vmatpush.msra.mxu0 %v195
    %291 = vmatpush.msra.mxu0 %v192
    %292 = vmatpush.msra.mxu0 %v189
    %293 = vmatpush.msra.mxu0 %v186
    %294 = vmatpush.msra.mxu0 %v183
    %295 = vmatmul.f32.gmra.mxu0 %v174
    %v296 = vpop.f32.mrf.mxu0
    %v297 = vadd.f32 %v233, %v296
    %298 = vmatmul.f32.gmra.mxu0 %v175
    %v299 = vpop.f32.mrf.mxu0
    %v300 = vadd.f32 %v233, %v299
    %301 = vmatmul.f32.gmra.mxu0 %v176
    %v302 = vpop.f32.mrf.mxu0
    %v303 = vadd.f32 %v233, %v302
    %304 = vmatmul.f32.gmra.mxu0 %v177
    %v305 = vpop.f32.mrf.mxu0
    %v306 = vadd.f32 %v233, %v305
    %307 = vmatmul.f32.gmra.mxu0 %v178
    %v308 = vpop.f32.mrf.mxu0
    %v309 = vadd.f32 %v233, %v308
    %310 = vmatmul.f32.gmra.mxu0 %v179
    %v311 = vpop.f32.mrf.mxu0
    %v312 = vadd.f32 %v233, %v311
    %313 = vmatmul.f32.gmra.mxu0 %v180
    %v314 = vpop.f32.mrf.mxu0
    %v315 = vadd.f32 %v233, %v314
    %316 = vmatmul.f32.gmra.mxu0 %v181
    %v317 = vpop.f32.mrf.mxu0
    %v318 = vadd.f32 %v233, %v317
    %319 = vdwg.mxu0
    %320 = vmatpush.msra.mxu0 %v229
    %321 = vmatpush.msra.mxu0 %v226
    %322 = vmatpush.msra.mxu0 %v223
    %323 = vmatpush.msra.mxu0 %v220
    %324 = vmatpush.msra.mxu0 %v217
    %325 = vmatpush.msra.mxu0 %v214
    %326 = vmatpush.msra.mxu0 %v211
    %327 = vmatpush.msra.mxu0 %v208
    %328 = vmatpush.msra.mxu0 %v205
    %329 = vmatpush.msra.mxu0 %v202
    %330 = vmatpush.msra.mxu0 %v199
    %331 = vmatpush.msra.mxu0 %v196
    %332 = vmatpush.msra.mxu0 %v193
    %333 = vmatpush.msra.mxu0 %v190
    %334 = vmatpush.msra.mxu0 %v187
    %335 = vmatpush.msra.mxu0 %v184
    %336 = vmatmul.f32.gmra.mxu0 %v174
    %v337 = vpop.f32.mrf.mxu0
    %v338 = vadd.f32 %v234, %v337
    %339 = vmatmul.f32.gmra.mxu0 %v175
    %v340 = vpop.f32.mrf.mxu0
    %v341 = vadd.f32 %v234, %v340
    %342 = vmatmul.f32.gmra.mxu0 %v176
    %v343 = vpop.f32.mrf.mxu0
    %v344 = vadd.f32 %v234, %v343
    %345 = vmatmul.f32.gmra.mxu0 %v177
    %v346 = vpop.f32.mrf.mxu0
    %v347 = vadd.f32 %v234, %v346
    %348 = vmatmul.f32.gmra.mxu0 %v178
    %v349 = vpop.f32.mrf.mxu0
    %v350 = vadd.f32 %v234, %v349
    %351 = vmatmul.f32.gmra.mxu0 %v179
    %v352 = vpop.f32.mrf.mxu0
    %v353 = vadd.f32 %v234, %v352
    %354 = vmatmul.f32.gmra.mxu0 %v180
    %v355 = vpop.f32.mrf.mxu0
    %v356 = vadd.f32 %v234, %v355
    %357 = vmatmul.f32.gmra.mxu0 %v181
    %v358 = vpop.f32.mrf.mxu0
    %v359 = vadd.f32 %v234, %v358
    %360 = vdwg.mxu0
    %361 = vst [vmem:[#allocation2] sm:$0xff] %v256
    %362 = vst [vmem:[#allocation2 + $0x8] sm:$0xff] %v297
    %363 = vst [vmem:[#allocation2 + $0x10] sm:$0xff] %v338
    %364 = vst [vmem:[#allocation2 + $0x18] sm:$0xff] %v259
    %365 = vst [vmem:[#allocation2 + $0x20] sm:$0xff] %v300
    %366 = vst [vmem:[#allocation2 + $0x28] sm:$0xff] %v341
    %367 = vst [vmem:[#allocation2 + $0x30] sm:$0xff] %v262
    %368 = vst [vmem:[#allocation2 + $0x38] sm:$0xff] %v303
    %369 = vst [vmem:[#allocation2 + $0x40] sm:$0xff] %v344
    %370 = vst [vmem:[#allocation2 + $0x48] sm:$0xff] %v265
    %371 = vst [vmem:[#allocation2 + $0x50] sm:$0xff] %v306
    %372 = vst [vmem:[#allocation2 + $0x58] sm:$0xff] %v347
    %373 = vst [vmem:[#allocation2 + $0x60] sm:$0xff] %v268
    %374 = vst [vmem:[#allocation2 + $0x68] sm:$0xff] %v309
    %375 = vst [vmem:[#allocation2 + $0x70] sm:$0xff] %v350
    %376 = vst [vmem:[#allocation2 + $0x78] sm:$0xff] %v271
    %377 = vst [vmem:[#allocation2 + $0x80] sm:$0xff] %v312
    %378 = vst [vmem:[#allocation2 + $0x88] sm:$0xff] %v353
    %379 = vst [vmem:[#allocation2 + $0x90] sm:$0xff] %v274
    %380 = vst [vmem:[#allocation2 + $0x98] sm:$0xff] %v315
    %381 = vst [vmem:[#allocation2 + $0xa0] sm:$0xff] %v356
    %382 = vst [vmem:[#allocation2 + $0xa8] sm:$0xff] %v277
    %383 = vst [vmem:[#allocation2 + $0xb0] sm:$0xff] %v318
    %384 = vst [vmem:[#allocation2 + $0xb8] sm:$0xff] %v359
    %s385 = smul.u32 0, 3
    %s386 = smul.addr %s385, 8
    %s387 = scalar_lea.vmem [#allocation2], %s386
    %v388 = vld [vmem:[%s387] sm:$0xff]
    %v389 = vld [vmem:[%s387 + $0x8] sm:$0xff]
    %v390 = vld [vmem:[%s387 + $0x10] sm:$0xff]
    %391 = vmatpush.msra.mxu0 %v167
    %392 = vmatpush.msra.mxu0 %v164
    %393 = vmatpush.msra.mxu0 %v161
    %394 = vmatpush.msra.mxu0 %v158
    %395 = vmatpush.msra.mxu0 %v155
    %396 = vmatpush.msra.mxu0 %v152
    %397 = vmatpush.msra.mxu0 %v149
    %398 = vmatpush.msra.mxu0 %v146
    %399 = vmatpush.msra.mxu0 %v143
    %400 = vmatpush.msra.mxu0 %v140
    %401 = vmatpush.msra.mxu0 %v137
    %402 = vmatpush.msra.mxu0 %v134
    %403 = vmatpush.msra.mxu0 %v131
    %404 = vmatpush.msra.mxu0 %v128
    %405 = vmatpush.msra.mxu0 %v125
    %406 = vmatpush.msra.mxu0 %v122
    %407 = vmatmul.f32.gmra.mxu0 0.0
    %v408 = vpop.f32.mrf.mxu0
    %v409 = vadd.f32 0.0, %v408
    %410 = vdwg.mxu0
    %411 = vmatpush.msra.mxu0 %v168
    %412 = vmatpush.msra.mxu0 %v165
    %413 = vmatpush.msra.mxu0 %v162
    %414 = vmatpush.msra.mxu0 %v159
    %415 = vmatpush.msra.mxu0 %v156
    %416 = vmatpush.msra.mxu0 %v153
    %417 = vmatpush.msra.mxu0 %v150
    %418 = vmatpush.msra.mxu0 %v147
    %419 = vmatpush.msra.mxu0 %v144
    %420 = vmatpush.msra.mxu0 %v141
    %421 = vmatpush.msra.mxu0 %v138
    %422 = vmatpush.msra.mxu0 %v135
    %423 = vmatpush.msra.mxu0 %v132
    %424 = vmatpush.msra.mxu0 %v129
    %425 = vmatpush.msra.mxu0 %v126
    %426 = vmatpush.msra.mxu0 %v123
    %427 = vmatmul.f32.gmra.mxu0 0.0
    %v428 = vpop.f32.mrf.mxu0
    %v429 = vadd.f32 0.0, %v428
    %430 = vdwg.mxu0
    %431 = vmatpush.msra.mxu0 %v169
    %432 = vmatpush.msra.mxu0 %v166
    %433 = vmatpush.msra.mxu0 %v163
    %434 = vmatpush.msra.mxu0 %v160
    %435 = vmatpush.msra.mxu0 %v157
    %436 = vmatpush.msra.mxu0 %v154
    %437 = vmatpush.msra.mxu0 %v151
    %438 = vmatpush.msra.mxu0 %v148
    %439 = vmatpush.msra.mxu0 %v145
    %440 = vmatpush.msra.mxu0 %v142
    %441 = vmatpush.msra.mxu0 %v139
    %442 = vmatpush.msra.mxu0 %v136
    %443 = vmatpush.msra.mxu0 %v133
    %444 = vmatpush.msra.mxu0 %v130
    %445 = vmatpush.msra.mxu0 %v127
    %446 = vmatpush.msra.mxu0 %v124
    %447 = vmatmul.f32.gmra.mxu0 0.0
    %v448 = vpop.f32.mrf.mxu0
    %v449 = vadd.f32 0.0, %v448
    %450 = vdwg.mxu0
    %v451 = vadd.f32 %v388, %v409
    %v452 = vadd.f32 %v389, %v429
    %v453 = vxor.u32 %v451, 2147483648
    %v454 = vxor.u32 %v452, 2147483648
    %v455 = vmul.f32 %v453, 1.442695
    %v456 = vpow.pop %v455
    %v457 = vmul.f32 %v454, 1.442695
    %v458 = vpow.pop %v457
    %v459 = vadd.f32 %v456, 1.0
    %v460 = vadd.f32 %v458, 1.0
    %v461 = vrcp.pop %v459
    %v462 = vmul.f32 %v459, %v461
    %v463 = vsub.f32 1.0, %v462
    %v464 = vmul.f32 %v461, %v463
    %v465 = vadd.f32 %v461, %v464
    %vm466 = vweird.f32 %v459
    %vm467 = vweird.f32 %v461
    %vm468 = vmor %vm466, %vm467
    %v469 = vsel %vm468, %v461, %v465
    %v470 = vand.u32 2147483647, %v459
    %vm471 = vcmp.eq.f32.partialorder %v470, 8.507059e+37
    %v472 = vand.u32 %v459, 2147483648
    %v473 = vor.u32 1.1754944e-38, %v472
    %v474 = vsel %vm471, %v473, %v469
    %v475 = vmul.f32 1.0, %v474
    %v476 = vrcp.pop %v460
    %v477 = vmul.f32 %v460, %v476
    %v478 = vsub.f32 1.0, %v477
    %v479 = vmul.f32 %v476, %v478
    %v480 = vadd.f32 %v476, %v479
    %vm481 = vweird.f32 %v460
    %vm482 = vweird.f32 %v476
    %vm483 = vmor %vm481, %vm482
    %v484 = vsel %vm483, %v476, %v480
    %v485 = vand.u32 2147483647, %v460
    %vm486 = vcmp.eq.f32.partialorder %v485, 8.507059e+37
    %v487 = vand.u32 %v460, 2147483648
    %v488 = vor.u32 1.1754944e-38, %v487
    %v489 = vsel %vm486, %v488, %v484
    %v490 = vmul.f32 1.0, %v489
    %v491 = vadd.f32 %v449, %v172
    %v492 = vmul.f32 %v475, %v491
    %v493 = vadd.f32 %v390, %v492
    %v494 = vtanh.pop %v493
    %v495 = vsub.f32 1.0, %v490
    %v496 = vmul.f32 %v495, %v494
    %v497 = vmul.f32 %v490, 0.0
    %v498 = vadd.f32 %v496, %v497
    %499 = vst [vmem:[#allocation3] sm:$0xff] %v498
    %s500 = smul.u32 1, 3
    %s501 = smul.addr %s500, 8
    %s502 = scalar_lea.vmem [#allocation2], %s501
    %v503 = vld [vmem:[%s502] sm:$0xff]
    %v504 = vld [vmem:[%s502 + $0x8] sm:$0xff]
    %v505 = vld [vmem:[%s502 + $0x10] sm:$0xff]
    %506 = vmatpush.msra.mxu0 %v167
    %507 = vmatpush.msra.mxu0 %v164
    %508 = vmatpush.msra.mxu0 %v161
    %509 = vmatpush.msra.mxu0 %v158
    %510 = vmatpush.msra.mxu0 %v155
    %511 = vmatpush.msra.mxu0 %v152
    %512 = vmatpush.msra.mxu0 %v149
    %513 = vmatpush.msra.mxu0 %v146
    %514 = vmatpush.msra.mxu0 %v143
    %515 = vmatpush.msra.mxu0 %v140
    %516 = vmatpush.msra.mxu0 %v137
    %517 = vmatpush.msra.mxu0 %v134
    %518 = vmatpush.msra.mxu0 %v131
    %519 = vmatpush.msra.mxu0 %v128
    %520 = vmatpush.msra.mxu0 %v125
    %521 = vmatpush.msra.mxu0 %v122
    %522 = vmatmul.f32.gmra.mxu0 %v498
    %v523 = vpop.f32.mrf.mxu0
    %v524 = vadd.f32 0.0, %v523
    %525 = vdwg.mxu0
    %526 = vmatpush.msra.mxu0 %v168
    %527 = vmatpush.msra.mxu0 %v165
    %528 = vmatpush.msra.mxu0 %v162
    %529 = vmatpush.msra.mxu0 %v159
    %530 = vmatpush.msra.mxu0 %v156
    %531 = vmatpush.msra.mxu0 %v153
    %532 = vmatpush.msra.mxu0 %v150
    %533 = vmatpush.msra.mxu0 %v147
    %534 = vmatpush.msra.mxu0 %v144
    %535 = vmatpush.msra.mxu0 %v141
    %536 = vmatpush.msra.mxu0 %v138
    %537 = vmatpush.msra.mxu0 %v135
    %538 = vmatpush.msra.mxu0 %v132
    %539 = vmatpush.msra.mxu0 %v129
    %540 = vmatpush.msra.mxu0 %v126
    %541 = vmatpush.msra.mxu0 %v123
    %542 = vmatmul.f32.gmra.mxu0 %v498
    %v543 = vpop.f32.mrf.mxu0
    %v544 = vadd.f32 0.0, %v543
    %545 = vdwg.mxu0
    %546 = vmatpush.msra.mxu0 %v169
    %547 = vmatpush.msra.mxu0 %v166
    %548 = vmatpush.msra.mxu0 %v163
    %549 = vmatpush.msra.mxu0 %v160
    %550 = vmatpush.msra.mxu0 %v157
    %551 = vmatpush.msra.mxu0 %v154
    %552 = vmatpush.msra.mxu0 %v151
    %553 = vmatpush.msra.mxu0 %v148
    %554 = vmatpush.msra.mxu0 %v145
    %555 = vmatpush.msra.mxu0 %v142
    %556 = vmatpush.msra.mxu0 %v139
    %557 = vmatpush.msra.mxu0 %v136
    %558 = vmatpush.msra.mxu0 %v133
    %559 = vmatpush.msra.mxu0 %v130
    %560 = vmatpush.msra.mxu0 %v127
    %561 = vmatpush.msra.mxu0 %v124
    %562 = vmatmul.f32.gmra.mxu0 %v498
    %v563 = vpop.f32.mrf.mxu0
    %v564 = vadd.f32 0.0, %v563
    %565 = vdwg.mxu0
    %v566 = vadd.f32 %v503, %v524
    %v567 = vadd.f32 %v504, %v544
    %v568 = vxor.u32 %v566, 2147483648
    %v569 = vxor.u32 %v567, 2147483648
    %v570 = vmul.f32 %v568, 1.442695
    %v571 = vpow.pop %v570
    %v572 = vmul.f32 %v569, 1.442695
    %v573 = vpow.pop %v572
    %v574 = vadd.f32 %v571, 1.0
    %v575 = vadd.f32 %v573, 1.0
    %v576 = vrcp.pop %v574
    %v577 = vmul.f32 %v574, %v576
    %v578 = vsub.f32 1.0, %v577
    %v579 = vmul.f32 %v576, %v578
    %v580 = vadd.f32 %v576, %v579
    %vm581 = vweird.f32 %v574
    %vm582 = vweird.f32 %v576
    %vm583 = vmor %vm581, %vm582
    %v584 = vsel %vm583, %v576, %v580
    %v585 = vand.u32 2147483647, %v574
    %vm586 = vcmp.eq.f32.partialorder %v585, 8.507059e+37
    %v587 = vand.u32 %v574, 2147483648
    %v588 = vor.u32 1.1754944e-38, %v587
    %v589 = vsel %vm586, %v588, %v584
    %v590 = vmul.f32 1.0, %v589
    %v591 = vrcp.pop %v575
    %v592 = vmul.f32 %v575, %v591
    %v593 = vsub.f32 1.0, %v592
    %v594 = vmul.f32 %v591, %v593
    %v595 = vadd.f32 %v591, %v594
    %vm596 = vweird.f32 %v575
    %vm597 = vweird.f32 %v591
    %vm598 = vmor %vm596, %vm597
    %v599 = vsel %vm598, %v591, %v595
    %v600 = vand.u32 2147483647, %v575
    %vm601 = vcmp.eq.f32.partialorder %v600, 8.507059e+37
    %v602 = vand.u32 %v575, 2147483648
    %v603 = vor.u32 1.1754944e-38, %v602
    %v604 = vsel %vm601, %v603, %v599
    %v605 = vmul.f32 1.0, %v604
    %v606 = vadd.f32 %v564, %v172
    %v607 = vmul.f32 %v590, %v606
    %v608 = vadd.f32 %v505, %v607
    %v609 = vtanh.pop %v608
    %v610 = vsub.f32 1.0, %v605
    %v611 = vmul.f32 %v610, %v609
    %v612 = vmul.f32 %v605, %v498
    %v613 = vadd.f32 %v611, %v612
    %s614 = scalar_lea.vmem [#allocation3], 8
    %615 = vst [vmem:[%s614] sm:$0xff] %v613
    %s616 = smul.u32 2, 3
    %s617 = smul.addr %s616, 8
    %s618 = scalar_lea.vmem [#allocation2], %s617
    %v619 = vld [vmem:[%s618] sm:$0xff]
    %v620 = vld [vmem:[%s618 + $0x8] sm:$0xff]
    %v621 = vld [vmem:[%s618 + $0x10] sm:$0xff]
    %622 = vmatpush.msra.mxu0 %v167
    %623 = vmatpush.msra.mxu0 %v164
    %624 = vmatpush.msra.mxu0 %v161
    %625 = vmatpush.msra.mxu0 %v158
    %626 = vmatpush.msra.mxu0 %v155
    %627 = vmatpush.msra.mxu0 %v152
    %628 = vmatpush.msra.mxu0 %v149
    %629 = vmatpush.msra.mxu0 %v146
    %630 = vmatpush.msra.mxu0 %v143
    %631 = vmatpush.msra.mxu0 %v140
    %632 = vmatpush.msra.mxu0 %v137
    %633 = vmatpush.msra.mxu0 %v134
    %634 = vmatpush.msra.mxu0 %v131
    %635 = vmatpush.msra.mxu0 %v128
    %636 = vmatpush.msra.mxu0 %v125
    %637 = vmatpush.msra.mxu0 %v122
    %638 = vmatmul.f32.gmra.mxu0 %v613
    %v639 = vpop.f32.mrf.mxu0
    %v640 = vadd.f32 0.0, %v639
    %641 = vdwg.mxu0
    %642 = vmatpush.msra.mxu0 %v168
    %643 = vmatpush.msra.mxu0 %v165
    %644 = vmatpush.msra.mxu0 %v162
    %645 = vmatpush.msra.mxu0 %v159
    %646 = vmatpush.msra.mxu0 %v156
    %647 = vmatpush.msra.mxu0 %v153
    %648 = vmatpush.msra.mxu0 %v150
    %649 = vmatpush.msra.mxu0 %v147
    %650 = vmatpush.msra.mxu0 %v144
    %651 = vmatpush.msra.mxu0 %v141
    %652 = vmatpush.msra.mxu0 %v138
    %653 = vmatpush.msra.mxu0 %v135
    %654 = vmatpush.msra.mxu0 %v132
    %655 = vmatpush.msra.mxu0 %v129
    %656 = vmatpush.msra.mxu0 %v126
    %657 = vmatpush.msra.mxu0 %v123
    %658 = vmatmul.f32.gmra.mxu0 %v613
    %v659 = vpop.f32.mrf.mxu0
    %v660 = vadd.f32 0.0, %v659
    %661 = vdwg.mxu0
    %662 = vmatpush.msra.mxu0 %v169
    %663 = vmatpush.msra.mxu0 %v166
    %664 = vmatpush.msra.mxu0 %v163
    %665 = vmatpush.msra.mxu0 %v160
    %666 = vmatpush.msra.mxu0 %v157
    %667 = vmatpush.msra.mxu0 %v154
    %668 = vmatpush.msra.mxu0 %v151
    %669 = vmatpush.msra.mxu0 %v148
    %670 = vmatpush.msra.mxu0 %v145
    %671 = vmatpush.msra.mxu0 %v142
    %672 = vmatpush.msra.mxu0 %v139
    %673 = vmatpush.msra.mxu0 %v136
    %674 = vmatpush.msra.mxu0 %v133
    %675 = vmatpush.msra.mxu0 %v130
    %676 = vmatpush.msra.mxu0 %v127
    %677 = vmatpush.msra.mxu0 %v124
    %678 = vmatmul.f32.gmra.mxu0 %v613
    %v679 = vpop.f32.mrf.mxu0
    %v680 = vadd.f32 0.0, %v679
    %681 = vdwg.mxu0
    %v682 = vadd.f32 %v619, %v640
    %v683 = vadd.f32 %v620, %v660
    %v684 = vxor.u32 %v682, 2147483648
    %v685 = vxor.u32 %v683, 2147483648
    %v686 = vmul.f32 %v684, 1.442695
    %v687 = vpow.pop %v686
    %v688 = vmul.f32 %v685, 1.442695
    %v689 = vpow.pop %v688
    %v690 = vadd.f32 %v687, 1.0
    %v691 = vadd.f32 %v689, 1.0
    %v692 = vrcp.pop %v690
    %v693 = vmul.f32 %v690, %v692
    %v694 = vsub.f32 1.0, %v693
    %v695 = vmul.f32 %v692, %v694
    %v696 = vadd.f32 %v692, %v695
    %vm697 = vweird.f32 %v690
    %vm698 = vweird.f32 %v692
    %vm699 = vmor %vm697, %vm698
    %v700 = vsel %vm699, %v692, %v696
    %v701 = vand.u32 2147483647, %v690
    %vm702 = vcmp.eq.f32.partialorder %v701, 8.507059e+37
    %v703 = vand.u32 %v690, 2147483648
    %v704 = vor.u32 1.1754944e-38, %v703
    %v705 = vsel %vm702, %v704, %v700
    %v706 = vmul.f32 1.0, %v705
    %v707 = vrcp.pop %v691
    %v708 = vmul.f32 %v691, %v707
    %v709 = vsub.f32 1.0, %v708
    %v710 = vmul.f32 %v707, %v709
    %v711 = vadd.f32 %v707, %v710
    %vm712 = vweird.f32 %v691
    %vm713 = vweird.f32 %v707
    %vm714 = vmor %vm712, %vm713
    %v715 = vsel %vm714, %v707, %v711
    %v716 = vand.u32 2147483647, %v691
    %vm717 = vcmp.eq.f32.partialorder %v716, 8.507059e+37
    %v718 = vand.u32 %v691, 2147483648
    %v719 = vor.u32 1.1754944e-38, %v718
    %v720 = vsel %vm717, %v719, %v715
    %v721 = vmul.f32 1.0, %v720
    %v722 = vadd.f32 %v680, %v172
    %v723 = vmul.f32 %v706, %v722
    %v724 = vadd.f32 %v621, %v723
    %v725 = vtanh.pop %v724
    %v726 = vsub.f32 1.0, %v721
    %v727 = vmul.f32 %v726, %v725
    %v728 = vmul.f32 %v721, %v613
    %v729 = vadd.f32 %v727, %v728
    %s730 = scalar_lea.vmem [#allocation3], 16
    %731 = vst [vmem:[%s730] sm:$0xff] %v729
    %s732 = smul.u32 3, 3
    %s733 = smul.addr %s732, 8
    %s734 = scalar_lea.vmem [#allocation2], %s733
    %v735 = vld [vmem:[%s734] sm:$0xff]
    %v736 = vld [vmem:[%s734 + $0x8] sm:$0xff]
    %v737 = vld [vmem:[%s734 + $0x10] sm:$0xff]
    %738 = vmatpush.msra.mxu0 %v167
    %739 = vmatpush.msra.mxu0 %v164
    %740 = vmatpush.msra.mxu0 %v161
    %741 = vmatpush.msra.mxu0 %v158
    %742 = vmatpush.msra.mxu0 %v155
    %743 = vmatpush.msra.mxu0 %v152
    %744 = vmatpush.msra.mxu0 %v149
    %745 = vmatpush.msra.mxu0 %v146
    %746 = vmatpush.msra.mxu0 %v143
    %747 = vmatpush.msra.mxu0 %v140
    %748 = vmatpush.msra.mxu0 %v137
    %749 = vmatpush.msra.mxu0 %v134
    %750 = vmatpush.msra.mxu0 %v131
    %751 = vmatpush.msra.mxu0 %v128
    %752 = vmatpush.msra.mxu0 %v125
    %753 = vmatpush.msra.mxu0 %v122
    %754 = vmatmul.f32.gmra.mxu0 %v729
    %v755 = vpop.f32.mrf.mxu0
    %v756 = vadd.f32 0.0, %v755
    %757 = vdwg.mxu0
    %758 = vmatpush.msra.mxu0 %v168
    %759 = vmatpush.msra.mxu0 %v165
    %760 = vmatpush.msra.mxu0 %v162
    %761 = vmatpush.msra.mxu0 %v159
    %762 = vmatpush.msra.mxu0 %v156
    %763 = vmatpush.msra.mxu0 %v153
    %764 = vmatpush.msra.mxu0 %v150
    %765 = vmatpush.msra.mxu0 %v147
    %766 = vmatpush.msra.mxu0 %v144
    %767 = vmatpush.msra.mxu0 %v141
    %768 = vmatpush.msra.mxu0 %v138
    %769 = vmatpush.msra.mxu0 %v135
    %770 = vmatpush.msra.mxu0 %v132
    %771 = vmatpush.msra.mxu0 %v129
    %772 = vmatpush.msra.mxu0 %v126
    %773 = vmatpush.msra.mxu0 %v123
    %774 = vmatmul.f32.gmra.mxu0 %v729
    %v775 = vpop.f32.mrf.mxu0
    %v776 = vadd.f32 0.0, %v775
    %777 = vdwg.mxu0
    %778 = vmatpush.msra.mxu0 %v169
    %779 = vmatpush.msra.mxu0 %v166
    %780 = vmatpush.msra.mxu0 %v163
    %781 = vmatpush.msra.mxu0 %v160
    %782 = vmatpush.msra.mxu0 %v157
    %783 = vmatpush.msra.mxu0 %v154
    %784 = vmatpush.msra.mxu0 %v151
    %785 = vmatpush.msra.mxu0 %v148
    %786 = vmatpush.msra.mxu0 %v145
    %787 = vmatpush.msra.mxu0 %v142
    %788 = vmatpush.msra.mxu0 %v139
    %789 = vmatpush.msra.mxu0 %v136
    %790 = vmatpush.msra.mxu0 %v133
    %791 = vmatpush.msra.mxu0 %v130
    %792 = vmatpush.msra.mxu0 %v127
    %793 = vmatpush.msra.mxu0 %v124
    %794 = vmatmul.f32.gmra.mxu0 %v729
    %v795 = vpop.f32.mrf.mxu0
    %v796 = vadd.f32 0.0, %v795
    %797 = vdwg.mxu0
    %v798 = vadd.f32 %v735, %v756
    %v799 = vadd.f32 %v736, %v776
    %v800 = vxor.u32 %v798, 2147483648
    %v801 = vxor.u32 %v799, 2147483648
    %v802 = vmul.f32 %v800, 1.442695
    %v803 = vpow.pop %v802
    %v804 = vmul.f32 %v801, 1.442695
    %v805 = vpow.pop %v804
    %v806 = vadd.f32 %v803, 1.0
    %v807 = vadd.f32 %v805, 1.0
    %v808 = vrcp.pop %v806
    %v809 = vmul.f32 %v806, %v808
    %v810 = vsub.f32 1.0, %v809
    %v811 = vmul.f32 %v808, %v810
    %v812 = vadd.f32 %v808, %v811
    %vm813 = vweird.f32 %v806
    %vm814 = vweird.f32 %v808
    %vm815 = vmor %vm813, %vm814
    %v816 = vsel %vm815, %v808, %v812
    %v817 = vand.u32 2147483647, %v806
    %vm818 = vcmp.eq.f32.partialorder %v817, 8.507059e+37
    %v819 = vand.u32 %v806, 2147483648
    %v820 = vor.u32 1.1754944e-38, %v819
    %v821 = vsel %vm818, %v820, %v816
    %v822 = vmul.f32 1.0, %v821
    %v823 = vrcp.pop %v807
    %v824 = vmul.f32 %v807, %v823
    %v825 = vsub.f32 1.0, %v824
    %v826 = vmul.f32 %v823, %v825
    %v827 = vadd.f32 %v823, %v826
    %vm828 = vweird.f32 %v807
    %vm829 = vweird.f32 %v823
    %vm830 = vmor %vm828, %vm829
    %v831 = vsel %vm830, %v823, %v827
    %v832 = vand.u32 2147483647, %v807
    %vm833 = vcmp.eq.f32.partialorder %v832, 8.507059e+37
    %v834 = vand.u32 %v807, 2147483648
    %v835 = vor.u32 1.1754944e-38, %v834
    %v836 = vsel %vm833, %v835, %v831
    %v837 = vmul.f32 1.0, %v836
    %v838 = vadd.f32 %v796, %v172
    %v839 = vmul.f32 %v822, %v838
    %v840 = vadd.f32 %v737, %v839
    %v841 = vtanh.pop %v840
    %v842 = vsub.f32 1.0, %v837
    %v843 = vmul.f32 %v842, %v841
    %v844 = vmul.f32 %v837, %v729
    %v845 = vadd.f32 %v843, %v844
    %s846 = scalar_lea.vmem [#allocation3], 24
    %847 = vst [vmem:[%s846] sm:$0xff] %v845
    %s848 = smul.u32 4, 3
    %s849 = smul.addr %s848, 8
    %s850 = scalar_lea.vmem [#allocation2], %s849
    %v851 = vld [vmem:[%s850] sm:$0xff]
    %v852 = vld [vmem:[%s850 + $0x8] sm:$0xff]
    %v853 = vld [vmem:[%s850 + $0x10] sm:$0xff]
    %854 = vmatpush.msra.mxu0 %v167
    %855 = vmatpush.msra.mxu0 %v164
    %856 = vmatpush.msra.mxu0 %v161
    %857 = vmatpush.msra.mxu0 %v158
    %858 = vmatpush.msra.mxu0 %v155
    %859 = vmatpush.msra.mxu0 %v152
    %860 = vmatpush.msra.mxu0 %v149
    %861 = vmatpush.msra.mxu0 %v146
    %862 = vmatpush.msra.mxu0 %v143
    %863 = vmatpush.msra.mxu0 %v140
    %864 = vmatpush.msra.mxu0 %v137
    %865 = vmatpush.msra.mxu0 %v134
    %866 = vmatpush.msra.mxu0 %v131
    %867 = vmatpush.msra.mxu0 %v128
    %868 = vmatpush.msra.mxu0 %v125
    %869 = vmatpush.msra.mxu0 %v122
    %870 = vmatmul.f32.gmra.mxu0 %v845
    %v871 = vpop.f32.mrf.mxu0
    %v872 = vadd.f32 0.0, %v871
    %873 = vdwg.mxu0
    %874 = vmatpush.msra.mxu0 %v168
    %875 = vmatpush.msra.mxu0 %v165
    %876 = vmatpush.msra.mxu0 %v162
    %877 = vmatpush.msra.mxu0 %v159
    %878 = vmatpush.msra.mxu0 %v156
    %879 = vmatpush.msra.mxu0 %v153
    %880 = vmatpush.msra.mxu0 %v150
    %881 = vmatpush.msra.mxu0 %v147
    %882 = vmatpush.msra.mxu0 %v144
    %883 = vmatpush.msra.mxu0 %v141
    %884 = vmatpush.msra.mxu0 %v138
    %885 = vmatpush.msra.mxu0 %v135
    %886 = vmatpush.msra.mxu0 %v132
    %887 = vmatpush.msra.mxu0 %v129
    %888 = vmatpush.msra.mxu0 %v126
    %889 = vmatpush.msra.mxu0 %v123
    %890 = vmatmul.f32.gmra.mxu0 %v845
    %v891 = vpop.f32.mrf.mxu0
    %v892 = vadd.f32 0.0, %v891
    %893 = vdwg.mxu0
    %894 = vmatpush.msra.mxu0 %v169
    %895 = vmatpush.msra.mxu0 %v166
    %896 = vmatpush.msra.mxu0 %v163
    %897 = vmatpush.msra.mxu0 %v160
    %898 = vmatpush.msra.mxu0 %v157
    %899 = vmatpush.msra.mxu0 %v154
    %900 = vmatpush.msra.mxu0 %v151
    %901 = vmatpush.msra.mxu0 %v148
    %902 = vmatpush.msra.mxu0 %v145
    %903 = vmatpush.msra.mxu0 %v142
    %904 = vmatpush.msra.mxu0 %v139
    %905 = vmatpush.msra.mxu0 %v136
    %906 = vmatpush.msra.mxu0 %v133
    %907 = vmatpush.msra.mxu0 %v130
    %908 = vmatpush.msra.mxu0 %v127
    %909 = vmatpush.msra.mxu0 %v124
    %910 = vmatmul.f32.gmra.mxu0 %v845
    %v911 = vpop.f32.mrf.mxu0
    %v912 = vadd.f32 0.0, %v911
    %913 = vdwg.mxu0
    %v914 = vadd.f32 %v851, %v872
    %v915 = vadd.f32 %v852, %v892
    %v916 = vxor.u32 %v914, 2147483648
    %v917 = vxor.u32 %v915, 2147483648
    %v918 = vmul.f32 %v916, 1.442695
    %v919 = vpow.pop %v918
    %v920 = vmul.f32 %v917, 1.442695
    %v921 = vpow.pop %v920
    %v922 = vadd.f32 %v919, 1.0
    %v923 = vadd.f32 %v921, 1.0
    %v924 = vrcp.pop %v922
    %v925 = vmul.f32 %v922, %v924
    %v926 = vsub.f32 1.0, %v925
    %v927 = vmul.f32 %v924, %v926
    %v928 = vadd.f32 %v924, %v927
    %vm929 = vweird.f32 %v922
    %vm930 = vweird.f32 %v924
    %vm931 = vmor %vm929, %vm930
    %v932 = vsel %vm931, %v924, %v928
    %v933 = vand.u32 2147483647, %v922
    %vm934 = vcmp.eq.f32.partialorder %v933, 8.507059e+37
    %v935 = vand.u32 %v922, 2147483648
    %v936 = vor.u32 1.1754944e-38, %v935
    %v937 = vsel %vm934, %v936, %v932
    %v938 = vmul.f32 1.0, %v937
    %v939 = vrcp.pop %v923
    %v940 = vmul.f32 %v923, %v939
    %v941 = vsub.f32 1.0, %v940
    %v942 = vmul.f32 %v939, %v941
    %v943 = vadd.f32 %v939, %v942
    %vm944 = vweird.f32 %v923
    %vm945 = vweird.f32 %v939
    %vm946 = vmor %vm944, %vm945
    %v947 = vsel %vm946, %v939, %v943
    %v948 = vand.u32 2147483647, %v923
    %vm949 = vcmp.eq.f32.partialorder %v948, 8.507059e+37
    %v950 = vand.u32 %v923, 2147483648
    %v951 = vor.u32 1.1754944e-38, %v950
    %v952 = vsel %vm949, %v951, %v947
    %v953 = vmul.f32 1.0, %v952
    %v954 = vadd.f32 %v912, %v172
    %v955 = vmul.f32 %v938, %v954
    %v956 = vadd.f32 %v853, %v955
    %v957 = vtanh.pop %v956
    %v958 = vsub.f32 1.0, %v953
    %v959 = vmul.f32 %v958, %v957
    %v960 = vmul.f32 %v953, %v845
    %v961 = vadd.f32 %v959, %v960
    %s962 = scalar_lea.vmem [#allocation3], 32
    %963 = vst [vmem:[%s962] sm:$0xff] %v961
    %s964 = smul.u32 5, 3
    %s965 = smul.addr %s964, 8
    %s966 = scalar_lea.vmem [#allocation2], %s965
    %v967 = vld [vmem:[%s966] sm:$0xff]
    %v968 = vld [vmem:[%s966 + $0x8] sm:$0xff]
    %v969 = vld [vmem:[%s966 + $0x10] sm:$0xff]
    %970 = vmatpush.msra.mxu0 %v167
    %971 = vmatpush.msra.mxu0 %v164
    %972 = vmatpush.msra.mxu0 %v161
    %973 = vmatpush.msra.mxu0 %v158
    %974 = vmatpush.msra.mxu0 %v155
    %975 = vmatpush.msra.mxu0 %v152
    %976 = vmatpush.msra.mxu0 %v149
    %977 = vmatpush.msra.mxu0 %v146
    %978 = vmatpush.msra.mxu0 %v143
    %979 = vmatpush.msra.mxu0 %v140
    %980 = vmatpush.msra.mxu0 %v137
    %981 = vmatpush.msra.mxu0 %v134
    %982 = vmatpush.msra.mxu0 %v131
    %983 = vmatpush.msra.mxu0 %v128
    %984 = vmatpush.msra.mxu0 %v125
    %985 = vmatpush.msra.mxu0 %v122
    %986 = vmatmul.f32.gmra.mxu0 %v961
    %v987 = vpop.f32.mrf.mxu0
    %v988 = vadd.f32 0.0, %v987
    %989 = vdwg.mxu0
    %990 = vmatpush.msra.mxu0 %v168
    %991 = vmatpush.msra.mxu0 %v165
    %992 = vmatpush.msra.mxu0 %v162
    %993 = vmatpush.msra.mxu0 %v159
    %994 = vmatpush.msra.mxu0 %v156
    %995 = vmatpush.msra.mxu0 %v153
    %996 = vmatpush.msra.mxu0 %v150
    %997 = vmatpush.msra.mxu0 %v147
    %998 = vmatpush.msra.mxu0 %v144
    %999 = vmatpush.msra.mxu0 %v141
    %1000 = vmatpush.msra.mxu0 %v138
    %1001 = vmatpush.msra.mxu0 %v135
    %1002 = vmatpush.msra.mxu0 %v132
    %1003 = vmatpush.msra.mxu0 %v129
    %1004 = vmatpush.msra.mxu0 %v126
    %1005 = vmatpush.msra.mxu0 %v123
    %1006 = vmatmul.f32.gmra.mxu0 %v961
    %v1007 = vpop.f32.mrf.mxu0
    %v1008 = vadd.f32 0.0, %v1007
    %1009 = vdwg.mxu0
    %1010 = vmatpush.msra.mxu0 %v169
    %1011 = vmatpush.msra.mxu0 %v166
    %1012 = vmatpush.msra.mxu0 %v163
    %1013 = vmatpush.msra.mxu0 %v160
    %1014 = vmatpush.msra.mxu0 %v157
    %1015 = vmatpush.msra.mxu0 %v154
    %1016 = vmatpush.msra.mxu0 %v151
    %1017 = vmatpush.msra.mxu0 %v148
    %1018 = vmatpush.msra.mxu0 %v145
    %1019 = vmatpush.msra.mxu0 %v142
    %1020 = vmatpush.msra.mxu0 %v139
    %1021 = vmatpush.msra.mxu0 %v136
    %1022 = vmatpush.msra.mxu0 %v133
    %1023 = vmatpush.msra.mxu0 %v130
    %1024 = vmatpush.msra.mxu0 %v127
    %1025 = vmatpush.msra.mxu0 %v124
    %1026 = vmatmul.f32.gmra.mxu0 %v961
    %v1027 = vpop.f32.mrf.mxu0
    %v1028 = vadd.f32 0.0, %v1027
    %1029 = vdwg.mxu0
    %v1030 = vadd.f32 %v967, %v988
    %v1031 = vadd.f32 %v968, %v1008
    %v1032 = vxor.u32 %v1030, 2147483648
    %v1033 = vxor.u32 %v1031, 2147483648
    %v1034 = vmul.f32 %v1032, 1.442695
    %v1035 = vpow.pop %v1034
    %v1036 = vmul.f32 %v1033, 1.442695
    %v1037 = vpow.pop %v1036
    %v1038 = vadd.f32 %v1035, 1.0
    %v1039 = vadd.f32 %v1037, 1.0
    %v1040 = vrcp.pop %v1038
    %v1041 = vmul.f32 %v1038, %v1040
    %v1042 = vsub.f32 1.0, %v1041
    %v1043 = vmul.f32 %v1040, %v1042
    %v1044 = vadd.f32 %v1040, %v1043
    %vm1045 = vweird.f32 %v1038
    %vm1046 = vweird.f32 %v1040
    %vm1047 = vmor %vm1045, %vm1046
    %v1048 = vsel %vm1047, %v1040, %v1044
    %v1049 = vand.u32 2147483647, %v1038
    %vm1050 = vcmp.eq.f32.partialorder %v1049, 8.507059e+37
    %v1051 = vand.u32 %v1038, 2147483648
    %v1052 = vor.u32 1.1754944e-38, %v1051
    %v1053 = vsel %vm1050, %v1052, %v1048
    %v1054 = vmul.f32 1.0, %v1053
    %v1055 = vrcp.pop %v1039
    %v1056 = vmul.f32 %v1039, %v1055
    %v1057 = vsub.f32 1.0, %v1056
    %v1058 = vmul.f32 %v1055, %v1057
    %v1059 = vadd.f32 %v1055, %v1058
    %vm1060 = vweird.f32 %v1039
    %vm1061 = vweird.f32 %v1055
    %vm1062 = vmor %vm1060, %vm1061
    %v1063 = vsel %vm1062, %v1055, %v1059
    %v1064 = vand.u32 2147483647, %v1039
    %vm1065 = vcmp.eq.f32.partialorder %v1064, 8.507059e+37
    %v1066 = vand.u32 %v1039, 2147483648
    %v1067 = vor.u32 1.1754944e-38, %v1066
    %v1068 = vsel %vm1065, %v1067, %v1063
    %v1069 = vmul.f32 1.0, %v1068
    %v1070 = vadd.f32 %v1028, %v172
    %v1071 = vmul.f32 %v1054, %v1070
    %v1072 = vadd.f32 %v969, %v1071
    %v1073 = vtanh.pop %v1072
    %v1074 = vsub.f32 1.0, %v1069
    %v1075 = vmul.f32 %v1074, %v1073
    %v1076 = vmul.f32 %v1069, %v961
    %v1077 = vadd.f32 %v1075, %v1076
    %s1078 = scalar_lea.vmem [#allocation3], 40
    %1079 = vst [vmem:[%s1078] sm:$0xff] %v1077
    %s1080 = smul.u32 6, 3
    %s1081 = smul.addr %s1080, 8
    %s1082 = scalar_lea.vmem [#allocation2], %s1081
    %v1083 = vld [vmem:[%s1082] sm:$0xff]
    %v1084 = vld [vmem:[%s1082 + $0x8] sm:$0xff]
    %v1085 = vld [vmem:[%s1082 + $0x10] sm:$0xff]
    %1086 = vmatpush.msra.mxu0 %v167
    %1087 = vmatpush.msra.mxu0 %v164
    %1088 = vmatpush.msra.mxu0 %v161
    %1089 = vmatpush.msra.mxu0 %v158
    %1090 = vmatpush.msra.mxu0 %v155
    %1091 = vmatpush.msra.mxu0 %v152
    %1092 = vmatpush.msra.mxu0 %v149
    %1093 = vmatpush.msra.mxu0 %v146
    %1094 = vmatpush.msra.mxu0 %v143
    %1095 = vmatpush.msra.mxu0 %v140
    %1096 = vmatpush.msra.mxu0 %v137
    %1097 = vmatpush.msra.mxu0 %v134
    %1098 = vmatpush.msra.mxu0 %v131
    %1099 = vmatpush.msra.mxu0 %v128
    %1100 = vmatpush.msra.mxu0 %v125
    %1101 = vmatpush.msra.mxu0 %v122
    %1102 = vmatmul.f32.gmra.mxu0 %v1077
    %v1103 = vpop.f32.mrf.mxu0
    %v1104 = vadd.f32 0.0, %v1103
    %1105 = vdwg.mxu0
    %1106 = vmatpush.msra.mxu0 %v168
    %1107 = vmatpush.msra.mxu0 %v165
    %1108 = vmatpush.msra.mxu0 %v162
    %1109 = vmatpush.msra.mxu0 %v159
    %1110 = vmatpush.msra.mxu0 %v156
    %1111 = vmatpush.msra.mxu0 %v153
    %1112 = vmatpush.msra.mxu0 %v150
    %1113 = vmatpush.msra.mxu0 %v147
    %1114 = vmatpush.msra.mxu0 %v144
    %1115 = vmatpush.msra.mxu0 %v141
    %1116 = vmatpush.msra.mxu0 %v138
    %1117 = vmatpush.msra.mxu0 %v135
    %1118 = vmatpush.msra.mxu0 %v132
    %1119 = vmatpush.msra.mxu0 %v129
    %1120 = vmatpush.msra.mxu0 %v126
    %1121 = vmatpush.msra.mxu0 %v123
    %1122 = vmatmul.f32.gmra.mxu0 %v1077
    %v1123 = vpop.f32.mrf.mxu0
    %v1124 = vadd.f32 0.0, %v1123
    %1125 = vdwg.mxu0
    %1126 = vmatpush.msra.mxu0 %v169
    %1127 = vmatpush.msra.mxu0 %v166
    %1128 = vmatpush.msra.mxu0 %v163
    %1129 = vmatpush.msra.mxu0 %v160
    %1130 = vmatpush.msra.mxu0 %v157
    %1131 = vmatpush.msra.mxu0 %v154
    %1132 = vmatpush.msra.mxu0 %v151
    %1133 = vmatpush.msra.mxu0 %v148
    %1134 = vmatpush.msra.mxu0 %v145
    %1135 = vmatpush.msra.mxu0 %v142
    %1136 = vmatpush.msra.mxu0 %v139
    %1137 = vmatpush.msra.mxu0 %v136
    %1138 = vmatpush.msra.mxu0 %v133
    %1139 = vmatpush.msra.mxu0 %v130
    %1140 = vmatpush.msra.mxu0 %v127
    %1141 = vmatpush.msra.mxu0 %v124
    %1142 = vmatmul.f32.gmra.mxu0 %v1077
    %v1143 = vpop.f32.mrf.mxu0
    %v1144 = vadd.f32 0.0, %v1143
    %1145 = vdwg.mxu0
    %v1146 = vadd.f32 %v1083, %v1104
    %v1147 = vadd.f32 %v1084, %v1124
    %v1148 = vxor.u32 %v1146, 2147483648
    %v1149 = vxor.u32 %v1147, 2147483648
    %v1150 = vmul.f32 %v1148, 1.442695
    %v1151 = vpow.pop %v1150
    %v1152 = vmul.f32 %v1149, 1.442695
    %v1153 = vpow.pop %v1152
    %v1154 = vadd.f32 %v1151, 1.0
    %v1155 = vadd.f32 %v1153, 1.0
    %v1156 = vrcp.pop %v1154
    %v1157 = vmul.f32 %v1154, %v1156
    %v1158 = vsub.f32 1.0, %v1157
    %v1159 = vmul.f32 %v1156, %v1158
    %v1160 = vadd.f32 %v1156, %v1159
    %vm1161 = vweird.f32 %v1154
    %vm1162 = vweird.f32 %v1156
    %vm1163 = vmor %vm1161, %vm1162
    %v1164 = vsel %vm1163, %v1156, %v1160
    %v1165 = vand.u32 2147483647, %v1154
    %vm1166 = vcmp.eq.f32.partialorder %v1165, 8.507059e+37
    %v1167 = vand.u32 %v1154, 2147483648
    %v1168 = vor.u32 1.1754944e-38, %v1167
    %v1169 = vsel %vm1166, %v1168, %v1164
    %v1170 = vmul.f32 1.0, %v1169
    %v1171 = vrcp.pop %v1155
    %v1172 = vmul.f32 %v1155, %v1171
    %v1173 = vsub.f32 1.0, %v1172
    %v1174 = vmul.f32 %v1171, %v1173
    %v1175 = vadd.f32 %v1171, %v1174
    %vm1176 = vweird.f32 %v1155
    %vm1177 = vweird.f32 %v1171
    %vm1178 = vmor %vm1176, %vm1177
    %v1179 = vsel %vm1178, %v1171, %v1175
    %v1180 = vand.u32 2147483647, %v1155
    %vm1181 = vcmp.eq.f32.partialorder %v1180, 8.507059e+37
    %v1182 = vand.u32 %v1155, 2147483648
    %v1183 = vor.u32 1.1754944e-38, %v1182
    %v1184 = vsel %vm1181, %v1183, %v1179
    %v1185 = vmul.f32 1.0, %v1184
    %v1186 = vadd.f32 %v1144, %v172
    %v1187 = vmul.f32 %v1170, %v1186
    %v1188 = vadd.f32 %v1085, %v1187
    %v1189 = vtanh.pop %v1188
    %v1190 = vsub.f32 1.0, %v1185
    %v1191 = vmul.f32 %v1190, %v1189
    %v1192 = vmul.f32 %v1185, %v1077
    %v1193 = vadd.f32 %v1191, %v1192
    %s1194 = scalar_lea.vmem [#allocation3], 48
    %1195 = vst [vmem:[%s1194] sm:$0xff] %v1193
    %s1196 = smul.u32 7, 3
    %s1197 = smul.addr %s1196, 8
    %s1198 = scalar_lea.vmem [#allocation2], %s1197
    %v1199 = vld [vmem:[%s1198] sm:$0xff]
    %v1200 = vld [vmem:[%s1198 + $0x8] sm:$0xff]
    %v1201 = vld [vmem:[%s1198 + $0x10] sm:$0xff]
    %1202 = vmatpush.msra.mxu0 %v167
    %1203 = vmatpush.msra.mxu0 %v164
    %1204 = vmatpush.msra.mxu0 %v161
    %1205 = vmatpush.msra.mxu0 %v158
    %1206 = vmatpush.msra.mxu0 %v155
    %1207 = vmatpush.msra.mxu0 %v152
    %1208 = vmatpush.msra.mxu0 %v149
    %1209 = vmatpush.msra.mxu0 %v146
    %1210 = vmatpush.msra.mxu0 %v143
    %1211 = vmatpush.msra.mxu0 %v140
    %1212 = vmatpush.msra.mxu0 %v137
    %1213 = vmatpush.msra.mxu0 %v134
    %1214 = vmatpush.msra.mxu0 %v131
    %1215 = vmatpush.msra.mxu0 %v128
    %1216 = vmatpush.msra.mxu0 %v125
    %1217 = vmatpush.msra.mxu0 %v122
    %1218 = vmatmul.f32.gmra.mxu0 %v1193
    %v1219 = vpop.f32.mrf.mxu0
    %v1220 = vadd.f32 0.0, %v1219
    %1221 = vdwg.mxu0
    %1222 = vmatpush.msra.mxu0 %v168
    %1223 = vmatpush.msra.mxu0 %v165
    %1224 = vmatpush.msra.mxu0 %v162
    %1225 = vmatpush.msra.mxu0 %v159
    %1226 = vmatpush.msra.mxu0 %v156
    %1227 = vmatpush.msra.mxu0 %v153
    %1228 = vmatpush.msra.mxu0 %v150
    %1229 = vmatpush.msra.mxu0 %v147
    %1230 = vmatpush.msra.mxu0 %v144
    %1231 = vmatpush.msra.mxu0 %v141
    %1232 = vmatpush.msra.mxu0 %v138
    %1233 = vmatpush.msra.mxu0 %v135
    %1234 = vmatpush.msra.mxu0 %v132
    %1235 = vmatpush.msra.mxu0 %v129
    %1236 = vmatpush.msra.mxu0 %v126
    %1237 = vmatpush.msra.mxu0 %v123
    %1238 = vmatmul.f32.gmra.mxu0 %v1193
    %v1239 = vpop.f32.mrf.mxu0
    %v1240 = vadd.f32 0.0, %v1239
    %1241 = vdwg.mxu0
    %1242 = vmatpush.msra.mxu0 %v169
    %1243 = vmatpush.msra.mxu0 %v166
    %1244 = vmatpush.msra.mxu0 %v163
    %1245 = vmatpush.msra.mxu0 %v160
    %1246 = vmatpush.msra.mxu0 %v157
    %1247 = vmatpush.msra.mxu0 %v154
    %1248 = vmatpush.msra.mxu0 %v151
    %1249 = vmatpush.msra.mxu0 %v148
    %1250 = vmatpush.msra.mxu0 %v145
    %1251 = vmatpush.msra.mxu0 %v142
    %1252 = vmatpush.msra.mxu0 %v139
    %1253 = vmatpush.msra.mxu0 %v136
    %1254 = vmatpush.msra.mxu0 %v133
    %1255 = vmatpush.msra.mxu0 %v130
    %1256 = vmatpush.msra.mxu0 %v127
    %1257 = vmatpush.msra.mxu0 %v124
    %1258 = vmatmul.f32.gmra.mxu0 %v1193
    %v1259 = vpop.f32.mrf.mxu0
    %v1260 = vadd.f32 0.0, %v1259
    %1261 = vdwg.mxu0
    %v1262 = vadd.f32 %v1199, %v1220
    %v1263 = vadd.f32 %v1200, %v1240
    %v1264 = vxor.u32 %v1262, 2147483648
    %v1265 = vxor.u32 %v1263, 2147483648
    %v1266 = vmul.f32 %v1264, 1.442695
    %v1267 = vpow.pop %v1266
    %v1268 = vmul.f32 %v1265, 1.442695
    %v1269 = vpow.pop %v1268
    %v1270 = vadd.f32 %v1267, 1.0
    %v1271 = vadd.f32 %v1269, 1.0
    %v1272 = vrcp.pop %v1270
    %v1273 = vmul.f32 %v1270, %v1272
    %v1274 = vsub.f32 1.0, %v1273
    %v1275 = vmul.f32 %v1272, %v1274
    %v1276 = vadd.f32 %v1272, %v1275
    %vm1277 = vweird.f32 %v1270
    %vm1278 = vweird.f32 %v1272
    %vm1279 = vmor %vm1277, %vm1278
    %v1280 = vsel %vm1279, %v1272, %v1276
    %v1281 = vand.u32 2147483647, %v1270
    %vm1282 = vcmp.eq.f32.partialorder %v1281, 8.507059e+37
    %v1283 = vand.u32 %v1270, 2147483648
    %v1284 = vor.u32 1.1754944e-38, %v1283
    %v1285 = vsel %vm1282, %v1284, %v1280
    %v1286 = vmul.f32 1.0, %v1285
    %v1287 = vrcp.pop %v1271
    %v1288 = vmul.f32 %v1271, %v1287
    %v1289 = vsub.f32 1.0, %v1288
    %v1290 = vmul.f32 %v1287, %v1289
    %v1291 = vadd.f32 %v1287, %v1290
    %vm1292 = vweird.f32 %v1271
    %vm1293 = vweird.f32 %v1287
    %vm1294 = vmor %vm1292, %vm1293
    %v1295 = vsel %vm1294, %v1287, %v1291
    %v1296 = vand.u32 2147483647, %v1271
    %vm1297 = vcmp.eq.f32.partialorder %v1296, 8.507059e+37
    %v1298 = vand.u32 %v1271, 2147483648
    %v1299 = vor.u32 1.1754944e-38, %v1298
    %v1300 = vsel %vm1297, %v1299, %v1295
    %v1301 = vmul.f32 1.0, %v1300
    %v1302 = vadd.f32 %v1260, %v172
    %v1303 = vmul.f32 %v1286, %v1302
    %v1304 = vadd.f32 %v1201, %v1303
    %v1305 = vtanh.pop %v1304
    %v1306 = vsub.f32 1.0, %v1301
    %v1307 = vmul.f32 %v1306, %v1305
    %v1308 = vmul.f32 %v1301, %v1193
    %v1309 = vadd.f32 %v1307, %v1308
    %s1310 = scalar_lea.vmem [#allocation3], 56
    %1311 = vst [vmem:[%s1310] sm:$0xff] %v1309
    %v1312 = vld [vmem:[#allocation9] sm:$0xff]
    %v1313 = vld [vmem:[#allocation9 + $0x8] sm:$0xff]
    %v1314 = vld [vmem:[#allocation9 + $0x10] sm:$0xff]
    %v1315 = vld [vmem:[#allocation9 + $0x18] sm:$0xff]
    %v1316 = vld [vmem:[#allocation9 + $0x20] sm:$0xff]
    %v1317 = vld [vmem:[#allocation9 + $0x28] sm:$0xff]
    %v1318 = vld [vmem:[#allocation9 + $0x30] sm:$0xff]
    %v1319 = vld [vmem:[#allocation9 + $0x38] sm:$0xff]
    %v1320 = vld [vmem:[#allocation9 + $0x40] sm:$0xff]
    %v1321 = vld [vmem:[#allocation9 + $0x48] sm:$0xff]
    %v1322 = vld [vmem:[#allocation9 + $0x50] sm:$0xff]
    %v1323 = vld [vmem:[#allocation9 + $0x58] sm:$0xff]
    %v1324 = vld [vmem:[#allocation9 + $0x60] sm:$0xff]
    %v1325 = vld [vmem:[#allocation9 + $0x68] sm:$0xff]
    %v1326 = vld [vmem:[#allocation9 + $0x70] sm:$0xff]
    %v1327 = vld [vmem:[#allocation9 + $0x78] sm:$0xff]
    %v1328 = vld [vmem:[#allocation9 + $0x80] sm:$0xff]
    %v1329 = vld [vmem:[#allocation9 + $0x88] sm:$0xff]
    %v1330 = vld [vmem:[#allocation9 + $0x90] sm:$0xff]
    %v1331 = vld [vmem:[#allocation9 + $0x98] sm:$0xff]
    %v1332 = vld [vmem:[#allocation9 + $0xa0] sm:$0xff]
    %v1333 = vld [vmem:[#allocation9 + $0xa8] sm:$0xff]
    %v1334 = vld [vmem:[#allocation9 + $0xb0] sm:$0xff]
    %v1335 = vld [vmem:[#allocation9 + $0xb8] sm:$0xff]
    %v1336 = vld [vmem:[#allocation9 + $0xc0] sm:$0xff]
    %v1337 = vld [vmem:[#allocation9 + $0xc8] sm:$0xff]
    %v1338 = vld [vmem:[#allocation9 + $0xd0] sm:$0xff]
    %v1339 = vld [vmem:[#allocation9 + $0xd8] sm:$0xff]
    %v1340 = vld [vmem:[#allocation9 + $0xe0] sm:$0xff]
    %v1341 = vld [vmem:[#allocation9 + $0xe8] sm:$0xff]
    %v1342 = vld [vmem:[#allocation9 + $0xf0] sm:$0xff]
    %v1343 = vld [vmem:[#allocation9 + $0xf8] sm:$0xff]
    %v1344 = vld [vmem:[#allocation9 + $0x100] sm:$0xff]
    %v1345 = vld [vmem:[#allocation9 + $0x108] sm:$0xff]
    %v1346 = vld [vmem:[#allocation9 + $0x110] sm:$0xff]
    %v1347 = vld [vmem:[#allocation9 + $0x118] sm:$0xff]
    %v1348 = vld [vmem:[#allocation9 + $0x120] sm:$0xff]
    %v1349 = vld [vmem:[#allocation9 + $0x128] sm:$0xff]
    %v1350 = vld [vmem:[#allocation9 + $0x130] sm:$0xff]
    %v1351 = vld [vmem:[#allocation9 + $0x138] sm:$0xff]
    %v1352 = vld [vmem:[#allocation9 + $0x140] sm:$0xff]
    %v1353 = vld [vmem:[#allocation9 + $0x148] sm:$0xff]
    %v1354 = vld [vmem:[#allocation9 + $0x150] sm:$0xff]
    %v1355 = vld [vmem:[#allocation9 + $0x158] sm:$0xff]
    %v1356 = vld [vmem:[#allocation9 + $0x160] sm:$0xff]
    %v1357 = vld [vmem:[#allocation9 + $0x168] sm:$0xff]
    %v1358 = vld [vmem:[#allocation9 + $0x170] sm:$0xff]
    %v1359 = vld [vmem:[#allocation9 + $0x178] sm:$0xff]
    %v1360 = vld [vmem:[%s8] sm:$0x1]
    %v1362 = vperm.slane %v1360, 0
    %v1364 = vld [vmem:[#allocation3] sm:$0xff]
    %v1365 = vld [vmem:[#allocation3 + $0x8] sm:$0xff]
    %v1366 = vld [vmem:[#allocation3 + $0x10] sm:$0xff]
    %v1367 = vld [vmem:[#allocation3 + $0x18] sm:$0xff]
    %v1368 = vld [vmem:[#allocation3 + $0x20] sm:$0xff]
    %v1369 = vld [vmem:[#allocation3 + $0x28] sm:$0xff]
    %v1370 = vld [vmem:[#allocation3 + $0x30] sm:$0xff]
    %v1371 = vld [vmem:[#allocation3 + $0x38] sm:$0xff]
    %v1372 = vld [vmem:[#allocation8] sm:$0xff]
    %v1373 = vld [vmem:[#allocation8 + $0x8] sm:$0xff]
    %v1374 = vld [vmem:[#allocation8 + $0x10] sm:$0xff]
    %v1375 = vld [vmem:[#allocation8 + $0x18] sm:$0xff]
    %v1376 = vld [vmem:[#allocation8 + $0x20] sm:$0xff]
    %v1377 = vld [vmem:[#allocation8 + $0x28] sm:$0xff]
    %v1378 = vld [vmem:[#allocation8 + $0x30] sm:$0xff]
    %v1379 = vld [vmem:[#allocation8 + $0x38] sm:$0xff]
    %v1380 = vld [vmem:[#allocation8 + $0x40] sm:$0xff]
    %v1381 = vld [vmem:[#allocation8 + $0x48] sm:$0xff]
    %v1382 = vld [vmem:[#allocation8 + $0x50] sm:$0xff]
    %v1383 = vld [vmem:[#allocation8 + $0x58] sm:$0xff]
    %v1384 = vld [vmem:[#allocation8 + $0x60] sm:$0xff]
    %v1385 = vld [vmem:[#allocation8 + $0x68] sm:$0xff]
    %v1386 = vld [vmem:[#allocation8 + $0x70] sm:$0xff]
    %v1387 = vld [vmem:[#allocation8 + $0x78] sm:$0xff]
    %v1388 = vld [vmem:[#allocation8 + $0x80] sm:$0xff]
    %v1389 = vld [vmem:[#allocation8 + $0x88] sm:$0xff]
    %v1390 = vld [vmem:[#allocation8 + $0x90] sm:$0xff]
    %v1391 = vld [vmem:[#allocation8 + $0x98] sm:$0xff]
    %v1392 = vld [vmem:[#allocation8 + $0xa0] sm:$0xff]
    %v1393 = vld [vmem:[#allocation8 + $0xa8] sm:$0xff]
    %v1394 = vld [vmem:[#allocation8 + $0xb0] sm:$0xff]
    %v1395 = vld [vmem:[#allocation8 + $0xb8] sm:$0xff]
    %v1396 = vld [vmem:[#allocation8 + $0xc0] sm:$0xff]
    %v1397 = vld [vmem:[#allocation8 + $0xc8] sm:$0xff]
    %v1398 = vld [vmem:[#allocation8 + $0xd0] sm:$0xff]
    %v1399 = vld [vmem:[#allocation8 + $0xd8] sm:$0xff]
    %v1400 = vld [vmem:[#allocation8 + $0xe0] sm:$0xff]
    %v1401 = vld [vmem:[#allocation8 + $0xe8] sm:$0xff]
    %v1402 = vld [vmem:[#allocation8 + $0xf0] sm:$0xff]
    %v1403 = vld [vmem:[#allocation8 + $0xf8] sm:$0xff]
    %v1404 = vld [vmem:[#allocation8 + $0x100] sm:$0xff]
    %v1405 = vld [vmem:[#allocation8 + $0x108] sm:$0xff]
    %v1406 = vld [vmem:[#allocation8 + $0x110] sm:$0xff]
    %v1407 = vld [vmem:[#allocation8 + $0x118] sm:$0xff]
    %v1408 = vld [vmem:[#allocation8 + $0x120] sm:$0xff]
    %v1409 = vld [vmem:[#allocation8 + $0x128] sm:$0xff]
    %v1410 = vld [vmem:[#allocation8 + $0x130] sm:$0xff]
    %v1411 = vld [vmem:[#allocation8 + $0x138] sm:$0xff]
    %v1412 = vld [vmem:[#allocation8 + $0x140] sm:$0xff]
    %v1413 = vld [vmem:[#allocation8 + $0x148] sm:$0xff]
    %v1414 = vld [vmem:[#allocation8 + $0x150] sm:$0xff]
    %v1415 = vld [vmem:[#allocation8 + $0x158] sm:$0xff]
    %v1416 = vld [vmem:[#allocation8 + $0x160] sm:$0xff]
    %v1417 = vld [vmem:[#allocation8 + $0x168] sm:$0xff]
    %v1418 = vld [vmem:[#allocation8 + $0x170] sm:$0xff]
    %v1419 = vld [vmem:[#allocation8 + $0x178] sm:$0xff]
    %v1420 = vld [vmem:[%s7] sm:$0x7]
    %v1422 = vperm.slane %v1420, 0
    %v1423 = vperm.slane %v1420, 1
    %v1424 = vperm.slane %v1420, 2
    %1428 = vmatpush.msra.mxu0 %v1417
    %1429 = vmatpush.msra.mxu0 %v1414
    %1430 = vmatpush.msra.mxu0 %v1411
    %1431 = vmatpush.msra.mxu0 %v1408
    %1432 = vmatpush.msra.mxu0 %v1405
    %1433 = vmatpush.msra.mxu0 %v1402
    %1434 = vmatpush.msra.mxu0 %v1399
    %1435 = vmatpush.msra.mxu0 %v1396
    %1436 = vmatpush.msra.mxu0 %v1393
    %1437 = vmatpush.msra.mxu0 %v1390
    %1438 = vmatpush.msra.mxu0 %v1387
    %1439 = vmatpush.msra.mxu0 %v1384
    %1440 = vmatpush.msra.mxu0 %v1381
    %1441 = vmatpush.msra.mxu0 %v1378
    %1442 = vmatpush.msra.mxu0 %v1375
    %1443 = vmatpush.msra.mxu0 %v1372
    %1444 = vmatmul.f32.gmra.mxu0 %v1364
    %v1445 = vpop.f32.mrf.mxu0
    %v1446 = vadd.f32 %v1422, %v1445
    %1447 = vmatmul.f32.gmra.mxu0 %v1365
    %v1448 = vpop.f32.mrf.mxu0
    %v1449 = vadd.f32 %v1422, %v1448
    %1450 = vmatmul.f32.gmra.mxu0 %v1366
    %v1451 = vpop.f32.mrf.mxu0
    %v1452 = vadd.f32 %v1422, %v1451
    %1453 = vmatmul.f32.gmra.mxu0 %v1367
    %v1454 = vpop.f32.mrf.mxu0
    %v1455 = vadd.f32 %v1422, %v1454
    %1456 = vmatmul.f32.gmra.mxu0 %v1368
    %v1457 = vpop.f32.mrf.mxu0
    %v1458 = vadd.f32 %v1422, %v1457
    %1459 = vmatmul.f32.gmra.mxu0 %v1369
    %v1460 = vpop.f32.mrf.mxu0
    %v1461 = vadd.f32 %v1422, %v1460
    %1462 = vmatmul.f32.gmra.mxu0 %v1370
    %v1463 = vpop.f32.mrf.mxu0
    %v1464 = vadd.f32 %v1422, %v1463
    %1465 = vmatmul.f32.gmra.mxu0 %v1371
    %v1466 = vpop.f32.mrf.mxu0
    %v1467 = vadd.f32 %v1422, %v1466
    %1468 = vdwg.mxu0
    %1469 = vmatpush.msra.mxu0 %v1418
    %1470 = vmatpush.msra.mxu0 %v1415
    %1471 = vmatpush.msra.mxu0 %v1412
    %1472 = vmatpush.msra.mxu0 %v1409
    %1473 = vmatpush.msra.mxu0 %v1406
    %1474 = vmatpush.msra.mxu0 %v1403
    %1475 = vmatpush.msra.mxu0 %v1400
    %1476 = vmatpush.msra.mxu0 %v1397
    %1477 = vmatpush.msra.mxu0 %v1394
    %1478 = vmatpush.msra.mxu0 %v1391
    %1479 = vmatpush.msra.mxu0 %v1388
    %1480 = vmatpush.msra.mxu0 %v1385
    %1481 = vmatpush.msra.mxu0 %v1382
    %1482 = vmatpush.msra.mxu0 %v1379
    %1483 = vmatpush.msra.mxu0 %v1376
    %1484 = vmatpush.msra.mxu0 %v1373
    %1485 = vmatmul.f32.gmra.mxu0 %v1364
    %v1486 = vpop.f32.mrf.mxu0
    %v1487 = vadd.f32 %v1423, %v1486
    %1488 = vmatmul.f32.gmra.mxu0 %v1365
    %v1489 = vpop.f32.mrf.mxu0
    %v1490 = vadd.f32 %v1423, %v1489
    %1491 = vmatmul.f32.gmra.mxu0 %v1366
    %v1492 = vpop.f32.mrf.mxu0
    %v1493 = vadd.f32 %v1423, %v1492
    %1494 = vmatmul.f32.gmra.mxu0 %v1367
    %v1495 = vpop.f32.mrf.mxu0
    %v1496 = vadd.f32 %v1423, %v1495
    %1497 = vmatmul.f32.gmra.mxu0 %v1368
    %v1498 = vpop.f32.mrf.mxu0
    %v1499 = vadd.f32 %v1423, %v1498
    %1500 = vmatmul.f32.gmra.mxu0 %v1369
    %v1501 = vpop.f32.mrf.mxu0
    %v1502 = vadd.f32 %v1423, %v1501
    %1503 = vmatmul.f32.gmra.mxu0 %v1370
    %v1504 = vpop.f32.mrf.mxu0
    %v1505 = vadd.f32 %v1423, %v1504
    %1506 = vmatmul.f32.gmra.mxu0 %v1371
    %v1507 = vpop.f32.mrf.mxu0
    %v1508 = vadd.f32 %v1423, %v1507
    %1509 = vdwg.mxu0
    %1510 = vmatpush.msra.mxu0 %v1419
    %1511 = vmatpush.msra.mxu0 %v1416
    %1512 = vmatpush.msra.mxu0 %v1413
    %1513 = vmatpush.msra.mxu0 %v1410
    %1514 = vmatpush.msra.mxu0 %v1407
    %1515 = vmatpush.msra.mxu0 %v1404
    %1516 = vmatpush.msra.mxu0 %v1401
    %1517 = vmatpush.msra.mxu0 %v1398
    %1518 = vmatpush.msra.mxu0 %v1395
    %1519 = vmatpush.msra.mxu0 %v1392
    %1520 = vmatpush.msra.mxu0 %v1389
    %1521 = vmatpush.msra.mxu0 %v1386
    %1522 = vmatpush.msra.mxu0 %v1383
    %1523 = vmatpush.msra.mxu0 %v1380
    %1524 = vmatpush.msra.mxu0 %v1377
    %1525 = vmatpush.msra.mxu0 %v1374
    %1526 = vmatmul.f32.gmra.mxu0 %v1364
    %v1527 = vpop.f32.mrf.mxu0
    %v1528 = vadd.f32 %v1424, %v1527
    %1529 = vmatmul.f32.gmra.mxu0 %v1365
    %v1530 = vpop.f32.mrf.mxu0
    %v1531 = vadd.f32 %v1424, %v1530
    %1532 = vmatmul.f32.gmra.mxu0 %v1366
    %v1533 = vpop.f32.mrf.mxu0
    %v1534 = vadd.f32 %v1424, %v1533
    %1535 = vmatmul.f32.gmra.mxu0 %v1367
    %v1536 = vpop.f32.mrf.mxu0
    %v1537 = vadd.f32 %v1424, %v1536
    %1538 = vmatmul.f32.gmra.mxu0 %v1368
    %v1539 = vpop.f32.mrf.mxu0
    %v1540 = vadd.f32 %v1424, %v1539
    %1541 = vmatmul.f32.gmra.mxu0 %v1369
    %v1542 = vpop.f32.mrf.mxu0
    %v1543 = vadd.f32 %v1424, %v1542
    %1544 = vmatmul.f32.gmra.mxu0 %v1370
    %v1545 = vpop.f32.mrf.mxu0
    %v1546 = vadd.f32 %v1424, %v1545
    %1547 = vmatmul.f32.gmra.mxu0 %v1371
    %v1548 = vpop.f32.mrf.mxu0
    %v1549 = vadd.f32 %v1424, %v1548
    %1550 = vdwg.mxu0
    %1551 = vst [vmem:[#allocation2] sm:$0xff] %v1446
    %1552 = vst [vmem:[#allocation2 + $0x8] sm:$0xff] %v1487
    %1553 = vst [vmem:[#allocation2 + $0x10] sm:$0xff] %v1528
    %1554 = vst [vmem:[#allocation2 + $0x18] sm:$0xff] %v1449
    %1555 = vst [vmem:[#allocation2 + $0x20] sm:$0xff] %v1490
    %1556 = vst [vmem:[#allocation2 + $0x28] sm:$0xff] %v1531
    %1557 = vst [vmem:[#allocation2 + $0x30] sm:$0xff] %v1452
    %1558 = vst [vmem:[#allocation2 + $0x38] sm:$0xff] %v1493
    %1559 = vst [vmem:[#allocation2 + $0x40] sm:$0xff] %v1534
    %1560 = vst [vmem:[#allocation2 + $0x48] sm:$0xff] %v1455
    %1561 = vst [vmem:[#allocation2 + $0x50] sm:$0xff] %v1496
    %1562 = vst [vmem:[#allocation2 + $0x58] sm:$0xff] %v1537
    %1563 = vst [vmem:[#allocation2 + $0x60] sm:$0xff] %v1458
    %1564 = vst [vmem:[#allocation2 + $0x68] sm:$0xff] %v1499
    %1565 = vst [vmem:[#allocation2 + $0x70] sm:$0xff] %v1540
    %1566 = vst [vmem:[#allocation2 + $0x78] sm:$0xff] %v1461
    %1567 = vst [vmem:[#allocation2 + $0x80] sm:$0xff] %v1502
    %1568 = vst [vmem:[#allocation2 + $0x88] sm:$0xff] %v1543
    %1569 = vst [vmem:[#allocation2 + $0x90] sm:$0xff] %v1464
    %1570 = vst [vmem:[#allocation2 + $0x98] sm:$0xff] %v1505
    %1571 = vst [vmem:[#allocation2 + $0xa0] sm:$0xff] %v1546
    %1572 = vst [vmem:[#allocation2 + $0xa8] sm:$0xff] %v1467
    %1573 = vst [vmem:[#allocation2 + $0xb0] sm:$0xff] %v1508
    %1574 = vst [vmem:[#allocation2 + $0xb8] sm:$0xff] %v1549
    %v1575 = vld [vmem:[%s387] sm:$0xff]
    %v1576 = vld [vmem:[%s387 + $0x8] sm:$0xff]
    %v1577 = vld [vmem:[%s387 + $0x10] sm:$0xff]
    %1578 = vmatpush.msra.mxu0 %v1357
    %1579 = vmatpush.msra.mxu0 %v1354
    %1580 = vmatpush.msra.mxu0 %v1351
    %1581 = vmatpush.msra.mxu0 %v1348
    %1582 = vmatpush.msra.mxu0 %v1345
    %1583 = vmatpush.msra.mxu0 %v1342
    %1584 = vmatpush.msra.mxu0 %v1339
    %1585 = vmatpush.msra.mxu0 %v1336
    %1586 = vmatpush.msra.mxu0 %v1333
    %1587 = vmatpush.msra.mxu0 %v1330
    %1588 = vmatpush.msra.mxu0 %v1327
    %1589 = vmatpush.msra.mxu0 %v1324
    %1590 = vmatpush.msra.mxu0 %v1321
    %1591 = vmatpush.msra.mxu0 %v1318
    %1592 = vmatpush.msra.mxu0 %v1315
    %1593 = vmatpush.msra.mxu0 %v1312
    %1594 = vmatmul.f32.gmra.mxu0 0.0
    %v1595 = vpop.f32.mrf.mxu0
    %v1596 = vadd.f32 0.0, %v1595
    %1597 = vdwg.mxu0
    %1598 = vmatpush.msra.mxu0 %v1358
    %1599 = vmatpush.msra.mxu0 %v1355
    %1600 = vmatpush.msra.mxu0 %v1352
    %1601 = vmatpush.msra.mxu0 %v1349
    %1602 = vmatpush.msra.mxu0 %v1346
    %1603 = vmatpush.msra.mxu0 %v1343
    %1604 = vmatpush.msra.mxu0 %v1340
    %1605 = vmatpush.msra.mxu0 %v1337
    %1606 = vmatpush.msra.mxu0 %v1334
    %1607 = vmatpush.msra.mxu0 %v1331
    %1608 = vmatpush.msra.mxu0 %v1328
    %1609 = vmatpush.msra.mxu0 %v1325
    %1610 = vmatpush.msra.mxu0 %v1322
    %1611 = vmatpush.msra.mxu0 %v1319
    %1612 = vmatpush.msra.mxu0 %v1316
    %1613 = vmatpush.msra.mxu0 %v1313
    %1614 = vmatmul.f32.gmra.mxu0 0.0
    %v1615 = vpop.f32.mrf.mxu0
    %v1616 = vadd.f32 0.0, %v1615
    %1617 = vdwg.mxu0
    %1618 = vmatpush.msra.mxu0 %v1359
    %1619 = vmatpush.msra.mxu0 %v1356
    %1620 = vmatpush.msra.mxu0 %v1353
    %1621 = vmatpush.msra.mxu0 %v1350
    %1622 = vmatpush.msra.mxu0 %v1347
    %1623 = vmatpush.msra.mxu0 %v1344
    %1624 = vmatpush.msra.mxu0 %v1341
    %1625 = vmatpush.msra.mxu0 %v1338
    %1626 = vmatpush.msra.mxu0 %v1335
    %1627 = vmatpush.msra.mxu0 %v1332
    %1628 = vmatpush.msra.mxu0 %v1329
    %1629 = vmatpush.msra.mxu0 %v1326
    %1630 = vmatpush.msra.mxu0 %v1323
    %1631 = vmatpush.msra.mxu0 %v1320
    %1632 = vmatpush.msra.mxu0 %v1317
    %1633 = vmatpush.msra.mxu0 %v1314
    %1634 = vmatmul.f32.gmra.mxu0 0.0
    %v1635 = vpop.f32.mrf.mxu0
    %v1636 = vadd.f32 0.0, %v1635
    %1637 = vdwg.mxu0
    %v1638 = vadd.f32 %v1575, %v1596
    %v1639 = vadd.f32 %v1576, %v1616
    %v1640 = vxor.u32 %v1638, 2147483648
    %v1641 = vxor.u32 %v1639, 2147483648
    %v1642 = vmul.f32 %v1640, 1.442695
    %v1643 = vpow.pop %v1642
    %v1644 = vmul.f32 %v1641, 1.442695
    %v1645 = vpow.pop %v1644
    %v1646 = vadd.f32 %v1643, 1.0
    %v1647 = vadd.f32 %v1645, 1.0
    %v1648 = vrcp.pop %v1646
    %v1649 = vmul.f32 %v1646, %v1648
    %v1650 = vsub.f32 1.0, %v1649
    %v1651 = vmul.f32 %v1648, %v1650
    %v1652 = vadd.f32 %v1648, %v1651
    %vm1653 = vweird.f32 %v1646
    %vm1654 = vweird.f32 %v1648
    %vm1655 = vmor %vm1653, %vm1654
    %v1656 = vsel %vm1655, %v1648, %v1652
    %v1657 = vand.u32 2147483647, %v1646
    %vm1658 = vcmp.eq.f32.partialorder %v1657, 8.507059e+37
    %v1659 = vand.u32 %v1646, 2147483648
    %v1660 = vor.u32 1.1754944e-38, %v1659
    %v1661 = vsel %vm1658, %v1660, %v1656
    %v1662 = vmul.f32 1.0, %v1661
    %v1663 = vrcp.pop %v1647
    %v1664 = vmul.f32 %v1647, %v1663
    %v1665 = vsub.f32 1.0, %v1664
    %v1666 = vmul.f32 %v1663, %v1665
    %v1667 = vadd.f32 %v1663, %v1666
    %vm1668 = vweird.f32 %v1647
    %vm1669 = vweird.f32 %v1663
    %vm1670 = vmor %vm1668, %vm1669
    %v1671 = vsel %vm1670, %v1663, %v1667
    %v1672 = vand.u32 2147483647, %v1647
    %vm1673 = vcmp.eq.f32.partialorder %v1672, 8.507059e+37
    %v1674 = vand.u32 %v1647, 2147483648
    %v1675 = vor.u32 1.1754944e-38, %v1674
    %v1676 = vsel %vm1673, %v1675, %v1671
    %v1677 = vmul.f32 1.0, %v1676
    %v1678 = vadd.f32 %v1636, %v1362
    %v1679 = vmul.f32 %v1662, %v1678
    %v1680 = vadd.f32 %v1577, %v1679
    %v1681 = vtanh.pop %v1680
    %v1682 = vsub.f32 1.0, %v1677
    %v1683 = vmul.f32 %v1682, %v1681
    %v1684 = vmul.f32 %v1677, 0.0
    %v1685 = vadd.f32 %v1683, %v1684
    %v1686 = vld [vmem:[%s502] sm:$0xff]
    %v1687 = vld [vmem:[%s502 + $0x8] sm:$0xff]
    %v1688 = vld [vmem:[%s502 + $0x10] sm:$0xff]
    %1689 = vmatpush.msra.mxu0 %v1357
    %1690 = vmatpush.msra.mxu0 %v1354
    %1691 = vmatpush.msra.mxu0 %v1351
    %1692 = vmatpush.msra.mxu0 %v1348
    %1693 = vmatpush.msra.mxu0 %v1345
    %1694 = vmatpush.msra.mxu0 %v1342
    %1695 = vmatpush.msra.mxu0 %v1339
    %1696 = vmatpush.msra.mxu0 %v1336
    %1697 = vmatpush.msra.mxu0 %v1333
    %1698 = vmatpush.msra.mxu0 %v1330
    %1699 = vmatpush.msra.mxu0 %v1327
    %1700 = vmatpush.msra.mxu0 %v1324
    %1701 = vmatpush.msra.mxu0 %v1321
    %1702 = vmatpush.msra.mxu0 %v1318
    %1703 = vmatpush.msra.mxu0 %v1315
    %1704 = vmatpush.msra.mxu0 %v1312
    %1705 = vmatmul.f32.gmra.mxu0 %v1685
    %v1706 = vpop.f32.mrf.mxu0
    %v1707 = vadd.f32 0.0, %v1706
    %1708 = vdwg.mxu0
    %1709 = vmatpush.msra.mxu0 %v1358
    %1710 = vmatpush.msra.mxu0 %v1355
    %1711 = vmatpush.msra.mxu0 %v1352
    %1712 = vmatpush.msra.mxu0 %v1349
    %1713 = vmatpush.msra.mxu0 %v1346
    %1714 = vmatpush.msra.mxu0 %v1343
    %1715 = vmatpush.msra.mxu0 %v1340
    %1716 = vmatpush.msra.mxu0 %v1337
    %1717 = vmatpush.msra.mxu0 %v1334
    %1718 = vmatpush.msra.mxu0 %v1331
    %1719 = vmatpush.msra.mxu0 %v1328
    %1720 = vmatpush.msra.mxu0 %v1325
    %1721 = vmatpush.msra.mxu0 %v1322
    %1722 = vmatpush.msra.mxu0 %v1319
    %1723 = vmatpush.msra.mxu0 %v1316
    %1724 = vmatpush.msra.mxu0 %v1313
    %1725 = vmatmul.f32.gmra.mxu0 %v1685
    %v1726 = vpop.f32.mrf.mxu0
    %v1727 = vadd.f32 0.0, %v1726
    %1728 = vdwg.mxu0
    %1729 = vmatpush.msra.mxu0 %v1359
    %1730 = vmatpush.msra.mxu0 %v1356
    %1731 = vmatpush.msra.mxu0 %v1353
    %1732 = vmatpush.msra.mxu0 %v1350
    %1733 = vmatpush.msra.mxu0 %v1347
    %1734 = vmatpush.msra.mxu0 %v1344
    %1735 = vmatpush.msra.mxu0 %v1341
    %1736 = vmatpush.msra.mxu0 %v1338
    %1737 = vmatpush.msra.mxu0 %v1335
    %1738 = vmatpush.msra.mxu0 %v1332
    %1739 = vmatpush.msra.mxu0 %v1329
    %1740 = vmatpush.msra.mxu0 %v1326
    %1741 = vmatpush.msra.mxu0 %v1323
    %1742 = vmatpush.msra.mxu0 %v1320
    %1743 = vmatpush.msra.mxu0 %v1317
    %1744 = vmatpush.msra.mxu0 %v1314
    %1745 = vmatmul.f32.gmra.mxu0 %v1685
    %v1746 = vpop.f32.mrf.mxu0
    %v1747 = vadd.f32 0.0, %v1746
    %1748 = vdwg.mxu0
    %v1749 = vadd.f32 %v1686, %v1707
    %v1750 = vadd.f32 %v1687, %v1727
    %v1751 = vxor.u32 %v1749, 2147483648
    %v1752 = vxor.u32 %v1750, 2147483648
    %v1753 = vmul.f32 %v1751, 1.442695
    %v1754 = vpow.pop %v1753
    %v1755 = vmul.f32 %v1752, 1.442695
    %v1756 = vpow.pop %v1755
    %v1757 = vadd.f32 %v1754, 1.0
    %v1758 = vadd.f32 %v1756, 1.0
    %v1759 = vrcp.pop %v1757
    %v1760 = vmul.f32 %v1757, %v1759
    %v1761 = vsub.f32 1.0, %v1760
    %v1762 = vmul.f32 %v1759, %v1761
    %v1763 = vadd.f32 %v1759, %v1762
    %vm1764 = vweird.f32 %v1757
    %vm1765 = vweird.f32 %v1759
    %vm1766 = vmor %vm1764, %vm1765
    %v1767 = vsel %vm1766, %v1759, %v1763
    %v1768 = vand.u32 2147483647, %v1757
    %vm1769 = vcmp.eq.f32.partialorder %v1768, 8.507059e+37
    %v1770 = vand.u32 %v1757, 2147483648
    %v1771 = vor.u32 1.1754944e-38, %v1770
    %v1772 = vsel %vm1769, %v1771, %v1767
    %v1773 = vmul.f32 1.0, %v1772
    %v1774 = vrcp.pop %v1758
    %v1775 = vmul.f32 %v1758, %v1774
    %v1776 = vsub.f32 1.0, %v1775
    %v1777 = vmul.f32 %v1774, %v1776
    %v1778 = vadd.f32 %v1774, %v1777
    %vm1779 = vweird.f32 %v1758
    %vm1780 = vweird.f32 %v1774
    %vm1781 = vmor %vm1779, %vm1780
    %v1782 = vsel %vm1781, %v1774, %v1778
    %v1783 = vand.u32 2147483647, %v1758
    %vm1784 = vcmp.eq.f32.partialorder %v1783, 8.507059e+37
    %v1785 = vand.u32 %v1758, 2147483648
    %v1786 = vor.u32 1.1754944e-38, %v1785
    %v1787 = vsel %vm1784, %v1786, %v1782
    %v1788 = vmul.f32 1.0, %v1787
    %v1789 = vadd.f32 %v1747, %v1362
    %v1790 = vmul.f32 %v1773, %v1789
    %v1791 = vadd.f32 %v1688, %v1790
    %v1792 = vtanh.pop %v1791
    %v1793 = vsub.f32 1.0, %v1788
    %v1794 = vmul.f32 %v1793, %v1792
    %v1795 = vmul.f32 %v1788, %v1685
    %v1796 = vadd.f32 %v1794, %v1795
    %v1797 = vld [vmem:[%s618] sm:$0xff]
    %v1798 = vld [vmem:[%s618 + $0x8] sm:$0xff]
    %v1799 = vld [vmem:[%s618 + $0x10] sm:$0xff]
    %1800 = vmatpush.msra.mxu0 %v1357
    %1801 = vmatpush.msra.mxu0 %v1354
    %1802 = vmatpush.msra.mxu0 %v1351
    %1803 = vmatpush.msra.mxu0 %v1348
    %1804 = vmatpush.msra.mxu0 %v1345
    %1805 = vmatpush.msra.mxu0 %v1342
    %1806 = vmatpush.msra.mxu0 %v1339
    %1807 = vmatpush.msra.mxu0 %v1336
    %1808 = vmatpush.msra.mxu0 %v1333
    %1809 = vmatpush.msra.mxu0 %v1330
    %1810 = vmatpush.msra.mxu0 %v1327
    %1811 = vmatpush.msra.mxu0 %v1324
    %1812 = vmatpush.msra.mxu0 %v1321
    %1813 = vmatpush.msra.mxu0 %v1318
    %1814 = vmatpush.msra.mxu0 %v1315
    %1815 = vmatpush.msra.mxu0 %v1312
    %1816 = vmatmul.f32.gmra.mxu0 %v1796
    %v1817 = vpop.f32.mrf.mxu0
    %v1818 = vadd.f32 0.0, %v1817
    %1819 = vdwg.mxu0
    %1820 = vmatpush.msra.mxu0 %v1358
    %1821 = vmatpush.msra.mxu0 %v1355
    %1822 = vmatpush.msra.mxu0 %v1352
    %1823 = vmatpush.msra.mxu0 %v1349
    %1824 = vmatpush.msra.mxu0 %v1346
    %1825 = vmatpush.msra.mxu0 %v1343
    %1826 = vmatpush.msra.mxu0 %v1340
    %1827 = vmatpush.msra.mxu0 %v1337
    %1828 = vmatpush.msra.mxu0 %v1334
    %1829 = vmatpush.msra.mxu0 %v1331
    %1830 = vmatpush.msra.mxu0 %v1328
    %1831 = vmatpush.msra.mxu0 %v1325
    %1832 = vmatpush.msra.mxu0 %v1322
    %1833 = vmatpush.msra.mxu0 %v1319
    %1834 = vmatpush.msra.mxu0 %v1316
    %1835 = vmatpush.msra.mxu0 %v1313
    %1836 = vmatmul.f32.gmra.mxu0 %v1796
    %v1837 = vpop.f32.mrf.mxu0
    %v1838 = vadd.f32 0.0, %v1837
    %1839 = vdwg.mxu0
    %1840 = vmatpush.msra.mxu0 %v1359
    %1841 = vmatpush.msra.mxu0 %v1356
    %1842 = vmatpush.msra.mxu0 %v1353
    %1843 = vmatpush.msra.mxu0 %v1350
    %1844 = vmatpush.msra.mxu0 %v1347
    %1845 = vmatpush.msra.mxu0 %v1344
    %1846 = vmatpush.msra.mxu0 %v1341
    %1847 = vmatpush.msra.mxu0 %v1338
    %1848 = vmatpush.msra.mxu0 %v1335
    %1849 = vmatpush.msra.mxu0 %v1332
    %1850 = vmatpush.msra.mxu0 %v1329
    %1851 = vmatpush.msra.mxu0 %v1326
    %1852 = vmatpush.msra.mxu0 %v1323
    %1853 = vmatpush.msra.mxu0 %v1320
    %1854 = vmatpush.msra.mxu0 %v1317
    %1855 = vmatpush.msra.mxu0 %v1314
    %1856 = vmatmul.f32.gmra.mxu0 %v1796
    %v1857 = vpop.f32.mrf.mxu0
    %v1858 = vadd.f32 0.0, %v1857
    %1859 = vdwg.mxu0
    %v1860 = vadd.f32 %v1797, %v1818
    %v1861 = vadd.f32 %v1798, %v1838
    %v1862 = vxor.u32 %v1860, 2147483648
    %v1863 = vxor.u32 %v1861, 2147483648
    %v1864 = vmul.f32 %v1862, 1.442695
    %v1865 = vpow.pop %v1864
    %v1866 = vmul.f32 %v1863, 1.442695
    %v1867 = vpow.pop %v1866
    %v1868 = vadd.f32 %v1865, 1.0
    %v1869 = vadd.f32 %v1867, 1.0
    %v1870 = vrcp.pop %v1868
    %v1871 = vmul.f32 %v1868, %v1870
    %v1872 = vsub.f32 1.0, %v1871
    %v1873 = vmul.f32 %v1870, %v1872
    %v1874 = vadd.f32 %v1870, %v1873
    %vm1875 = vweird.f32 %v1868
    %vm1876 = vweird.f32 %v1870
    %vm1877 = vmor %vm1875, %vm1876
    %v1878 = vsel %vm1877, %v1870, %v1874
    %v1879 = vand.u32 2147483647, %v1868
    %vm1880 = vcmp.eq.f32.partialorder %v1879, 8.507059e+37
    %v1881 = vand.u32 %v1868, 2147483648
    %v1882 = vor.u32 1.1754944e-38, %v1881
    %v1883 = vsel %vm1880, %v1882, %v1878
    %v1884 = vmul.f32 1.0, %v1883
    %v1885 = vrcp.pop %v1869
    %v1886 = vmul.f32 %v1869, %v1885
    %v1887 = vsub.f32 1.0, %v1886
    %v1888 = vmul.f32 %v1885, %v1887
    %v1889 = vadd.f32 %v1885, %v1888
    %vm1890 = vweird.f32 %v1869
    %vm1891 = vweird.f32 %v1885
    %vm1892 = vmor %vm1890, %vm1891
    %v1893 = vsel %vm1892, %v1885, %v1889
    %v1894 = vand.u32 2147483647, %v1869
    %vm1895 = vcmp.eq.f32.partialorder %v1894, 8.507059e+37
    %v1896 = vand.u32 %v1869, 2147483648
    %v1897 = vor.u32 1.1754944e-38, %v1896
    %v1898 = vsel %vm1895, %v1897, %v1893
    %v1899 = vmul.f32 1.0, %v1898
    %v1900 = vadd.f32 %v1858, %v1362
    %v1901 = vmul.f32 %v1884, %v1900
    %v1902 = vadd.f32 %v1799, %v1901
    %v1903 = vtanh.pop %v1902
    %v1904 = vsub.f32 1.0, %v1899
    %v1905 = vmul.f32 %v1904, %v1903
    %v1906 = vmul.f32 %v1899, %v1796
    %v1907 = vadd.f32 %v1905, %v1906
    %v1908 = vld [vmem:[%s734] sm:$0xff]
    %v1909 = vld [vmem:[%s734 + $0x8] sm:$0xff]
    %v1910 = vld [vmem:[%s734 + $0x10] sm:$0xff]
    %1911 = vmatpush.msra.mxu0 %v1357
    %1912 = vmatpush.msra.mxu0 %v1354
    %1913 = vmatpush.msra.mxu0 %v1351
    %1914 = vmatpush.msra.mxu0 %v1348
    %1915 = vmatpush.msra.mxu0 %v1345
    %1916 = vmatpush.msra.mxu0 %v1342
    %1917 = vmatpush.msra.mxu0 %v1339
    %1918 = vmatpush.msra.mxu0 %v1336
    %1919 = vmatpush.msra.mxu0 %v1333
    %1920 = vmatpush.msra.mxu0 %v1330
    %1921 = vmatpush.msra.mxu0 %v1327
    %1922 = vmatpush.msra.mxu0 %v1324
    %1923 = vmatpush.msra.mxu0 %v1321
    %1924 = vmatpush.msra.mxu0 %v1318
    %1925 = vmatpush.msra.mxu0 %v1315
    %1926 = vmatpush.msra.mxu0 %v1312
    %1927 = vmatmul.f32.gmra.mxu0 %v1907
    %v1928 = vpop.f32.mrf.mxu0
    %v1929 = vadd.f32 0.0, %v1928
    %1930 = vdwg.mxu0
    %1931 = vmatpush.msra.mxu0 %v1358
    %1932 = vmatpush.msra.mxu0 %v1355
    %1933 = vmatpush.msra.mxu0 %v1352
    %1934 = vmatpush.msra.mxu0 %v1349
    %1935 = vmatpush.msra.mxu0 %v1346
    %1936 = vmatpush.msra.mxu0 %v1343
    %1937 = vmatpush.msra.mxu0 %v1340
    %1938 = vmatpush.msra.mxu0 %v1337
    %1939 = vmatpush.msra.mxu0 %v1334
    %1940 = vmatpush.msra.mxu0 %v1331
    %1941 = vmatpush.msra.mxu0 %v1328
    %1942 = vmatpush.msra.mxu0 %v1325
    %1943 = vmatpush.msra.mxu0 %v1322
    %1944 = vmatpush.msra.mxu0 %v1319
    %1945 = vmatpush.msra.mxu0 %v1316
    %1946 = vmatpush.msra.mxu0 %v1313
    %1947 = vmatmul.f32.gmra.mxu0 %v1907
    %v1948 = vpop.f32.mrf.mxu0
    %v1949 = vadd.f32 0.0, %v1948
    %1950 = vdwg.mxu0
    %1951 = vmatpush.msra.mxu0 %v1359
    %1952 = vmatpush.msra.mxu0 %v1356
    %1953 = vmatpush.msra.mxu0 %v1353
    %1954 = vmatpush.msra.mxu0 %v1350
    %1955 = vmatpush.msra.mxu0 %v1347
    %1956 = vmatpush.msra.mxu0 %v1344
    %1957 = vmatpush.msra.mxu0 %v1341
    %1958 = vmatpush.msra.mxu0 %v1338
    %1959 = vmatpush.msra.mxu0 %v1335
    %1960 = vmatpush.msra.mxu0 %v1332
    %1961 = vmatpush.msra.mxu0 %v1329
    %1962 = vmatpush.msra.mxu0 %v1326
    %1963 = vmatpush.msra.mxu0 %v1323
    %1964 = vmatpush.msra.mxu0 %v1320
    %1965 = vmatpush.msra.mxu0 %v1317
    %1966 = vmatpush.msra.mxu0 %v1314
    %1967 = vmatmul.f32.gmra.mxu0 %v1907
    %v1968 = vpop.f32.mrf.mxu0
    %v1969 = vadd.f32 0.0, %v1968
    %1970 = vdwg.mxu0
    %v1971 = vadd.f32 %v1908, %v1929
    %v1972 = vadd.f32 %v1909, %v1949
    %v1973 = vxor.u32 %v1971, 2147483648
    %v1974 = vxor.u32 %v1972, 2147483648
    %v1975 = vmul.f32 %v1973, 1.442695
    %v1976 = vpow.pop %v1975
    %v1977 = vmul.f32 %v1974, 1.442695
    %v1978 = vpow.pop %v1977
    %v1979 = vadd.f32 %v1976, 1.0
    %v1980 = vadd.f32 %v1978, 1.0
    %v1981 = vrcp.pop %v1979
    %v1982 = vmul.f32 %v1979, %v1981
    %v1983 = vsub.f32 1.0, %v1982
    %v1984 = vmul.f32 %v1981, %v1983
    %v1985 = vadd.f32 %v1981, %v1984
    %vm1986 = vweird.f32 %v1979
    %vm1987 = vweird.f32 %v1981
    %vm1988 = vmor %vm1986, %vm1987
    %v1989 = vsel %vm1988, %v1981, %v1985
    %v1990 = vand.u32 2147483647, %v1979
    %vm1991 = vcmp.eq.f32.partialorder %v1990, 8.507059e+37
    %v1992 = vand.u32 %v1979, 2147483648
    %v1993 = vor.u32 1.1754944e-38, %v1992
    %v1994 = vsel %vm1991, %v1993, %v1989
    %v1995 = vmul.f32 1.0, %v1994
    %v1996 = vrcp.pop %v1980
    %v1997 = vmul.f32 %v1980, %v1996
    %v1998 = vsub.f32 1.0, %v1997
    %v1999 = vmul.f32 %v1996, %v1998
    %v2000 = vadd.f32 %v1996, %v1999
    %vm2001 = vweird.f32 %v1980
    %vm2002 = vweird.f32 %v1996
    %vm2003 = vmor %vm2001, %vm2002
    %v2004 = vsel %vm2003, %v1996, %v2000
    %v2005 = vand.u32 2147483647, %v1980
    %vm2006 = vcmp.eq.f32.partialorder %v2005, 8.507059e+37
    %v2007 = vand.u32 %v1980, 2147483648
    %v2008 = vor.u32 1.1754944e-38, %v2007
    %v2009 = vsel %vm2006, %v2008, %v2004
    %v2010 = vmul.f32 1.0, %v2009
    %v2011 = vadd.f32 %v1969, %v1362
    %v2012 = vmul.f32 %v1995, %v2011
    %v2013 = vadd.f32 %v1910, %v2012
    %v2014 = vtanh.pop %v2013
    %v2015 = vsub.f32 1.0, %v2010
    %v2016 = vmul.f32 %v2015, %v2014
    %v2017 = vmul.f32 %v2010, %v1907
    %v2018 = vadd.f32 %v2016, %v2017
    %v2019 = vld [vmem:[%s850] sm:$0xff]
    %v2020 = vld [vmem:[%s850 + $0x8] sm:$0xff]
    %v2021 = vld [vmem:[%s850 + $0x10] sm:$0xff]
    %2022 = vmatpush.msra.mxu0 %v1357
    %2023 = vmatpush.msra.mxu0 %v1354
    %2024 = vmatpush.msra.mxu0 %v1351
    %2025 = vmatpush.msra.mxu0 %v1348
    %2026 = vmatpush.msra.mxu0 %v1345
    %2027 = vmatpush.msra.mxu0 %v1342
    %2028 = vmatpush.msra.mxu0 %v1339
    %2029 = vmatpush.msra.mxu0 %v1336
    %2030 = vmatpush.msra.mxu0 %v1333
    %2031 = vmatpush.msra.mxu0 %v1330
    %2032 = vmatpush.msra.mxu0 %v1327
    %2033 = vmatpush.msra.mxu0 %v1324
    %2034 = vmatpush.msra.mxu0 %v1321
    %2035 = vmatpush.msra.mxu0 %v1318
    %2036 = vmatpush.msra.mxu0 %v1315
    %2037 = vmatpush.msra.mxu0 %v1312
    %2038 = vmatmul.f32.gmra.mxu0 %v2018
    %v2039 = vpop.f32.mrf.mxu0
    %v2040 = vadd.f32 0.0, %v2039
    %2041 = vdwg.mxu0
    %2042 = vmatpush.msra.mxu0 %v1358
    %2043 = vmatpush.msra.mxu0 %v1355
    %2044 = vmatpush.msra.mxu0 %v1352
    %2045 = vmatpush.msra.mxu0 %v1349
    %2046 = vmatpush.msra.mxu0 %v1346
    %2047 = vmatpush.msra.mxu0 %v1343
    %2048 = vmatpush.msra.mxu0 %v1340
    %2049 = vmatpush.msra.mxu0 %v1337
    %2050 = vmatpush.msra.mxu0 %v1334
    %2051 = vmatpush.msra.mxu0 %v1331
    %2052 = vmatpush.msra.mxu0 %v1328
    %2053 = vmatpush.msra.mxu0 %v1325
    %2054 = vmatpush.msra.mxu0 %v1322
    %2055 = vmatpush.msra.mxu0 %v1319
    %2056 = vmatpush.msra.mxu0 %v1316
    %2057 = vmatpush.msra.mxu0 %v1313
    %2058 = vmatmul.f32.gmra.mxu0 %v2018
    %v2059 = vpop.f32.mrf.mxu0
    %v2060 = vadd.f32 0.0, %v2059
    %2061 = vdwg.mxu0
    %2062 = vmatpush.msra.mxu0 %v1359
    %2063 = vmatpush.msra.mxu0 %v1356
    %2064 = vmatpush.msra.mxu0 %v1353
    %2065 = vmatpush.msra.mxu0 %v1350
    %2066 = vmatpush.msra.mxu0 %v1347
    %2067 = vmatpush.msra.mxu0 %v1344
    %2068 = vmatpush.msra.mxu0 %v1341
    %2069 = vmatpush.msra.mxu0 %v1338
    %2070 = vmatpush.msra.mxu0 %v1335
    %2071 = vmatpush.msra.mxu0 %v1332
    %2072 = vmatpush.msra.mxu0 %v1329
    %2073 = vmatpush.msra.mxu0 %v1326
    %2074 = vmatpush.msra.mxu0 %v1323
    %2075 = vmatpush.msra.mxu0 %v1320
    %2076 = vmatpush.msra.mxu0 %v1317
    %2077 = vmatpush.msra.mxu0 %v1314
    %2078 = vmatmul.f32.gmra.mxu0 %v2018
    %v2079 = vpop.f32.mrf.mxu0
    %v2080 = vadd.f32 0.0, %v2079
    %2081 = vdwg.mxu0
    %v2082 = vadd.f32 %v2019, %v2040
    %v2083 = vadd.f32 %v2020, %v2060
    %v2084 = vxor.u32 %v2082, 2147483648
    %v2085 = vxor.u32 %v2083, 2147483648
    %v2086 = vmul.f32 %v2084, 1.442695
    %v2087 = vpow.pop %v2086
    %v2088 = vmul.f32 %v2085, 1.442695
    %v2089 = vpow.pop %v2088
    %v2090 = vadd.f32 %v2087, 1.0
    %v2091 = vadd.f32 %v2089, 1.0
    %v2092 = vrcp.pop %v2090
    %v2093 = vmul.f32 %v2090, %v2092
    %v2094 = vsub.f32 1.0, %v2093
    %v2095 = vmul.f32 %v2092, %v2094
    %v2096 = vadd.f32 %v2092, %v2095
    %vm2097 = vweird.f32 %v2090
    %vm2098 = vweird.f32 %v2092
    %vm2099 = vmor %vm2097, %vm2098
    %v2100 = vsel %vm2099, %v2092, %v2096
    %v2101 = vand.u32 2147483647, %v2090
    %vm2102 = vcmp.eq.f32.partialorder %v2101, 8.507059e+37
    %v2103 = vand.u32 %v2090, 2147483648
    %v2104 = vor.u32 1.1754944e-38, %v2103
    %v2105 = vsel %vm2102, %v2104, %v2100
    %v2106 = vmul.f32 1.0, %v2105
    %v2107 = vrcp.pop %v2091
    %v2108 = vmul.f32 %v2091, %v2107
    %v2109 = vsub.f32 1.0, %v2108
    %v2110 = vmul.f32 %v2107, %v2109
    %v2111 = vadd.f32 %v2107, %v2110
    %vm2112 = vweird.f32 %v2091
    %vm2113 = vweird.f32 %v2107
    %vm2114 = vmor %vm2112, %vm2113
    %v2115 = vsel %vm2114, %v2107, %v2111
    %v2116 = vand.u32 2147483647, %v2091
    %vm2117 = vcmp.eq.f32.partialorder %v2116, 8.507059e+37
    %v2118 = vand.u32 %v2091, 2147483648
    %v2119 = vor.u32 1.1754944e-38, %v2118
    %v2120 = vsel %vm2117, %v2119, %v2115
    %v2121 = vmul.f32 1.0, %v2120
    %v2122 = vadd.f32 %v2080, %v1362
    %v2123 = vmul.f32 %v2106, %v2122
    %v2124 = vadd.f32 %v2021, %v2123
    %v2125 = vtanh.pop %v2124
    %v2126 = vsub.f32 1.0, %v2121
    %v2127 = vmul.f32 %v2126, %v2125
    %v2128 = vmul.f32 %v2121, %v2018
    %v2129 = vadd.f32 %v2127, %v2128
    %v2130 = vld [vmem:[%s966] sm:$0xff]
    %v2131 = vld [vmem:[%s966 + $0x8] sm:$0xff]
    %v2132 = vld [vmem:[%s966 + $0x10] sm:$0xff]
    %2133 = vmatpush.msra.mxu0 %v1357
    %2134 = vmatpush.msra.mxu0 %v1354
    %2135 = vmatpush.msra.mxu0 %v1351
    %2136 = vmatpush.msra.mxu0 %v1348
    %2137 = vmatpush.msra.mxu0 %v1345
    %2138 = vmatpush.msra.mxu0 %v1342
    %2139 = vmatpush.msra.mxu0 %v1339
    %2140 = vmatpush.msra.mxu0 %v1336
    %2141 = vmatpush.msra.mxu0 %v1333
    %2142 = vmatpush.msra.mxu0 %v1330
    %2143 = vmatpush.msra.mxu0 %v1327
    %2144 = vmatpush.msra.mxu0 %v1324
    %2145 = vmatpush.msra.mxu0 %v1321
    %2146 = vmatpush.msra.mxu0 %v1318
    %2147 = vmatpush.msra.mxu0 %v1315
    %2148 = vmatpush.msra.mxu0 %v1312
    %2149 = vmatmul.f32.gmra.mxu0 %v2129
    %v2150 = vpop.f32.mrf.mxu0
    %v2151 = vadd.f32 0.0, %v2150
    %2152 = vdwg.mxu0
    %2153 = vmatpush.msra.mxu0 %v1358
    %2154 = vmatpush.msra.mxu0 %v1355
    %2155 = vmatpush.msra.mxu0 %v1352
    %2156 = vmatpush.msra.mxu0 %v1349
    %2157 = vmatpush.msra.mxu0 %v1346
    %2158 = vmatpush.msra.mxu0 %v1343
    %2159 = vmatpush.msra.mxu0 %v1340
    %2160 = vmatpush.msra.mxu0 %v1337
    %2161 = vmatpush.msra.mxu0 %v1334
    %2162 = vmatpush.msra.mxu0 %v1331
    %2163 = vmatpush.msra.mxu0 %v1328
    %2164 = vmatpush.msra.mxu0 %v1325
    %2165 = vmatpush.msra.mxu0 %v1322
    %2166 = vmatpush.msra.mxu0 %v1319
    %2167 = vmatpush.msra.mxu0 %v1316
    %2168 = vmatpush.msra.mxu0 %v1313
    %2169 = vmatmul.f32.gmra.mxu0 %v2129
    %v2170 = vpop.f32.mrf.mxu0
    %v2171 = vadd.f32 0.0, %v2170
    %2172 = vdwg.mxu0
    %2173 = vmatpush.msra.mxu0 %v1359
    %2174 = vmatpush.msra.mxu0 %v1356
    %2175 = vmatpush.msra.mxu0 %v1353
    %2176 = vmatpush.msra.mxu0 %v1350
    %2177 = vmatpush.msra.mxu0 %v1347
    %2178 = vmatpush.msra.mxu0 %v1344
    %2179 = vmatpush.msra.mxu0 %v1341
    %2180 = vmatpush.msra.mxu0 %v1338
    %2181 = vmatpush.msra.mxu0 %v1335
    %2182 = vmatpush.msra.mxu0 %v1332
    %2183 = vmatpush.msra.mxu0 %v1329
    %2184 = vmatpush.msra.mxu0 %v1326
    %2185 = vmatpush.msra.mxu0 %v1323
    %2186 = vmatpush.msra.mxu0 %v1320
    %2187 = vmatpush.msra.mxu0 %v1317
    %2188 = vmatpush.msra.mxu0 %v1314
    %2189 = vmatmul.f32.gmra.mxu0 %v2129
    %v2190 = vpop.f32.mrf.mxu0
    %v2191 = vadd.f32 0.0, %v2190
    %2192 = vdwg.mxu0
    %v2193 = vadd.f32 %v2130, %v2151
    %v2194 = vadd.f32 %v2131, %v2171
    %v2195 = vxor.u32 %v2193, 2147483648
    %v2196 = vxor.u32 %v2194, 2147483648
    %v2197 = vmul.f32 %v2195, 1.442695
    %v2198 = vpow.pop %v2197
    %v2199 = vmul.f32 %v2196, 1.442695
    %v2200 = vpow.pop %v2199
    %v2201 = vadd.f32 %v2198, 1.0
    %v2202 = vadd.f32 %v2200, 1.0
    %v2203 = vrcp.pop %v2201
    %v2204 = vmul.f32 %v2201, %v2203
    %v2205 = vsub.f32 1.0, %v2204
    %v2206 = vmul.f32 %v2203, %v2205
    %v2207 = vadd.f32 %v2203, %v2206
    %vm2208 = vweird.f32 %v2201
    %vm2209 = vweird.f32 %v2203
    %vm2210 = vmor %vm2208, %vm2209
    %v2211 = vsel %vm2210, %v2203, %v2207
    %v2212 = vand.u32 2147483647, %v2201
    %vm2213 = vcmp.eq.f32.partialorder %v2212, 8.507059e+37
    %v2214 = vand.u32 %v2201, 2147483648
    %v2215 = vor.u32 1.1754944e-38, %v2214
    %v2216 = vsel %vm2213, %v2215, %v2211
    %v2217 = vmul.f32 1.0, %v2216
    %v2218 = vrcp.pop %v2202
    %v2219 = vmul.f32 %v2202, %v2218
    %v2220 = vsub.f32 1.0, %v2219
    %v2221 = vmul.f32 %v2218, %v2220
    %v2222 = vadd.f32 %v2218, %v2221
    %vm2223 = vweird.f32 %v2202
    %vm2224 = vweird.f32 %v2218
    %vm2225 = vmor %vm2223, %vm2224
    %v2226 = vsel %vm2225, %v2218, %v2222
    %v2227 = vand.u32 2147483647, %v2202
    %vm2228 = vcmp.eq.f32.partialorder %v2227, 8.507059e+37
    %v2229 = vand.u32 %v2202, 2147483648
    %v2230 = vor.u32 1.1754944e-38, %v2229
    %v2231 = vsel %vm2228, %v2230, %v2226
    %v2232 = vmul.f32 1.0, %v2231
    %v2233 = vadd.f32 %v2191, %v1362
    %v2234 = vmul.f32 %v2217, %v2233
    %v2235 = vadd.f32 %v2132, %v2234
    %v2236 = vtanh.pop %v2235
    %v2237 = vsub.f32 1.0, %v2232
    %v2238 = vmul.f32 %v2237, %v2236
    %v2239 = vmul.f32 %v2232, %v2129
    %v2240 = vadd.f32 %v2238, %v2239
    %v2241 = vld [vmem:[%s1082] sm:$0xff]
    %v2242 = vld [vmem:[%s1082 + $0x8] sm:$0xff]
    %v2243 = vld [vmem:[%s1082 + $0x10] sm:$0xff]
    %2244 = vmatpush.msra.mxu0 %v1357
    %2245 = vmatpush.msra.mxu0 %v1354
    %2246 = vmatpush.msra.mxu0 %v1351
    %2247 = vmatpush.msra.mxu0 %v1348
    %2248 = vmatpush.msra.mxu0 %v1345
    %2249 = vmatpush.msra.mxu0 %v1342
    %2250 = vmatpush.msra.mxu0 %v1339
    %2251 = vmatpush.msra.mxu0 %v1336
    %2252 = vmatpush.msra.mxu0 %v1333
    %2253 = vmatpush.msra.mxu0 %v1330
    %2254 = vmatpush.msra.mxu0 %v1327
    %2255 = vmatpush.msra.mxu0 %v1324
    %2256 = vmatpush.msra.mxu0 %v1321
    %2257 = vmatpush.msra.mxu0 %v1318
    %2258 = vmatpush.msra.mxu0 %v1315
    %2259 = vmatpush.msra.mxu0 %v1312
    %2260 = vmatmul.f32.gmra.mxu0 %v2240
    %v2261 = vpop.f32.mrf.mxu0
    %v2262 = vadd.f32 0.0, %v2261
    %2263 = vdwg.mxu0
    %2264 = vmatpush.msra.mxu0 %v1358
    %2265 = vmatpush.msra.mxu0 %v1355
    %2266 = vmatpush.msra.mxu0 %v1352
    %2267 = vmatpush.msra.mxu0 %v1349
    %2268 = vmatpush.msra.mxu0 %v1346
    %2269 = vmatpush.msra.mxu0 %v1343
    %2270 = vmatpush.msra.mxu0 %v1340
    %2271 = vmatpush.msra.mxu0 %v1337
    %2272 = vmatpush.msra.mxu0 %v1334
    %2273 = vmatpush.msra.mxu0 %v1331
    %2274 = vmatpush.msra.mxu0 %v1328
    %2275 = vmatpush.msra.mxu0 %v1325
    %2276 = vmatpush.msra.mxu0 %v1322
    %2277 = vmatpush.msra.mxu0 %v1319
    %2278 = vmatpush.msra.mxu0 %v1316
    %2279 = vmatpush.msra.mxu0 %v1313
    %2280 = vmatmul.f32.gmra.mxu0 %v2240
    %v2281 = vpop.f32.mrf.mxu0
    %v2282 = vadd.f32 0.0, %v2281
    %2283 = vdwg.mxu0
    %2284 = vmatpush.msra.mxu0 %v1359
    %2285 = vmatpush.msra.mxu0 %v1356
    %2286 = vmatpush.msra.mxu0 %v1353
    %2287 = vmatpush.msra.mxu0 %v1350
    %2288 = vmatpush.msra.mxu0 %v1347
    %2289 = vmatpush.msra.mxu0 %v1344
    %2290 = vmatpush.msra.mxu0 %v1341
    %2291 = vmatpush.msra.mxu0 %v1338
    %2292 = vmatpush.msra.mxu0 %v1335
    %2293 = vmatpush.msra.mxu0 %v1332
    %2294 = vmatpush.msra.mxu0 %v1329
    %2295 = vmatpush.msra.mxu0 %v1326
    %2296 = vmatpush.msra.mxu0 %v1323
    %2297 = vmatpush.msra.mxu0 %v1320
    %2298 = vmatpush.msra.mxu0 %v1317
    %2299 = vmatpush.msra.mxu0 %v1314
    %2300 = vmatmul.f32.gmra.mxu0 %v2240
    %v2301 = vpop.f32.mrf.mxu0
    %v2302 = vadd.f32 0.0, %v2301
    %2303 = vdwg.mxu0
    %v2304 = vadd.f32 %v2241, %v2262
    %v2305 = vadd.f32 %v2242, %v2282
    %v2306 = vxor.u32 %v2304, 2147483648
    %v2307 = vxor.u32 %v2305, 2147483648
    %v2308 = vmul.f32 %v2306, 1.442695
    %v2309 = vpow.pop %v2308
    %v2310 = vmul.f32 %v2307, 1.442695
    %v2311 = vpow.pop %v2310
    %v2312 = vadd.f32 %v2309, 1.0
    %v2313 = vadd.f32 %v2311, 1.0
    %v2314 = vrcp.pop %v2312
    %v2315 = vmul.f32 %v2312, %v2314
    %v2316 = vsub.f32 1.0, %v2315
    %v2317 = vmul.f32 %v2314, %v2316
    %v2318 = vadd.f32 %v2314, %v2317
    %vm2319 = vweird.f32 %v2312
    %vm2320 = vweird.f32 %v2314
    %vm2321 = vmor %vm2319, %vm2320
    %v2322 = vsel %vm2321, %v2314, %v2318
    %v2323 = vand.u32 2147483647, %v2312
    %vm2324 = vcmp.eq.f32.partialorder %v2323, 8.507059e+37
    %v2325 = vand.u32 %v2312, 2147483648
    %v2326 = vor.u32 1.1754944e-38, %v2325
    %v2327 = vsel %vm2324, %v2326, %v2322
    %v2328 = vmul.f32 1.0, %v2327
    %v2329 = vrcp.pop %v2313
    %v2330 = vmul.f32 %v2313, %v2329
    %v2331 = vsub.f32 1.0, %v2330
    %v2332 = vmul.f32 %v2329, %v2331
    %v2333 = vadd.f32 %v2329, %v2332
    %vm2334 = vweird.f32 %v2313
    %vm2335 = vweird.f32 %v2329
    %vm2336 = vmor %vm2334, %vm2335
    %v2337 = vsel %vm2336, %v2329, %v2333
    %v2338 = vand.u32 2147483647, %v2313
    %vm2339 = vcmp.eq.f32.partialorder %v2338, 8.507059e+37
    %v2340 = vand.u32 %v2313, 2147483648
    %v2341 = vor.u32 1.1754944e-38, %v2340
    %v2342 = vsel %vm2339, %v2341, %v2337
    %v2343 = vmul.f32 1.0, %v2342
    %v2344 = vadd.f32 %v2302, %v1362
    %v2345 = vmul.f32 %v2328, %v2344
    %v2346 = vadd.f32 %v2243, %v2345
    %v2347 = vtanh.pop %v2346
    %v2348 = vsub.f32 1.0, %v2343
    %v2349 = vmul.f32 %v2348, %v2347
    %v2350 = vmul.f32 %v2343, %v2240
    %v2351 = vadd.f32 %v2349, %v2350
    %v2352 = vld [vmem:[%s1198] sm:$0xff]
    %v2353 = vld [vmem:[%s1198 + $0x8] sm:$0xff]
    %v2354 = vld [vmem:[%s1198 + $0x10] sm:$0xff]
    %2355 = vmatpush.msra.mxu0 %v1357
    %2356 = vmatpush.msra.mxu0 %v1354
    %2357 = vmatpush.msra.mxu0 %v1351
    %2358 = vmatpush.msra.mxu0 %v1348
    %2359 = vmatpush.msra.mxu0 %v1345
    %2360 = vmatpush.msra.mxu0 %v1342
    %2361 = vmatpush.msra.mxu0 %v1339
    %2362 = vmatpush.msra.mxu0 %v1336
    %2363 = vmatpush.msra.mxu0 %v1333
    %2364 = vmatpush.msra.mxu0 %v1330
    %2365 = vmatpush.msra.mxu0 %v1327
    %2366 = vmatpush.msra.mxu0 %v1324
    %2367 = vmatpush.msra.mxu0 %v1321
    %2368 = vmatpush.msra.mxu0 %v1318
    %2369 = vmatpush.msra.mxu0 %v1315
    %2370 = vmatpush.msra.mxu0 %v1312
    %2371 = vmatmul.f32.gmra.mxu0 %v2351
    %v2372 = vpop.f32.mrf.mxu0
    %v2373 = vadd.f32 0.0, %v2372
    %2374 = vdwg.mxu0
    %2375 = vmatpush.msra.mxu0 %v1358
    %2376 = vmatpush.msra.mxu0 %v1355
    %2377 = vmatpush.msra.mxu0 %v1352
    %2378 = vmatpush.msra.mxu0 %v1349
    %2379 = vmatpush.msra.mxu0 %v1346
    %2380 = vmatpush.msra.mxu0 %v1343
    %2381 = vmatpush.msra.mxu0 %v1340
    %2382 = vmatpush.msra.mxu0 %v1337
    %2383 = vmatpush.msra.mxu0 %v1334
    %2384 = vmatpush.msra.mxu0 %v1331
    %2385 = vmatpush.msra.mxu0 %v1328
    %2386 = vmatpush.msra.mxu0 %v1325
    %2387 = vmatpush.msra.mxu0 %v1322
    %2388 = vmatpush.msra.mxu0 %v1319
    %2389 = vmatpush.msra.mxu0 %v1316
    %2390 = vmatpush.msra.mxu0 %v1313
    %2391 = vmatmul.f32.gmra.mxu0 %v2351
    %v2392 = vpop.f32.mrf.mxu0
    %v2393 = vadd.f32 0.0, %v2392
    %2394 = vdwg.mxu0
    %2395 = vmatpush.msra.mxu0 %v1359
    %2396 = vmatpush.msra.mxu0 %v1356
    %2397 = vmatpush.msra.mxu0 %v1353
    %2398 = vmatpush.msra.mxu0 %v1350
    %2399 = vmatpush.msra.mxu0 %v1347
    %2400 = vmatpush.msra.mxu0 %v1344
    %2401 = vmatpush.msra.mxu0 %v1341
    %2402 = vmatpush.msra.mxu0 %v1338
    %2403 = vmatpush.msra.mxu0 %v1335
    %2404 = vmatpush.msra.mxu0 %v1332
    %2405 = vmatpush.msra.mxu0 %v1329
    %2406 = vmatpush.msra.mxu0 %v1326
    %2407 = vmatpush.msra.mxu0 %v1323
    %2408 = vmatpush.msra.mxu0 %v1320
    %2409 = vmatpush.msra.mxu0 %v1317
    %2410 = vmatpush.msra.mxu0 %v1314
    %2411 = vmatmul.f32.gmra.mxu0 %v2351
    %v2412 = vpop.f32.mrf.mxu0
    %v2413 = vadd.f32 0.0, %v2412
    %2414 = vdwg.mxu0
    %v2415 = vadd.f32 %v2352, %v2373
    %v2416 = vadd.f32 %v2353, %v2393
    %v2417 = vxor.u32 %v2415, 2147483648
    %v2418 = vxor.u32 %v2416, 2147483648
    %v2419 = vmul.f32 %v2417, 1.442695
    %v2420 = vpow.pop %v2419
    %v2421 = vmul.f32 %v2418, 1.442695
    %v2422 = vpow.pop %v2421
    %v2423 = vadd.f32 %v2420, 1.0
    %v2424 = vadd.f32 %v2422, 1.0
    %v2425 = vrcp.pop %v2423
    %v2426 = vmul.f32 %v2423, %v2425
    %v2427 = vsub.f32 1.0, %v2426
    %v2428 = vmul.f32 %v2425, %v2427
    %v2429 = vadd.f32 %v2425, %v2428
    %vm2430 = vweird.f32 %v2423
    %vm2431 = vweird.f32 %v2425
    %vm2432 = vmor %vm2430, %vm2431
    %v2433 = vsel %vm2432, %v2425, %v2429
    %v2434 = vand.u32 2147483647, %v2423
    %vm2435 = vcmp.eq.f32.partialorder %v2434, 8.507059e+37
    %v2436 = vand.u32 %v2423, 2147483648
    %v2437 = vor.u32 1.1754944e-38, %v2436
    %v2438 = vsel %vm2435, %v2437, %v2433
    %v2439 = vmul.f32 1.0, %v2438
    %v2440 = vrcp.pop %v2424
    %v2441 = vmul.f32 %v2424, %v2440
    %v2442 = vsub.f32 1.0, %v2441
    %v2443 = vmul.f32 %v2440, %v2442
    %v2444 = vadd.f32 %v2440, %v2443
    %vm2445 = vweird.f32 %v2424
    %vm2446 = vweird.f32 %v2440
    %vm2447 = vmor %vm2445, %vm2446
    %v2448 = vsel %vm2447, %v2440, %v2444
    %v2449 = vand.u32 2147483647, %v2424
    %vm2450 = vcmp.eq.f32.partialorder %v2449, 8.507059e+37
    %v2451 = vand.u32 %v2424, 2147483648
    %v2452 = vor.u32 1.1754944e-38, %v2451
    %v2453 = vsel %vm2450, %v2452, %v2448
    %v2454 = vmul.f32 1.0, %v2453
    %v2455 = vadd.f32 %v2413, %v1362
    %v2456 = vmul.f32 %v2439, %v2455
    %v2457 = vadd.f32 %v2354, %v2456
    %v2458 = vtanh.pop %v2457
    %v2459 = vsub.f32 1.0, %v2454
    %v2460 = vmul.f32 %v2459, %v2458
    %v2461 = vmul.f32 %v2454, %v2351
    %v2462 = vadd.f32 %v2460, %v2461
    %v2463 = vmax.f32 %v2462, 0.0
    %v2464 = vld [vmem:[%s9] sm:$0xff]
    %v2465 = vld [vmem:[%s9 + $0x8] sm:$0xff]
    %v2466 = vld [vmem:[%s9 + $0x10] sm:$0xff]
    %v2467 = vld [vmem:[%s9 + $0x18] sm:$0xff]
    %v2468 = vld [vmem:[%s9 + $0x20] sm:$0xff]
    %v2469 = vld [vmem:[%s9 + $0x28] sm:$0xff]
    %v2470 = vld [vmem:[%s9 + $0x30] sm:$0xff]
    %v2471 = vld [vmem:[%s9 + $0x38] sm:$0xff]
    %v2472 = vld [vmem:[%s9 + $0x40] sm:$0xff]
    %v2473 = vld [vmem:[%s9 + $0x48] sm:$0xff]
    %v2474 = vld [vmem:[%s9 + $0x50] sm:$0xff]
    %v2475 = vld [vmem:[%s9 + $0x58] sm:$0xff]
    %v2476 = vld [vmem:[%s9 + $0x60] sm:$0xff]
    %v2477 = vld [vmem:[%s9 + $0x68] sm:$0xff]
    %v2478 = vld [vmem:[%s9 + $0x70] sm:$0xff]
    %v2479 = vld [vmem:[%s9 + $0x78] sm:$0xff]
    %v2480 = vld [vmem:[%s10] sm:$0x1]
    %v2482 = vperm.slane %v2480, 0
    %2484 = vmatpush.msra.mxu0 %v2479
    %2485 = vmatpush.msra.mxu0 %v2478
    %2486 = vmatpush.msra.mxu0 %v2477
    %2487 = vmatpush.msra.mxu0 %v2476
    %2488 = vmatpush.msra.mxu0 %v2475
    %2489 = vmatpush.msra.mxu0 %v2474
    %2490 = vmatpush.msra.mxu0 %v2473
    %2491 = vmatpush.msra.mxu0 %v2472
    %2492 = vmatpush.msra.mxu0 %v2471
    %2493 = vmatpush.msra.mxu0 %v2470
    %2494 = vmatpush.msra.mxu0 %v2469
    %2495 = vmatpush.msra.mxu0 %v2468
    %2496 = vmatpush.msra.mxu0 %v2467
    %2497 = vmatpush.msra.mxu0 %v2466
    %2498 = vmatpush.msra.mxu0 %v2465
    %2499 = vmatpush.msra.mxu0 %v2464
    %2500 = vmatmul.f32.gmra.mxu0 %v2463
    %v2501 = vpop.f32.mrf.mxu0
    %v2502 = vadd.f32 %v2482, %v2501
    %2503 = vdwg.mxu0
    %v2504 = vmax.f32 %v2502, 0.0
    %v2505 = vld [vmem:[#allocation11] sm:$0xff]
    %v2506 = vld [vmem:[#allocation11 + $0x8] sm:$0xff]
    %v2507 = vld [vmem:[#allocation11 + $0x10] sm:$0xff]
    %v2508 = vld [vmem:[#allocation11 + $0x18] sm:$0xff]
    %v2509 = vld [vmem:[#allocation11 + $0x20] sm:$0xff]
    %v2510 = vld [vmem:[#allocation11 + $0x28] sm:$0xff]
    %v2511 = vld [vmem:[#allocation11 + $0x30] sm:$0xff]
    %v2512 = vld [vmem:[#allocation11 + $0x38] sm:$0xff]
    %v2513 = vld [vmem:[#allocation11 + $0x40] sm:$0xff]
    %v2514 = vld [vmem:[#allocation11 + $0x48] sm:$0xff]
    %v2515 = vld [vmem:[#allocation11 + $0x50] sm:$0xff]
    %v2516 = vld [vmem:[#allocation11 + $0x58] sm:$0xff]
    %v2517 = vld [vmem:[#allocation11 + $0x60] sm:$0xff]
    %v2518 = vld [vmem:[#allocation11 + $0x68] sm:$0xff]
    %v2519 = vld [vmem:[#allocation11 + $0x70] sm:$0xff]
    %v2520 = vld [vmem:[#allocation11 + $0x78] sm:$0xff]
    %v2521 = vld [vmem:[%s12] sm:$0x1]
    %v2523 = vperm.slane %v2521, 0
    %2525 = vmatpush.msra.mxu0 %v2520
    %2526 = vmatpush.msra.mxu0 %v2519
    %2527 = vmatpush.msra.mxu0 %v2518
    %2528 = vmatpush.msra.mxu0 %v2517
    %2529 = vmatpush.msra.mxu0 %v2516
    %2530 = vmatpush.msra.mxu0 %v2515
    %2531 = vmatpush.msra.mxu0 %v2514
    %2532 = vmatpush.msra.mxu0 %v2513
    %2533 = vmatpush.msra.mxu0 %v2512
    %2534 = vmatpush.msra.mxu0 %v2511
    %2535 = vmatpush.msra.mxu0 %v2510
    %2536 = vmatpush.msra.mxu0 %v2509
    %2537 = vmatpush.msra.mxu0 %v2508
    %2538 = vmatpush.msra.mxu0 %v2507
    %2539 = vmatpush.msra.mxu0 %v2506
    %2540 = vmatpush.msra.mxu0 %v2505
    %2541 = vmatmul.f32.gmra.mxu0 %v2504
    %v2542 = vpop.f32.mrf.mxu0
    %v2543 = vadd.f32 %v2523, %v2542
    %2544 = vdwg.mxu0
    %2545 = vst [vmem:[%s13] sm:$0xff] %v2543
    // Predicated region
    $region74: #{gru_model_forward.1} parent=1 // pred_check
      _
    $region75: #{gru_model_forward.1} parent=1 // pred_check_branch
      %2547 = sbr.rel (0) target = $region77
    $region76: #{gru_model_forward.1} parent=1 // pred_region
      _
    $region77: #{gru_model_forward.1} parent=1 // pred_fallthru
      _
    // Predicated region
    $region78: #{gru_model_forward.1} parent=1 // pred_check
      _
    $region79: #{gru_model_forward.1} parent=1 // pred_check_branch
      %2549 = sbr.rel (0) target = $region81
    $region80: #{gru_model_forward.1} parent=1 // pred_region
      _
    $region81: #{gru_model_forward.1} parent=1 // pred_fallthru
      _
    %2550 = vsyncpa [#allocation5], 1
    %2551 = vsyncpa [#allocation7], 1
    %2552 = vsyncpa [#allocation10], 1

</llo_original>
